<compile_context>
chip_gen: v7x
topology: tpu7x:2x2x1
jax: 0.10.0
libtpu: 0.0.40
codegen_flags: <defaults>
</compile_context>

<pallas_src>
from functools import partial

import jax
import jax.numpy as jnp
from jax.experimental import pallas as pl
from jax.experimental.pallas import tpu as pltpu

LANE = 128


def _round_up(n, m):
    return ((n + m - 1) // m) * m


def _lstm_fc_kernel(x_ref,                 # (T*B, D)   bf16, time-major flattened
                    wih0_ref, b0_ref,      # (D, G) bf16, (1, G) f32
                    wa_ref, wb_ref, b1_ref,  # (Hp, 2G) bf16, (Hp, G) bf16, (1, G) f32
                    wfc_ref, bfc_ref,      # (Hp, O) bf16, (1, O) f32
                    out_ref,               # (B, O) f32
                    z0_scr,                # (T*B, G) f32 VMEM scratch
                    *, batch: int, seq_len: int, hidden_pad: int):
    B, T, Hp = batch, seq_len, hidden_pad
    G = 4 * Hp

    # ---- layer-0 input projection hoisted out of the recurrence --------------
    # One batched MXU dot for all timesteps, bias b0 folded in.  Stored
    # time-major so step t reads rows [t*B, (t+1)*B).
    z0_scr[...] = (jnp.dot(x_ref[...], wih0_ref[...],
                           preferred_element_type=jnp.float32)
                   + b0_ref[...])

    # Hoisted bias broadcast (tiny; JAX does not CSE broadcast_in_dim).
    b1b = jnp.broadcast_to(b1_ref[...], (B, G))

    def gates(z):
        # Each slice is a whole 128-lane block (Hp == 128*k): no masked slices.
        i = jax.nn.sigmoid(z[:, 0 * Hp:1 * Hp])
        f = jax.nn.sigmoid(z[:, 1 * Hp:2 * Hp])
        g = jnp.tanh(z[:, 2 * Hp:3 * Hp])
        o = jax.nn.sigmoid(z[:, 3 * Hp:4 * Hp])
        return i, f, g, o

    # ---- prologue: step-0 layer-0 cell (h0_{-1} = c0_{-1} = 0) ----------------
    z0 = z0_scr[pl.ds(0, B), :]
    i0 = jax.nn.sigmoid(z0[:, 0 * Hp:1 * Hp])
    g0 = jnp.tanh(z0[:, 2 * Hp:3 * Hp])
    o0 = jax.nn.sigmoid(z0[:, 3 * Hp:4 * Hp])
    c0 = i0 * g0                       # forget-gate term vanishes (c_{-1} = 0)
    h0 = o0 * jnp.tanh(c0)
    h1 = jnp.zeros((B, Hp), jnp.float32)
    c1 = jnp.zeros((B, Hp), jnp.float32)

    # ---- recurrence: T is small & static -> full unroll -----------------------
    for t in range(T):
        # Two independent dots per step (both depend only on h0[t] / h1[t-1]),
        # weight refs read at the use site (no live weight values across steps).
        za = jnp.dot(h0.astype(jnp.bfloat16), wa_ref[...],
                     preferred_element_type=jnp.float32)          # (B, 2G)
        zb = jnp.dot(h1.astype(jnp.bfloat16), wb_ref[...],
                     preferred_element_type=jnp.float32)          # (B, G)

        z1 = za[:, G:] + zb + b1b                                  # layer-1 preact @ t

        if t < T - 1:
            # layer-0 preact @ t+1 = hoisted input proj + recurrent half of za
            z0n = z0_scr[pl.ds((t + 1) * B, B), :] + za[:, :G]
            # Sublane-pack both layers' gate math into one pass (halves EUP ops).
            zp = jnp.concatenate([z1, z0n], axis=0)                # (2B, G)
            cp = jnp.concatenate([c1, c0], axis=0)                 # (2B, Hp)
            i, f, g, o = gates(zp)
            cp = f * cp + i * g
            hp = o * jnp.tanh(cp)
            h1, h0 = hp[:B], hp[B:]
            c1, c0 = cp[:B], cp[B:]
        else:
            # Last step: only the layer-1 cell is needed for the output.
            i, f, g, o = gates(z1)
            c1 = f * c1 + i * g
            h1 = o * jnp.tanh(c1)

    # ---- final Linear on hidden[-1] (last layer's final hidden state) ---------
    out_ref[...] = (jnp.dot(h1.astype(jnp.bfloat16), wfc_ref[...],
                            preferred_element_type=jnp.float32)
                    + bfc_ref[...])


def action_to_observation_lstm(x, kparams, *, output_dim: int):
    """x: (B, T, D) batch-first (like the PyTorch module). Returns (B, output_dim)."""
    B, T, D = x.shape
    Hp = kparams["hidden_pad"]
    G = 4 * Hp
    # Time-major + flattened + bf16 once in the wrapper: the kernel's hoisted
    # projection is one clean dot and each per-step read is a contiguous row block.
    x_tm = jnp.transpose(x, (1, 0, 2)).reshape(T * B, D).astype(jnp.bfloat16)
    kernel = partial(_lstm_fc_kernel, batch=B, seq_len=T, hidden_pad=Hp)
    # TODO(synk): for large batch, add a leading batch grid axis with
    # dimension_semantics=("parallel",) to use both v7x TensorCores.
    return pl.pallas_call(
        kernel,
        out_shape=jax.ShapeDtypeStruct((B, output_dim), jnp.float32),
        in_specs=[pl.BlockSpec(memory_space=pltpu.MemorySpace.VMEM)
                  for _ in range(8)],
        out_specs=pl.BlockSpec(memory_space=pltpu.MemorySpace.VMEM),
        scratch_shapes=[pltpu.VMEM((T * B, G), jnp.float32)],
    )(x_tm,
      kparams["wih0"], kparams["b0"],
      kparams["wa"], kparams["wb"], kparams["b1"],
      kparams["wfc"], kparams["bfc"])


def init_params(key, input_dim, hidden_dim, output_dim):
    """Deterministic PyTorch-style init (U(-1/sqrt(H), 1/sqrt(H))), f32, unpadded."""
    H, D, O = hidden_dim, input_dim, output_dim
    k = 1.0 / jnp.sqrt(jnp.float32(H))
    keys = jax.random.split(key, 10)

    def u(kk, shape, scale):
        return jax.random.uniform(kk, shape, jnp.float32, -scale, scale)

    # PyTorch stores (4H, in); pre-transpose so the kernel does x @ W.
    wih0 = u(keys[0], (4 * H, D), k).T                       # (D, 4H)
    whh0 = u(keys[1], (4 * H, H), k).T                       # (H, 4H)
    b0 = (u(keys[2], (4 * H,), k) + u(keys[3], (4 * H,), k))[None, :]   # b_ih + b_hh
    wih1 = u(keys[4], (4 * H, H), k).T                       # (H, 4H)
    whh1 = u(keys[5], (4 * H, H), k).T                       # (H, 4H)
    b1 = (u(keys[6], (4 * H,), k) + u(keys[7], (4 * H,), k))[None, :]
    wfc = u(keys[8], (O, H), k).T                            # (H, O)
    bfc = u(keys[9], (O,), k)[None, :]                       # (1, O)
    return dict(wih0=wih0, whh0=whh0, b0=b0,
                wih1=wih1, whh1=whh1, b1=b1, wfc=wfc, bfc=bfc)


def prepare_kernel_params(params, hidden_dim):
    """Pad gate blocks to 128 lanes, fuse per-step weights, cast matmul weights to bf16.

    wa = [whh0 | wih1]  (Hp, 2G): one dot of h0[t] yields both the recurrent
        contribution to layer-0 step t+1 and layer-1's input projection at t.
    wb = whh1           (Hp,  G): independent dot of h1[t-1].
    """
    H = hidden_dim
    Hp = _round_up(H, LANE)          # gate block padded to a whole lane tile
    G = 4 * Hp

    def pad_gate_cols(w):            # (rows, 4H) -> (rows, 4Hp), zeros elsewhere
        out = jnp.zeros((w.shape[0], G), w.dtype)
        for g in range(4):
            out = out.at[:, g * Hp:g * Hp + H].set(w[:, g * H:(g + 1) * H])
        return out

    def pad_rows(w, rows_to):        # (H, cols) -> (rows_to, cols), zero rows below
        return jnp.zeros((rows_to, w.shape[1]), w.dtype).at[:w.shape[0], :].set(w)

    wih0 = pad_gate_cols(params["wih0"]).astype(jnp.bfloat16)               # (D, G)
    b0 = pad_gate_cols(params["b0"])                                        # (1, G) f32
    whh0 = pad_rows(pad_gate_cols(params["whh0"]), Hp)                      # (Hp, G)
    wih1 = pad_rows(pad_gate_cols(params["wih1"]), Hp)                      # (Hp, G)
    whh1 = pad_rows(pad_gate_cols(params["whh1"]), Hp)                      # (Hp, G)
    wa = jnp.concatenate([whh0, wih1], axis=1).astype(jnp.bfloat16)         # (Hp, 2G)
    wb = whh1.astype(jnp.bfloat16)                                          # (Hp, G)
    b1 = pad_gate_cols(params["b1"])                                        # (1, G) f32
    wfc = pad_rows(params["wfc"], Hp).astype(jnp.bfloat16)                  # (Hp, O)
    bfc = params["bfc"]                                                     # (1, O) f32
    return dict(wih0=wih0, b0=b0, wa=wa, wb=wb, b1=b1,
                wfc=wfc, bfc=bfc, hidden_pad=Hp)


def _reference(x, params, hidden_dim):
    """Pure-JAX f32 reference of the same forward pass (unpadded params)."""
    H = hidden_dim
    B, T, _ = x.shape

    def cell(x_t, h, c, wih, whh, b):
        z = x_t @ wih + h @ whh + b
        i = jax.nn.sigmoid(z[:, 0:H])
        f = jax.nn.sigmoid(z[:, H:2 * H])
        g = jnp.tanh(z[:, 2 * H:3 * H])
        o = jax.nn.sigmoid(z[:, 3 * H:4 * H])
        c = f * c + i * g
        return o * jnp.tanh(c), c

    h0 = c0 = h1 = c1 = jnp.zeros((B, H), jnp.float32)
    for t in range(T):
        x_t = x[:, t, :]
        h0, c0 = cell(x_t, h0, c0, params["wih0"], params["whh0"], params["b0"])
        h1, c1 = cell(h0, h1, c1, params["wih1"], params["whh1"], params["b1"])
    return h1 @ params["wfc"] + params["bfc"]


if __name__ == "__main__":
    # Shapes consistent with the module's forward:
    # x: (batch, seq, input_dim), hidden_dim=32, output_dim=16, num_layers=2
    B, T, D, H, O = 2, 8, 8, 32, 16

    key = jax.random.PRNGKey(0)
    k_x, k_p = jax.random.split(key)
    x = jax.random.normal(k_x, (B, T, D), jnp.float32)

    params = init_params(k_p, D, H, O)            # f32 reference layout
    kparams = prepare_kernel_params(params, H)    # padded / fused / bf16 kernel layout

    out = action_to_observation_lstm(x, kparams, output_dim=O)
    out = jax.block_until_ready(out)

    ref = _reference(x, params, H)
    assert out.shape == (B, O)
    # bf16 matmul inputs (f32 accumulation) -> loosen tolerance vs. the f32 reference.
    assert jnp.allclose(out, ref, atol=2e-2, rtol=2e-2), "mismatch vs reference"

    print("KERNEL_OK")
</pallas_src>

<mosaic_0001>
module attributes {stable_mosaic.version = 11 : i64} {
  func.func @_lstm_fc_kernel(%arg0: memref<16x8xbf16, #tpu.memory_space<vmem>>, %arg1: memref<8x512xbf16, #tpu.memory_space<vmem>>, %arg2: memref<1x512xf32, #tpu.memory_space<vmem>>, %arg3: memref<128x1024xbf16, #tpu.memory_space<vmem>>, %arg4: memref<128x512xbf16, #tpu.memory_space<vmem>>, %arg5: memref<1x512xf32, #tpu.memory_space<vmem>>, %arg6: memref<128x16xbf16, #tpu.memory_space<vmem>>, %arg7: memref<1x16xf32, #tpu.memory_space<vmem>>, %arg8: memref<2x16xf32, #tpu.memory_space<vmem>>, %arg9: memref<16x512xf32, #tpu.memory_space<vmem>>) attributes {dimension_semantics = [], scalar_prefetch = 0 : i64, scratch_operands = 1 : i64, tpu.core_type = #tpu.core_type<tc>} {
    %c0 = arith.constant 0 : index
    %c0_0 = arith.constant 0 : index
    %0 = vector.load %arg0[%c0, %c0_0] : memref<16x8xbf16, #tpu.memory_space<vmem>>, vector<16x8xbf16>
    %c0_1 = arith.constant 0 : index
    %c0_2 = arith.constant 0 : index
    %1 = vector.load %arg1[%c0_1, %c0_2] : memref<8x512xbf16, #tpu.memory_space<vmem>>, vector<8x512xbf16>
    %cst = arith.constant dense<0.000000e+00> : vector<16x512xf32>
    %2 = tpu.matmul %0, %1, %cst {dimension_numbers = #tpu.dot_dimension_numbers<[1], [0], [0], [1], [0, 0, 1, 1], [], []>} : vector<16x8xbf16>, vector<8x512xbf16>, vector<16x512xf32> -> vector<16x512xf32>
    %c0_3 = arith.constant 0 : index
    %c0_4 = arith.constant 0 : index
    %3 = vector.load %arg2[%c0_3, %c0_4] : memref<1x512xf32, #tpu.memory_space<vmem>>, vector<1x512xf32>
    %4 = vector.broadcast %3 : vector<1x512xf32> to vector<16x512xf32>
    %5 = arith.addf %2, %4 : vector<16x512xf32>
    %c0_5 = arith.constant 0 : index
    %c0_6 = arith.constant 0 : index
    %6 = vector.load %arg9[%c0_5, %c0_6] : memref<16x512xf32, #tpu.memory_space<vmem>>, vector<16x512xf32>
    tpu.vector_store %arg9[%c0_5, %c0_6], %5 {strides = array<i32>} : memref<16x512xf32, #tpu.memory_space<vmem>>, vector<16x512xf32>,
    %c0_7 = arith.constant 0 : index
    %c0_8 = arith.constant 0 : index
    %7 = vector.load %arg5[%c0_7, %c0_8] : memref<1x512xf32, #tpu.memory_space<vmem>>, vector<1x512xf32>
    %8 = vector.shape_cast %7 : vector<1x512xf32> to vector<1x512xf32>
    %9 = vector.broadcast %8 : vector<1x512xf32> to vector<2x512xf32>
    %c0_9 = arith.constant 0 : index
    %c0_10 = arith.constant 0 : index
    %10 = vector.load %arg9[%c0_9, %c0_10] : memref<16x512xf32, #tpu.memory_space<vmem>>, vector<2x512xf32>
    %11 = vector.extract_strided_slice %10 {offsets = [0, 0], sizes = [2, 128], strides = [1, 1]} : vector<2x512xf32> to vector<2x128xf32>
    %12 = arith.negf %11 : vector<2x128xf32>
    %13 = math.exp %12 : vector<2x128xf32>
    %cst_11 = arith.constant 1.000000e+00 : f32
    %14 = vector.broadcast %cst_11 : f32 to vector<2x128xf32>
    %15 = arith.addf %14, %13 : vector<2x128xf32>
    %16 = arith.divf %14, %15 : vector<2x128xf32>
    %17 = vector.extract_strided_slice %10 {offsets = [0, 256], sizes = [2, 128], strides = [1, 1]} : vector<2x512xf32> to vector<2x128xf32>
    %18 = math.tanh %17 : vector<2x128xf32>
    %19 = vector.extract_strided_slice %10 {offsets = [0, 384], sizes = [2, 128], strides = [1, 1]} : vector<2x512xf32> to vector<2x128xf32>
    %20 = arith.negf %19 : vector<2x128xf32>
    %21 = math.exp %20 : vector<2x128xf32>
    %cst_12 = arith.constant 1.000000e+00 : f32
    %22 = vector.broadcast %cst_12 : f32 to vector<2x128xf32>
    %23 = arith.addf %22, %21 : vector<2x128xf32>
    %24 = arith.divf %22, %23 : vector<2x128xf32>
    %25 = arith.mulf %16, %18 : vector<2x128xf32>
    %26 = math.tanh %25 : vector<2x128xf32>
    %27 = arith.mulf %24, %26 : vector<2x128xf32>
    %cst_13 = arith.constant 0.000000e+00 : f32
    %28 = vector.broadcast %cst_13 : f32 to vector<2x128xf32>
    %cst_14 = arith.constant 0.000000e+00 : f32
    %29 = vector.broadcast %cst_14 : f32 to vector<2x128xf32>
    %30 = arith.truncf %27 : vector<2x128xf32> to vector<2x128xbf16>
    %c0_15 = arith.constant 0 : index
    %c0_16 = arith.constant 0 : index
    %31 = vector.load %arg3[%c0_15, %c0_16] : memref<128x1024xbf16, #tpu.memory_space<vmem>>, vector<128x1024xbf16>
    %cst_17 = arith.constant dense<0.000000e+00> : vector<2x1024xf32>
    %32 = tpu.matmul %30, %31, %cst_17 {dimension_numbers = #tpu.dot_dimension_numbers<[1], [0], [0], [1], [0, 0, 1, 1], [], []>} : vector<2x128xbf16>, vector<128x1024xbf16>, vector<2x1024xf32> -> vector<2x1024xf32>
    %33 = arith.truncf %28 : vector<2x128xf32> to vector<2x128xbf16>
    %c0_18 = arith.constant 0 : index
    %c0_19 = arith.constant 0 : index
    %34 = vector.load %arg4[%c0_18, %c0_19] : memref<128x512xbf16, #tpu.memory_space<vmem>>, vector<128x512xbf16>
    %cst_20 = arith.constant dense<0.000000e+00> : vector<2x512xf32>
    %35 = tpu.matmul %33, %34, %cst_20 {dimension_numbers = #tpu.dot_dimension_numbers<[1], [0], [0], [1], [0, 0, 1, 1], [], []>} : vector<2x128xbf16>, vector<128x512xbf16>, vector<2x512xf32> -> vector<2x512xf32>
    %36 = vector.extract_strided_slice %32 {offsets = [0, 512], sizes = [2, 512], strides = [1, 1]} : vector<2x1024xf32> to vector<2x512xf32>
    %37 = arith.addf %36, %35 : vector<2x512xf32>
    %38 = arith.addf %37, %9 : vector<2x512xf32>
    %c2 = arith.constant 2 : index
    %c0_21 = arith.constant 0 : index
    %39 = vector.load %arg9[%c2, %c0_21] : memref<16x512xf32, #tpu.memory_space<vmem>>, vector<2x512xf32>
    %40 = vector.extract_strided_slice %32 {offsets = [0, 0], sizes = [2, 512], strides = [1, 1]} : vector<2x1024xf32> to vector<2x512xf32>
    %41 = arith.addf %39, %40 : vector<2x512xf32>
    %42 = tpu.concatenate %38, %41 in 0 : vector<2x512xf32>, vector<2x512xf32> -> vector<4x512xf32>
    %43 = tpu.concatenate %29, %25 in 0 : vector<2x128xf32>, vector<2x128xf32> -> vector<4x128xf32>
    %44 = vector.extract_strided_slice %42 {offsets = [0, 0], sizes = [4, 128], strides = [1, 1]} : vector<4x512xf32> to vector<4x128xf32>
    %45 = arith.negf %44 : vector<4x128xf32>
    %46 = math.exp %45 : vector<4x128xf32>
    %cst_22 = arith.constant 1.000000e+00 : f32
    %47 = vector.broadcast %cst_22 : f32 to vector<4x128xf32>
    %48 = arith.addf %47, %46 : vector<4x128xf32>
    %49 = arith.divf %47, %48 : vector<4x128xf32>
    %50 = vector.extract_strided_slice %42 {offsets = [0, 128], sizes = [4, 128], strides = [1, 1]} : vector<4x512xf32> to vector<4x128xf32>
    %51 = arith.negf %50 : vector<4x128xf32>
    %52 = math.exp %51 : vector<4x128xf32>
    %cst_23 = arith.constant 1.000000e+00 : f32
    %53 = vector.broadcast %cst_23 : f32 to vector<4x128xf32>
    %54 = arith.addf %53, %52 : vector<4x128xf32>
    %55 = arith.divf %53, %54 : vector<4x128xf32>
    %56 = vector.extract_strided_slice %42 {offsets = [0, 256], sizes = [4, 128], strides = [1, 1]} : vector<4x512xf32> to vector<4x128xf32>
    %57 = math.tanh %56 : vector<4x128xf32>
    %58 = vector.extract_strided_slice %42 {offsets = [0, 384], sizes = [4, 128], strides = [1, 1]} : vector<4x512xf32> to vector<4x128xf32>
    %59 = arith.negf %58 : vector<4x128xf32>
    %60 = math.exp %59 : vector<4x128xf32>
    %cst_24 = arith.constant 1.000000e+00 : f32
    %61 = vector.broadcast %cst_24 : f32 to vector<4x128xf32>
    %62 = arith.addf %61, %60 : vector<4x128xf32>
    %63 = arith.divf %61, %62 : vector<4x128xf32>
    %64 = arith.mulf %55, %43 : vector<4x128xf32>
    %65 = arith.mulf %49, %57 : vector<4x128xf32>
    %66 = arith.addf %64, %65 : vector<4x128xf32>
    %67 = math.tanh %66 : vector<4x128xf32>
    %68 = arith.mulf %63, %67 : vector<4x128xf32>
    %69 = vector.extract_strided_slice %68 {offsets = [0, 0], sizes = [2, 128], strides = [1, 1]} : vector<4x128xf32> to vector<2x128xf32>
    %70 = vector.extract_strided_slice %68 {offsets = [2, 0], sizes = [2, 128], strides = [1, 1]} : vector<4x128xf32> to vector<2x128xf32>
    %71 = vector.extract_strided_slice %66 {offsets = [0, 0], sizes = [2, 128], strides = [1, 1]} : vector<4x128xf32> to vector<2x128xf32>
    %72 = vector.extract_strided_slice %66 {offsets = [2, 0], sizes = [2, 128], strides = [1, 1]} : vector<4x128xf32> to vector<2x128xf32>
    %73 = arith.truncf %70 : vector<2x128xf32> to vector<2x128xbf16>
    %c0_25 = arith.constant 0 : index
    %c0_26 = arith.constant 0 : index
    %74 = vector.load %arg3[%c0_25, %c0_26] : memref<128x1024xbf16, #tpu.memory_space<vmem>>, vector<128x1024xbf16>
    %cst_27 = arith.constant dense<0.000000e+00> : vector<2x1024xf32>
    %75 = tpu.matmul %73, %74, %cst_27 {dimension_numbers = #tpu.dot_dimension_numbers<[1], [0], [0], [1], [0, 0, 1, 1], [], []>} : vector<2x128xbf16>, vector<128x1024xbf16>, vector<2x1024xf32> -> vector<2x1024xf32>
    %76 = arith.truncf %69 : vector<2x128xf32> to vector<2x128xbf16>
    %c0_28 = arith.constant 0 : index
    %c0_29 = arith.constant 0 : index
    %77 = vector.load %arg4[%c0_28, %c0_29] : memref<128x512xbf16, #tpu.memory_space<vmem>>, vector<128x512xbf16>
    %cst_30 = arith.constant dense<0.000000e+00> : vector<2x512xf32>
    %78 = tpu.matmul %76, %77, %cst_30 {dimension_numbers = #tpu.dot_dimension_numbers<[1], [0], [0], [1], [0, 0, 1, 1], [], []>} : vector<2x128xbf16>, vector<128x512xbf16>, vector<2x512xf32> -> vector<2x512xf32>
    %79 = vector.extract_strided_slice %75 {offsets = [0, 512], sizes = [2, 512], strides = [1, 1]} : vector<2x1024xf32> to vector<2x512xf32>
    %80 = arith.addf %79, %78 : vector<2x512xf32>
    %81 = arith.addf %80, %9 : vector<2x512xf32>
    %c4 = arith.constant 4 : index
    %c0_31 = arith.constant 0 : index
    %82 = vector.load %arg9[%c4, %c0_31] : memref<16x512xf32, #tpu.memory_space<vmem>>, vector<2x512xf32>
    %83 = vector.extract_strided_slice %75 {offsets = [0, 0], sizes = [2, 512], strides = [1, 1]} : vector<2x1024xf32> to vector<2x512xf32>
    %84 = arith.addf %82, %83 : vector<2x512xf32>
    %85 = tpu.concatenate %81, %84 in 0 : vector<2x512xf32>, vector<2x512xf32> -> vector<4x512xf32>
    %86 = tpu.concatenate %71, %72 in 0 : vector<2x128xf32>, vector<2x128xf32> -> vector<4x128xf32>
    %87 = vector.extract_strided_slice %85 {offsets = [0, 0], sizes = [4, 128], strides = [1, 1]} : vector<4x512xf32> to vector<4x128xf32>
    %88 = arith.negf %87 : vector<4x128xf32>
    %89 = math.exp %88 : vector<4x128xf32>
    %cst_32 = arith.constant 1.000000e+00 : f32
    %90 = vector.broadcast %cst_32 : f32 to vector<4x128xf32>
    %91 = arith.addf %90, %89 : vector<4x128xf32>
    %92 = arith.divf %90, %91 : vector<4x128xf32>
    %93 = vector.extract_strided_slice %85 {offsets = [0, 128], sizes = [4, 128], strides = [1, 1]} : vector<4x512xf32> to vector<4x128xf32>
    %94 = arith.negf %93 : vector<4x128xf32>
    %95 = math.exp %94 : vector<4x128xf32>
    %cst_33 = arith.constant 1.000000e+00 : f32
    %96 = vector.broadcast %cst_33 : f32 to vector<4x128xf32>
    %97 = arith.addf %96, %95 : vector<4x128xf32>
    %98 = arith.divf %96, %97 : vector<4x128xf32>
    %99 = vector.extract_strided_slice %85 {offsets = [0, 256], sizes = [4, 128], strides = [1, 1]} : vector<4x512xf32> to vector<4x128xf32>
    %100 = math.tanh %99 : vector<4x128xf32>
    %101 = vector.extract_strided_slice %85 {offsets = [0, 384], sizes = [4, 128], strides = [1, 1]} : vector<4x512xf32> to vector<4x128xf32>
    %102 = arith.negf %101 : vector<4x128xf32>
    %103 = math.exp %102 : vector<4x128xf32>
    %cst_34 = arith.constant 1.000000e+00 : f32
    %104 = vector.broadcast %cst_34 : f32 to vector<4x128xf32>
    %105 = arith.addf %104, %103 : vector<4x128xf32>
    %106 = arith.divf %104, %105 : vector<4x128xf32>
    %107 = arith.mulf %98, %86 : vector<4x128xf32>
    %108 = arith.mulf %92, %100 : vector<4x128xf32>
    %109 = arith.addf %107, %108 : vector<4x128xf32>
    %110 = math.tanh %109 : vector<4x128xf32>
    %111 = arith.mulf %106, %110 : vector<4x128xf32>
    %112 = vector.extract_strided_slice %111 {offsets = [0, 0], sizes = [2, 128], strides = [1, 1]} : vector<4x128xf32> to vector<2x128xf32>
    %113 = vector.extract_strided_slice %111 {offsets = [2, 0], sizes = [2, 128], strides = [1, 1]} : vector<4x128xf32> to vector<2x128xf32>
    %114 = vector.extract_strided_slice %109 {offsets = [0, 0], sizes = [2, 128], strides = [1, 1]} : vector<4x128xf32> to vector<2x128xf32>
    %115 = vector.extract_strided_slice %109 {offsets = [2, 0], sizes = [2, 128], strides = [1, 1]} : vector<4x128xf32> to vector<2x128xf32>
    %116 = arith.truncf %113 : vector<2x128xf32> to vector<2x128xbf16>
    %c0_35 = arith.constant 0 : index
    %c0_36 = arith.constant 0 : index
    %117 = vector.load %arg3[%c0_35, %c0_36] : memref<128x1024xbf16, #tpu.memory_space<vmem>>, vector<128x1024xbf16>
    %cst_37 = arith.constant dense<0.000000e+00> : vector<2x1024xf32>
    %118 = tpu.matmul %116, %117, %cst_37 {dimension_numbers = #tpu.dot_dimension_numbers<[1], [0], [0], [1], [0, 0, 1, 1], [], []>} : vector<2x128xbf16>, vector<128x1024xbf16>, vector<2x1024xf32> -> vector<2x1024xf32>
    %119 = arith.truncf %112 : vector<2x128xf32> to vector<2x128xbf16>
    %c0_38 = arith.constant 0 : index
    %c0_39 = arith.constant 0 : index
    %120 = vector.load %arg4[%c0_38, %c0_39] : memref<128x512xbf16, #tpu.memory_space<vmem>>, vector<128x512xbf16>
    %cst_40 = arith.constant dense<0.000000e+00> : vector<2x512xf32>
    %121 = tpu.matmul %119, %120, %cst_40 {dimension_numbers = #tpu.dot_dimension_numbers<[1], [0], [0], [1], [0, 0, 1, 1], [], []>} : vector<2x128xbf16>, vector<128x512xbf16>, vector<2x512xf32> -> vector<2x512xf32>
    %122 = vector.extract_strided_slice %118 {offsets = [0, 512], sizes = [2, 512], strides = [1, 1]} : vector<2x1024xf32> to vector<2x512xf32>
    %123 = arith.addf %122, %121 : vector<2x512xf32>
    %124 = arith.addf %123, %9 : vector<2x512xf32>
    %c6 = arith.constant 6 : index
    %c0_41 = arith.constant 0 : index
    %125 = vector.load %arg9[%c6, %c0_41] : memref<16x512xf32, #tpu.memory_space<vmem>>, vector<2x512xf32>
    %126 = vector.extract_strided_slice %118 {offsets = [0, 0], sizes = [2, 512], strides = [1, 1]} : vector<2x1024xf32> to vector<2x512xf32>
    %127 = arith.addf %125, %126 : vector<2x512xf32>
    %128 = tpu.concatenate %124, %127 in 0 : vector<2x512xf32>, vector<2x512xf32> -> vector<4x512xf32>
    %129 = tpu.concatenate %114, %115 in 0 : vector<2x128xf32>, vector<2x128xf32> -> vector<4x128xf32>
    %130 = vector.extract_strided_slice %128 {offsets = [0, 0], sizes = [4, 128], strides = [1, 1]} : vector<4x512xf32> to vector<4x128xf32>
    %131 = arith.negf %130 : vector<4x128xf32>
    %132 = math.exp %131 : vector<4x128xf32>
    %cst_42 = arith.constant 1.000000e+00 : f32
    %133 = vector.broadcast %cst_42 : f32 to vector<4x128xf32>
    %134 = arith.addf %133, %132 : vector<4x128xf32>
    %135 = arith.divf %133, %134 : vector<4x128xf32>
    %136 = vector.extract_strided_slice %128 {offsets = [0, 128], sizes = [4, 128], strides = [1, 1]} : vector<4x512xf32> to vector<4x128xf32>
    %137 = arith.negf %136 : vector<4x128xf32>
    %138 = math.exp %137 : vector<4x128xf32>
    %cst_43 = arith.constant 1.000000e+00 : f32
    %139 = vector.broadcast %cst_43 : f32 to vector<4x128xf32>
    %140 = arith.addf %139, %138 : vector<4x128xf32>
    %141 = arith.divf %139, %140 : vector<4x128xf32>
    %142 = vector.extract_strided_slice %128 {offsets = [0, 256], sizes = [4, 128], strides = [1, 1]} : vector<4x512xf32> to vector<4x128xf32>
    %143 = math.tanh %142 : vector<4x128xf32>
    %144 = vector.extract_strided_slice %128 {offsets = [0, 384], sizes = [4, 128], strides = [1, 1]} : vector<4x512xf32> to vector<4x128xf32>
    %145 = arith.negf %144 : vector<4x128xf32>
    %146 = math.exp %145 : vector<4x128xf32>
    %cst_44 = arith.constant 1.000000e+00 : f32
    %147 = vector.broadcast %cst_44 : f32 to vector<4x128xf32>
    %148 = arith.addf %147, %146 : vector<4x128xf32>
    %149 = arith.divf %147, %148 : vector<4x128xf32>
    %150 = arith.mulf %141, %129 : vector<4x128xf32>
    %151 = arith.mulf %135, %143 : vector<4x128xf32>
    %152 = arith.addf %150, %151 : vector<4x128xf32>
    %153 = math.tanh %152 : vector<4x128xf32>
    %154 = arith.mulf %149, %153 : vector<4x128xf32>
    %155 = vector.extract_strided_slice %154 {offsets = [0, 0], sizes = [2, 128], strides = [1, 1]} : vector<4x128xf32> to vector<2x128xf32>
    %156 = vector.extract_strided_slice %154 {offsets = [2, 0], sizes = [2, 128], strides = [1, 1]} : vector<4x128xf32> to vector<2x128xf32>
    %157 = vector.extract_strided_slice %152 {offsets = [0, 0], sizes = [2, 128], strides = [1, 1]} : vector<4x128xf32> to vector<2x128xf32>
    %158 = vector.extract_strided_slice %152 {offsets = [2, 0], sizes = [2, 128], strides = [1, 1]} : vector<4x128xf32> to vector<2x128xf32>
    %159 = arith.truncf %156 : vector<2x128xf32> to vector<2x128xbf16>
    %c0_45 = arith.constant 0 : index
    %c0_46 = arith.constant 0 : index
    %160 = vector.load %arg3[%c0_45, %c0_46] : memref<128x1024xbf16, #tpu.memory_space<vmem>>, vector<128x1024xbf16>
    %cst_47 = arith.constant dense<0.000000e+00> : vector<2x1024xf32>
    %161 = tpu.matmul %159, %160, %cst_47 {dimension_numbers = #tpu.dot_dimension_numbers<[1], [0], [0], [1], [0, 0, 1, 1], [], []>} : vector<2x128xbf16>, vector<128x1024xbf16>, vector<2x1024xf32> -> vector<2x1024xf32>
    %162 = arith.truncf %155 : vector<2x128xf32> to vector<2x128xbf16>
    %c0_48 = arith.constant 0 : index
    %c0_49 = arith.constant 0 : index
    %163 = vector.load %arg4[%c0_48, %c0_49] : memref<128x512xbf16, #tpu.memory_space<vmem>>, vector<128x512xbf16>
    %cst_50 = arith.constant dense<0.000000e+00> : vector<2x512xf32>
    %164 = tpu.matmul %162, %163, %cst_50 {dimension_numbers = #tpu.dot_dimension_numbers<[1], [0], [0], [1], [0, 0, 1, 1], [], []>} : vector<2x128xbf16>, vector<128x512xbf16>, vector<2x512xf32> -> vector<2x512xf32>
    %165 = vector.extract_strided_slice %161 {offsets = [0, 512], sizes = [2, 512], strides = [1, 1]} : vector<2x1024xf32> to vector<2x512xf32>
    %166 = arith.addf %165, %164 : vector<2x512xf32>
    %167 = arith.addf %166, %9 : vector<2x512xf32>
    %c8 = arith.constant 8 : index
    %c0_51 = arith.constant 0 : index
    %168 = vector.load %arg9[%c8, %c0_51] : memref<16x512xf32, #tpu.memory_space<vmem>>, vector<2x512xf32>
    %169 = vector.extract_strided_slice %161 {offsets = [0, 0], sizes = [2, 512], strides = [1, 1]} : vector<2x1024xf32> to vector<2x512xf32>
    %170 = arith.addf %168, %169 : vector<2x512xf32>
    %171 = tpu.concatenate %167, %170 in 0 : vector<2x512xf32>, vector<2x512xf32> -> vector<4x512xf32>
    %172 = tpu.concatenate %157, %158 in 0 : vector<2x128xf32>, vector<2x128xf32> -> vector<4x128xf32>
    %173 = vector.extract_strided_slice %171 {offsets = [0, 0], sizes = [4, 128], strides = [1, 1]} : vector<4x512xf32> to vector<4x128xf32>
    %174 = arith.negf %173 : vector<4x128xf32>
    %175 = math.exp %174 : vector<4x128xf32>
    %cst_52 = arith.constant 1.000000e+00 : f32
    %176 = vector.broadcast %cst_52 : f32 to vector<4x128xf32>
    %177 = arith.addf %176, %175 : vector<4x128xf32>
    %178 = arith.divf %176, %177 : vector<4x128xf32>
    %179 = vector.extract_strided_slice %171 {offsets = [0, 128], sizes = [4, 128], strides = [1, 1]} : vector<4x512xf32> to vector<4x128xf32>
    %180 = arith.negf %179 : vector<4x128xf32>
    %181 = math.exp %180 : vector<4x128xf32>
    %cst_53 = arith.constant 1.000000e+00 : f32
    %182 = vector.broadcast %cst_53 : f32 to vector<4x128xf32>
    %183 = arith.addf %182, %181 : vector<4x128xf32>
    %184 = arith.divf %182, %183 : vector<4x128xf32>
    %185 = vector.extract_strided_slice %171 {offsets = [0, 256], sizes = [4, 128], strides = [1, 1]} : vector<4x512xf32> to vector<4x128xf32>
    %186 = math.tanh %185 : vector<4x128xf32>
    %187 = vector.extract_strided_slice %171 {offsets = [0, 384], sizes = [4, 128], strides = [1, 1]} : vector<4x512xf32> to vector<4x128xf32>
    %188 = arith.negf %187 : vector<4x128xf32>
    %189 = math.exp %188 : vector<4x128xf32>
    %cst_54 = arith.constant 1.000000e+00 : f32
    %190 = vector.broadcast %cst_54 : f32 to vector<4x128xf32>
    %191 = arith.addf %190, %189 : vector<4x128xf32>
    %192 = arith.divf %190, %191 : vector<4x128xf32>
    %193 = arith.mulf %184, %172 : vector<4x128xf32>
    %194 = arith.mulf %178, %186 : vector<4x128xf32>
    %195 = arith.addf %193, %194 : vector<4x128xf32>
    %196 = math.tanh %195 : vector<4x128xf32>
    %197 = arith.mulf %192, %196 : vector<4x128xf32>
    %198 = vector.extract_strided_slice %197 {offsets = [0, 0], sizes = [2, 128], strides = [1, 1]} : vector<4x128xf32> to vector<2x128xf32>
    %199 = vector.extract_strided_slice %197 {offsets = [2, 0], sizes = [2, 128], strides = [1, 1]} : vector<4x128xf32> to vector<2x128xf32>
    %200 = vector.extract_strided_slice %195 {offsets = [0, 0], sizes = [2, 128], strides = [1, 1]} : vector<4x128xf32> to vector<2x128xf32>
    %201 = vector.extract_strided_slice %195 {offsets = [2, 0], sizes = [2, 128], strides = [1, 1]} : vector<4x128xf32> to vector<2x128xf32>
    %202 = arith.truncf %199 : vector<2x128xf32> to vector<2x128xbf16>
    %c0_55 = arith.constant 0 : index
    %c0_56 = arith.constant 0 : index
    %203 = vector.load %arg3[%c0_55, %c0_56] : memref<128x1024xbf16, #tpu.memory_space<vmem>>, vector<128x1024xbf16>
    %cst_57 = arith.constant dense<0.000000e+00> : vector<2x1024xf32>
    %204 = tpu.matmul %202, %203, %cst_57 {dimension_numbers = #tpu.dot_dimension_numbers<[1], [0], [0], [1], [0, 0, 1, 1], [], []>} : vector<2x128xbf16>, vector<128x1024xbf16>, vector<2x1024xf32> -> vector<2x1024xf32>
    %205 = arith.truncf %198 : vector<2x128xf32> to vector<2x128xbf16>
    %c0_58 = arith.constant 0 : index
    %c0_59 = arith.constant 0 : index
    %206 = vector.load %arg4[%c0_58, %c0_59] : memref<128x512xbf16, #tpu.memory_space<vmem>>, vector<128x512xbf16>
    %cst_60 = arith.constant dense<0.000000e+00> : vector<2x512xf32>
    %207 = tpu.matmul %205, %206, %cst_60 {dimension_numbers = #tpu.dot_dimension_numbers<[1], [0], [0], [1], [0, 0, 1, 1], [], []>} : vector<2x128xbf16>, vector<128x512xbf16>, vector<2x512xf32> -> vector<2x512xf32>
    %208 = vector.extract_strided_slice %204 {offsets = [0, 512], sizes = [2, 512], strides = [1, 1]} : vector<2x1024xf32> to vector<2x512xf32>
    %209 = arith.addf %208, %207 : vector<2x512xf32>
    %210 = arith.addf %209, %9 : vector<2x512xf32>
    %c10 = arith.constant 10 : index
    %c0_61 = arith.constant 0 : index
    %211 = vector.load %arg9[%c10, %c0_61] : memref<16x512xf32, #tpu.memory_space<vmem>>, vector<2x512xf32>
    %212 = vector.extract_strided_slice %204 {offsets = [0, 0], sizes = [2, 512], strides = [1, 1]} : vector<2x1024xf32> to vector<2x512xf32>
    %213 = arith.addf %211, %212 : vector<2x512xf32>
    %214 = tpu.concatenate %210, %213 in 0 : vector<2x512xf32>, vector<2x512xf32> -> vector<4x512xf32>
    %215 = tpu.concatenate %200, %201 in 0 : vector<2x128xf32>, vector<2x128xf32> -> vector<4x128xf32>
    %216 = vector.extract_strided_slice %214 {offsets = [0, 0], sizes = [4, 128], strides = [1, 1]} : vector<4x512xf32> to vector<4x128xf32>
    %217 = arith.negf %216 : vector<4x128xf32>
    %218 = math.exp %217 : vector<4x128xf32>
    %cst_62 = arith.constant 1.000000e+00 : f32
    %219 = vector.broadcast %cst_62 : f32 to vector<4x128xf32>
    %220 = arith.addf %219, %218 : vector<4x128xf32>
    %221 = arith.divf %219, %220 : vector<4x128xf32>
    %222 = vector.extract_strided_slice %214 {offsets = [0, 128], sizes = [4, 128], strides = [1, 1]} : vector<4x512xf32> to vector<4x128xf32>
    %223 = arith.negf %222 : vector<4x128xf32>
    %224 = math.exp %223 : vector<4x128xf32>
    %cst_63 = arith.constant 1.000000e+00 : f32
    %225 = vector.broadcast %cst_63 : f32 to vector<4x128xf32>
    %226 = arith.addf %225, %224 : vector<4x128xf32>
    %227 = arith.divf %225, %226 : vector<4x128xf32>
    %228 = vector.extract_strided_slice %214 {offsets = [0, 256], sizes = [4, 128], strides = [1, 1]} : vector<4x512xf32> to vector<4x128xf32>
    %229 = math.tanh %228 : vector<4x128xf32>
    %230 = vector.extract_strided_slice %214 {offsets = [0, 384], sizes = [4, 128], strides = [1, 1]} : vector<4x512xf32> to vector<4x128xf32>
    %231 = arith.negf %230 : vector<4x128xf32>
    %232 = math.exp %231 : vector<4x128xf32>
    %cst_64 = arith.constant 1.000000e+00 : f32
    %233 = vector.broadcast %cst_64 : f32 to vector<4x128xf32>
    %234 = arith.addf %233, %232 : vector<4x128xf32>
    %235 = arith.divf %233, %234 : vector<4x128xf32>
    %236 = arith.mulf %227, %215 : vector<4x128xf32>
    %237 = arith.mulf %221, %229 : vector<4x128xf32>
    %238 = arith.addf %236, %237 : vector<4x128xf32>
    %239 = math.tanh %238 : vector<4x128xf32>
    %240 = arith.mulf %235, %239 : vector<4x128xf32>
    %241 = vector.extract_strided_slice %240 {offsets = [0, 0], sizes = [2, 128], strides = [1, 1]} : vector<4x128xf32> to vector<2x128xf32>
    %242 = vector.extract_strided_slice %240 {offsets = [2, 0], sizes = [2, 128], strides = [1, 1]} : vector<4x128xf32> to vector<2x128xf32>
    %243 = vector.extract_strided_slice %238 {offsets = [0, 0], sizes = [2, 128], strides = [1, 1]} : vector<4x128xf32> to vector<2x128xf32>
    %244 = vector.extract_strided_slice %238 {offsets = [2, 0], sizes = [2, 128], strides = [1, 1]} : vector<4x128xf32> to vector<2x128xf32>
    %245 = arith.truncf %242 : vector<2x128xf32> to vector<2x128xbf16>
    %c0_65 = arith.constant 0 : index
    %c0_66 = arith.constant 0 : index
    %246 = vector.load %arg3[%c0_65, %c0_66] : memref<128x1024xbf16, #tpu.memory_space<vmem>>, vector<128x1024xbf16>
    %cst_67 = arith.constant dense<0.000000e+00> : vector<2x1024xf32>
    %247 = tpu.matmul %245, %246, %cst_67 {dimension_numbers = #tpu.dot_dimension_numbers<[1], [0], [0], [1], [0, 0, 1, 1], [], []>} : vector<2x128xbf16>, vector<128x1024xbf16>, vector<2x1024xf32> -> vector<2x1024xf32>
    %248 = arith.truncf %241 : vector<2x128xf32> to vector<2x128xbf16>
    %c0_68 = arith.constant 0 : index
    %c0_69 = arith.constant 0 : index
    %249 = vector.load %arg4[%c0_68, %c0_69] : memref<128x512xbf16, #tpu.memory_space<vmem>>, vector<128x512xbf16>
    %cst_70 = arith.constant dense<0.000000e+00> : vector<2x512xf32>
    %250 = tpu.matmul %248, %249, %cst_70 {dimension_numbers = #tpu.dot_dimension_numbers<[1], [0], [0], [1], [0, 0, 1, 1], [], []>} : vector<2x128xbf16>, vector<128x512xbf16>, vector<2x512xf32> -> vector<2x512xf32>
    %251 = vector.extract_strided_slice %247 {offsets = [0, 512], sizes = [2, 512], strides = [1, 1]} : vector<2x1024xf32> to vector<2x512xf32>
    %252 = arith.addf %251, %250 : vector<2x512xf32>
    %253 = arith.addf %252, %9 : vector<2x512xf32>
    %c12 = arith.constant 12 : index
    %c0_71 = arith.constant 0 : index
    %254 = vector.load %arg9[%c12, %c0_71] : memref<16x512xf32, #tpu.memory_space<vmem>>, vector<2x512xf32>
    %255 = vector.extract_strided_slice %247 {offsets = [0, 0], sizes = [2, 512], strides = [1, 1]} : vector<2x1024xf32> to vector<2x512xf32>
    %256 = arith.addf %254, %255 : vector<2x512xf32>
    %257 = tpu.concatenate %253, %256 in 0 : vector<2x512xf32>, vector<2x512xf32> -> vector<4x512xf32>
    %258 = tpu.concatenate %243, %244 in 0 : vector<2x128xf32>, vector<2x128xf32> -> vector<4x128xf32>
    %259 = vector.extract_strided_slice %257 {offsets = [0, 0], sizes = [4, 128], strides = [1, 1]} : vector<4x512xf32> to vector<4x128xf32>
    %260 = arith.negf %259 : vector<4x128xf32>
    %261 = math.exp %260 : vector<4x128xf32>
    %cst_72 = arith.constant 1.000000e+00 : f32
    %262 = vector.broadcast %cst_72 : f32 to vector<4x128xf32>
    %263 = arith.addf %262, %261 : vector<4x128xf32>
    %264 = arith.divf %262, %263 : vector<4x128xf32>
    %265 = vector.extract_strided_slice %257 {offsets = [0, 128], sizes = [4, 128], strides = [1, 1]} : vector<4x512xf32> to vector<4x128xf32>
    %266 = arith.negf %265 : vector<4x128xf32>
    %267 = math.exp %266 : vector<4x128xf32>
    %cst_73 = arith.constant 1.000000e+00 : f32
    %268 = vector.broadcast %cst_73 : f32 to vector<4x128xf32>
    %269 = arith.addf %268, %267 : vector<4x128xf32>
    %270 = arith.divf %268, %269 : vector<4x128xf32>
    %271 = vector.extract_strided_slice %257 {offsets = [0, 256], sizes = [4, 128], strides = [1, 1]} : vector<4x512xf32> to vector<4x128xf32>
    %272 = math.tanh %271 : vector<4x128xf32>
    %273 = vector.extract_strided_slice %257 {offsets = [0, 384], sizes = [4, 128], strides = [1, 1]} : vector<4x512xf32> to vector<4x128xf32>
    %274 = arith.negf %273 : vector<4x128xf32>
    %275 = math.exp %274 : vector<4x128xf32>
    %cst_74 = arith.constant 1.000000e+00 : f32
    %276 = vector.broadcast %cst_74 : f32 to vector<4x128xf32>
    %277 = arith.addf %276, %275 : vector<4x128xf32>
    %278 = arith.divf %276, %277 : vector<4x128xf32>
    %279 = arith.mulf %270, %258 : vector<4x128xf32>
    %280 = arith.mulf %264, %272 : vector<4x128xf32>
    %281 = arith.addf %279, %280 : vector<4x128xf32>
    %282 = math.tanh %281 : vector<4x128xf32>
    %283 = arith.mulf %278, %282 : vector<4x128xf32>
    %284 = vector.extract_strided_slice %283 {offsets = [0, 0], sizes = [2, 128], strides = [1, 1]} : vector<4x128xf32> to vector<2x128xf32>
    %285 = vector.extract_strided_slice %283 {offsets = [2, 0], sizes = [2, 128], strides = [1, 1]} : vector<4x128xf32> to vector<2x128xf32>
    %286 = vector.extract_strided_slice %281 {offsets = [0, 0], sizes = [2, 128], strides = [1, 1]} : vector<4x128xf32> to vector<2x128xf32>
    %287 = vector.extract_strided_slice %281 {offsets = [2, 0], sizes = [2, 128], strides = [1, 1]} : vector<4x128xf32> to vector<2x128xf32>
    %288 = arith.truncf %285 : vector<2x128xf32> to vector<2x128xbf16>
    %c0_75 = arith.constant 0 : index
    %c0_76 = arith.constant 0 : index
    %289 = vector.load %arg3[%c0_75, %c0_76] : memref<128x1024xbf16, #tpu.memory_space<vmem>>, vector<128x1024xbf16>
    %cst_77 = arith.constant dense<0.000000e+00> : vector<2x1024xf32>
    %290 = tpu.matmul %288, %289, %cst_77 {dimension_numbers = #tpu.dot_dimension_numbers<[1], [0], [0], [1], [0, 0, 1, 1], [], []>} : vector<2x128xbf16>, vector<128x1024xbf16>, vector<2x1024xf32> -> vector<2x1024xf32>
    %291 = arith.truncf %284 : vector<2x128xf32> to vector<2x128xbf16>
    %c0_78 = arith.constant 0 : index
    %c0_79 = arith.constant 0 : index
    %292 = vector.load %arg4[%c0_78, %c0_79] : memref<128x512xbf16, #tpu.memory_space<vmem>>, vector<128x512xbf16>
    %cst_80 = arith.constant dense<0.000000e+00> : vector<2x512xf32>
    %293 = tpu.matmul %291, %292, %cst_80 {dimension_numbers = #tpu.dot_dimension_numbers<[1], [0], [0], [1], [0, 0, 1, 1], [], []>} : vector<2x128xbf16>, vector<128x512xbf16>, vector<2x512xf32> -> vector<2x512xf32>
    %294 = vector.extract_strided_slice %290 {offsets = [0, 512], sizes = [2, 512], strides = [1, 1]} : vector<2x1024xf32> to vector<2x512xf32>
    %295 = arith.addf %294, %293 : vector<2x512xf32>
    %296 = arith.addf %295, %9 : vector<2x512xf32>
    %c14 = arith.constant 14 : index
    %c0_81 = arith.constant 0 : index
    %297 = vector.load %arg9[%c14, %c0_81] : memref<16x512xf32, #tpu.memory_space<vmem>>, vector<2x512xf32>
    %298 = vector.extract_strided_slice %290 {offsets = [0, 0], sizes = [2, 512], strides = [1, 1]} : vector<2x1024xf32> to vector<2x512xf32>
    %299 = arith.addf %297, %298 : vector<2x512xf32>
    %300 = tpu.concatenate %296, %299 in 0 : vector<2x512xf32>, vector<2x512xf32> -> vector<4x512xf32>
    %301 = tpu.concatenate %286, %287 in 0 : vector<2x128xf32>, vector<2x128xf32> -> vector<4x128xf32>
    %302 = vector.extract_strided_slice %300 {offsets = [0, 0], sizes = [4, 128], strides = [1, 1]} : vector<4x512xf32> to vector<4x128xf32>
    %303 = arith.negf %302 : vector<4x128xf32>
    %304 = math.exp %303 : vector<4x128xf32>
    %cst_82 = arith.constant 1.000000e+00 : f32
    %305 = vector.broadcast %cst_82 : f32 to vector<4x128xf32>
    %306 = arith.addf %305, %304 : vector<4x128xf32>
    %307 = arith.divf %305, %306 : vector<4x128xf32>
    %308 = vector.extract_strided_slice %300 {offsets = [0, 128], sizes = [4, 128], strides = [1, 1]} : vector<4x512xf32> to vector<4x128xf32>
    %309 = arith.negf %308 : vector<4x128xf32>
    %310 = math.exp %309 : vector<4x128xf32>
    %cst_83 = arith.constant 1.000000e+00 : f32
    %311 = vector.broadcast %cst_83 : f32 to vector<4x128xf32>
    %312 = arith.addf %311, %310 : vector<4x128xf32>
    %313 = arith.divf %311, %312 : vector<4x128xf32>
    %314 = vector.extract_strided_slice %300 {offsets = [0, 256], sizes = [4, 128], strides = [1, 1]} : vector<4x512xf32> to vector<4x128xf32>
    %315 = math.tanh %314 : vector<4x128xf32>
    %316 = vector.extract_strided_slice %300 {offsets = [0, 384], sizes = [4, 128], strides = [1, 1]} : vector<4x512xf32> to vector<4x128xf32>
    %317 = arith.negf %316 : vector<4x128xf32>
    %318 = math.exp %317 : vector<4x128xf32>
    %cst_84 = arith.constant 1.000000e+00 : f32
    %319 = vector.broadcast %cst_84 : f32 to vector<4x128xf32>
    %320 = arith.addf %319, %318 : vector<4x128xf32>
    %321 = arith.divf %319, %320 : vector<4x128xf32>
    %322 = arith.mulf %313, %301 : vector<4x128xf32>
    %323 = arith.mulf %307, %315 : vector<4x128xf32>
    %324 = arith.addf %322, %323 : vector<4x128xf32>
    %325 = math.tanh %324 : vector<4x128xf32>
    %326 = arith.mulf %321, %325 : vector<4x128xf32>
    %327 = vector.extract_strided_slice %326 {offsets = [0, 0], sizes = [2, 128], strides = [1, 1]} : vector<4x128xf32> to vector<2x128xf32>
    %328 = vector.extract_strided_slice %326 {offsets = [2, 0], sizes = [2, 128], strides = [1, 1]} : vector<4x128xf32> to vector<2x128xf32>
    %329 = vector.extract_strided_slice %324 {offsets = [0, 0], sizes = [2, 128], strides = [1, 1]} : vector<4x128xf32> to vector<2x128xf32>
    %330 = arith.truncf %328 : vector<2x128xf32> to vector<2x128xbf16>
    %c0_85 = arith.constant 0 : index
    %c0_86 = arith.constant 0 : index
    %331 = vector.load %arg3[%c0_85, %c0_86] : memref<128x1024xbf16, #tpu.memory_space<vmem>>, vector<128x1024xbf16>
    %cst_87 = arith.constant dense<0.000000e+00> : vector<2x1024xf32>
    %332 = tpu.matmul %330, %331, %cst_87 {dimension_numbers = #tpu.dot_dimension_numbers<[1], [0], [0], [1], [0, 0, 1, 1], [], []>} : vector<2x128xbf16>, vector<128x1024xbf16>, vector<2x1024xf32> -> vector<2x1024xf32>
    %333 = arith.truncf %327 : vector<2x128xf32> to vector<2x128xbf16>
    %c0_88 = arith.constant 0 : index
    %c0_89 = arith.constant 0 : index
    %334 = vector.load %arg4[%c0_88, %c0_89] : memref<128x512xbf16, #tpu.memory_space<vmem>>, vector<128x512xbf16>
    %cst_90 = arith.constant dense<0.000000e+00> : vector<2x512xf32>
    %335 = tpu.matmul %333, %334, %cst_90 {dimension_numbers = #tpu.dot_dimension_numbers<[1], [0], [0], [1], [0, 0, 1, 1], [], []>} : vector<2x128xbf16>, vector<128x512xbf16>, vector<2x512xf32> -> vector<2x512xf32>
    %336 = vector.extract_strided_slice %332 {offsets = [0, 512], sizes = [2, 512], strides = [1, 1]} : vector<2x1024xf32> to vector<2x512xf32>
    %337 = arith.addf %336, %335 : vector<2x512xf32>
    %338 = arith.addf %337, %9 : vector<2x512xf32>
    %339 = vector.extract_strided_slice %338 {offsets = [0, 0], sizes = [2, 128], strides = [1, 1]} : vector<2x512xf32> to vector<2x128xf32>
    %340 = arith.negf %339 : vector<2x128xf32>
    %341 = math.exp %340 : vector<2x128xf32>
    %cst_91 = arith.constant 1.000000e+00 : f32
    %342 = vector.broadcast %cst_91 : f32 to vector<2x128xf32>
    %343 = arith.addf %342, %341 : vector<2x128xf32>
    %344 = arith.divf %342, %343 : vector<2x128xf32>
    %345 = vector.extract_strided_slice %338 {offsets = [0, 128], sizes = [2, 128], strides = [1, 1]} : vector<2x512xf32> to vector<2x128xf32>
    %346 = arith.negf %345 : vector<2x128xf32>
    %347 = math.exp %346 : vector<2x128xf32>
    %cst_92 = arith.constant 1.000000e+00 : f32
    %348 = vector.broadcast %cst_92 : f32 to vector<2x128xf32>
    %349 = arith.addf %348, %347 : vector<2x128xf32>
    %350 = arith.divf %348, %349 : vector<2x128xf32>
    %351 = vector.extract_strided_slice %338 {offsets = [0, 256], sizes = [2, 128], strides = [1, 1]} : vector<2x512xf32> to vector<2x128xf32>
    %352 = math.tanh %351 : vector<2x128xf32>
    %353 = vector.extract_strided_slice %338 {offsets = [0, 384], sizes = [2, 128], strides = [1, 1]} : vector<2x512xf32> to vector<2x128xf32>
    %354 = arith.negf %353 : vector<2x128xf32>
    %355 = math.exp %354 : vector<2x128xf32>
    %cst_93 = arith.constant 1.000000e+00 : f32
    %356 = vector.broadcast %cst_93 : f32 to vector<2x128xf32>
    %357 = arith.addf %356, %355 : vector<2x128xf32>
    %358 = arith.divf %356, %357 : vector<2x128xf32>
    %359 = arith.mulf %350, %329 : vector<2x128xf32>
    %360 = arith.mulf %344, %352 : vector<2x128xf32>
    %361 = arith.addf %359, %360 : vector<2x128xf32>
    %362 = math.tanh %361 : vector<2x128xf32>
    %363 = arith.mulf %358, %362 : vector<2x128xf32>
    %364 = arith.truncf %363 : vector<2x128xf32> to vector<2x128xbf16>
    %c0_94 = arith.constant 0 : index
    %c0_95 = arith.constant 0 : index
    %365 = vector.load %arg6[%c0_94, %c0_95] : memref<128x16xbf16, #tpu.memory_space<vmem>>, vector<128x16xbf16>
    %cst_96 = arith.constant dense<0.000000e+00> : vector<2x16xf32>
    %366 = tpu.matmul %364, %365, %cst_96 {dimension_numbers = #tpu.dot_dimension_numbers<[1], [0], [0], [1], [0, 0, 1, 1], [], []>} : vector<2x128xbf16>, vector<128x16xbf16>, vector<2x16xf32> -> vector<2x16xf32>
    %c0_97 = arith.constant 0 : index
    %c0_98 = arith.constant 0 : index
    %367 = vector.load %arg7[%c0_97, %c0_98] : memref<1x16xf32, #tpu.memory_space<vmem>>, vector<1x16xf32>
    %368 = vector.broadcast %367 : vector<1x16xf32> to vector<2x16xf32>
    %369 = arith.addf %366, %368 : vector<2x16xf32>
    %c0_99 = arith.constant 0 : index
    %c0_100 = arith.constant 0 : index
    %370 = vector.load %arg8[%c0_99, %c0_100] : memref<2x16xf32, #tpu.memory_space<vmem>>, vector<2x16xf32>
    tpu.vector_store %arg8[%c0_99, %c0_100], %369 {strides = array<i32>} : memref<2x16xf32, #tpu.memory_space<vmem>>, vector<2x16xf32>,
    return
  }
}

</mosaic_0001>

<llo_original>
// kernel: tpu_custom_call.1
$region0: #{tpu_custom_call.1}
  #allocation0 [shape = 'u32[]', space=smem, size = 0x4, offset = 0x4, fixed_abs, tag = 'smem constant byte address 0x4 - core index']
  #allocation1 [shape = 'u32[144,128]{1,0:T(1,128)}', space=vmem, size = 0x12000, scoped, tag = 'internal scratch']
  #allocation2 [shape = 'f32[16,512]{1,0:T(8,128)}', space=vmem, size = 0x8000, scoped, tag = 'scratch operand']
  %s0 = inlined_call_operand.vmem [shape: bf16[16,8], index: 0, kind: input, shape index: {}]
  %s1 = inlined_call_operand.vmem [shape: bf16[8,512], index: 1, kind: input, shape index: {}]
  %s2 = inlined_call_operand.vmem [shape: f32[1,512], index: 2, kind: input, shape index: {}]
  %s3 = inlined_call_operand.hbm [shape: bf16[128,1024], index: 3, kind: input, shape index: {}]
  %s4 = inlined_call_operand.hbm [shape: bf16[128,512], index: 4, kind: input, shape index: {}]
  %s5 = inlined_call_operand.vmem [shape: f32[1,512], index: 5, kind: input, shape index: {}]
  %s6 = inlined_call_operand.vmem [shape: bf16[128,16], index: 6, kind: input, shape index: {}]
  %s7 = inlined_call_operand.vmem [shape: f32[1,16], index: 7, kind: input, shape index: {}]
  %s8 = inlined_call_operand.hbm [shape: f32[2,16], index: 8, kind: output, shape index: {}]
  %s9 = sld [smem:[#allocation0]]
  $region50: #{tpu_custom_call.1} parent=0
    _
  %s11 = ssub.s32 1, %s9
  %s12 = scalar_select 0, %s11, %s9
  $region1: #{tpu_custom_call.1} parent=0
    #allocation3 [shape = 'u8[262144]{0}', space=vmem, size = 0x40000, scoped, tag = 'input window, operand 3, single buffered']
    #allocation4 [shape = 's32[1]{0}', space=sflag, size = 0x4, scoped, tag = 'scoped memory for tpu_custom_call.1']
    #allocation5 [shape = 's32[1]{0}', space=sflag, size = 0x4, scoped, tag = 'scoped memory for tpu_custom_call.1']
    #allocation6 [shape = 'u8[131072]{0}', space=vmem, size = 0x20000, scoped, tag = 'input window, operand 4, single buffered']
    #allocation7 [shape = 's32[1]{0}', space=sflag, size = 0x4, scoped, tag = 'scoped memory for tpu_custom_call.1']
    #allocation8 [shape = 'u8[1024]{0}', space=vmem, size = 0x400, scoped, tag = 'output window, operand 0, single buffered']
    %13 = vsyncpa [#allocation4], 0
    %14 = vsyncpa [#allocation7], 0
    %15 = vsyncpa [#allocation5], 0
    // Predicated region
    $region2: #{tpu_custom_call.1} parent=1 // pred_check
      _
    $region3: #{tpu_custom_call.1} parent=1 // pred_check_branch
      %17 = sbr.rel (0) target = $region5
    $region4: #{tpu_custom_call.1} parent=1 // pred_region
      _
    $region5: #{tpu_custom_call.1} parent=1 // pred_fallthru
      _
    // Predicated region
    $region6: #{tpu_custom_call.1} parent=1 // pred_check
      _
    $region7: #{tpu_custom_call.1} parent=1 // pred_check_branch
      %19 = sbr.rel (0) target = $region9
    $region8: #{tpu_custom_call.1} parent=1 // pred_region
      _
    $region9: #{tpu_custom_call.1} parent=1 // pred_fallthru
      _
    // Predicated region
    $region10: #{tpu_custom_call.1} parent=1 // pred_check
      _
    $region11: #{tpu_custom_call.1} parent=1 // pred_check_branch
      %21 = sbr.rel (0) target = $region13
    $region12: #{tpu_custom_call.1} parent=1 // pred_region
      _
    $region13: #{tpu_custom_call.1} parent=1 // pred_fallthru
      _
    // Predicated region
    $region14: #{tpu_custom_call.1} parent=1 // pred_check
      _
    $region15: #{tpu_custom_call.1} parent=1 // pred_check_branch
      %23 = sbr.rel (0) target = $region17
    $region16: #{tpu_custom_call.1} parent=1 // pred_region
      %s25 = ssub.s32 8192, 8192
      %26 = vsyncadd [#allocation4], %s25
      %s27 = sshll.u32 [#allocation3], 4
      %s28 = int_to_ptr.vmem [resolvable:$true] %s27
      %33 = dma.hbm_to_vmem [thread:$0]  %s3, 8192, %s28, [#allocation4], 512, 512, 32
    $region17: #{tpu_custom_call.1} parent=1 // pred_fallthru
      _
    // Predicated region
    $region18: #{tpu_custom_call.1} parent=1 // pred_check
      _
    $region19: #{tpu_custom_call.1} parent=1 // pred_check_branch
      %35 = sbr.rel (0) target = $region21
    $region20: #{tpu_custom_call.1} parent=1 // pred_region
      %s37 = ssub.s32 4096, 4096
      %38 = vsyncadd [#allocation7], %s37
      %s39 = sshll.u32 [#allocation6], 4
      %s40 = int_to_ptr.vmem [resolvable:$true] %s39
      %45 = dma.hbm_to_vmem [thread:$0]  %s4, 4096, %s40, [#allocation7], 256, 256, 16
    $region21: #{tpu_custom_call.1} parent=1 // pred_fallthru
      _
    // Predicated region
    $region22: #{tpu_custom_call.1} parent=1 // pred_check
      _
    $region23: #{tpu_custom_call.1} parent=1 // pred_check_branch
      %47 = sbr.rel (0) target = $region25
    $region24: #{tpu_custom_call.1} parent=1 // pred_region
      _
    $region25: #{tpu_custom_call.1} parent=1 // pred_fallthru
      _
    // Predicated region
    $region26: #{tpu_custom_call.1} parent=1 // pred_check
      _
    $region27: #{tpu_custom_call.1} parent=1 // pred_check_branch
      %49 = sbr.rel (0) target = $region29
    $region28: #{tpu_custom_call.1} parent=1 // pred_region
      _
    $region29: #{tpu_custom_call.1} parent=1 // pred_fallthru
      _
    // Predicated region
    $region30: #{tpu_custom_call.1} parent=1 // pred_check
      _
    $region31: #{tpu_custom_call.1} parent=1 // pred_check_branch
      %51 = sbr.rel (0) target = $region33
    $region32: #{tpu_custom_call.1} parent=1 // pred_region
      _
    $region33: #{tpu_custom_call.1} parent=1 // pred_fallthru
      _
    // Predicated region
    $region34: #{tpu_custom_call.1} parent=1 // pred_check
      _
    $region35: #{tpu_custom_call.1} parent=1 // pred_check_branch
      %53 = sbr.rel (0) target = $region37
    $region36: #{tpu_custom_call.1} parent=1 // pred_region
      %54 = dma.done [#allocation4], 8192
    $region37: #{tpu_custom_call.1} parent=1 // pred_fallthru
      _
    // Predicated region
    $region38: #{tpu_custom_call.1} parent=1 // pred_check
      _
    $region39: #{tpu_custom_call.1} parent=1 // pred_check_branch
      %56 = sbr.rel (0) target = $region41
    $region40: #{tpu_custom_call.1} parent=1 // pred_region
      %57 = dma.done [#allocation7], 4096
    $region41: #{tpu_custom_call.1} parent=1 // pred_fallthru
      _
    %v59 = vld [vmem:[%s0] sm:$0xf]
    %v60 = vld [vmem:[%s0 + $0x4] sm:$0xf]
    %v61 = vld [vmem:[%s1] sm:$0xff]
    %v62 = vld [vmem:[%s1 + $0x8] sm:$0xff]
    %v63 = vld [vmem:[%s2] sm:$0xf]
    %v65 = vlaneseq
    %v66 = vshrl.u32 %v65, 7
    %v67 = vsub.s32 0, %v66
    %v68 = vrot.slane %v63, %v67
    %v69 = vlaneseq
    %v70 = vshrl.u32 %v69, 7
    %v71 = vsub.s32 1, %v70
    %v72 = vrot.slane %v63, %v71
    %v73 = vlaneseq
    %v74 = vshrl.u32 %v73, 7
    %v75 = vsub.s32 2, %v74
    %v76 = vrot.slane %v63, %v75
    %v77 = vlaneseq
    %v78 = vshrl.u32 %v77, 7
    %v79 = vsub.s32 3, %v78
    %v80 = vrot.slane %v63, %v79
    %v87 = vunpack.c.l.b16 %v59
    %v88 = vunpack.c.l.b16 %v60
    %v89 = vpack.c.b16 %v88, %v87
    %v92 = vunpack.c.l.b16 %v61
    %v93 = vunpack.c.h.b16 %v61
    %v94 = vunpack.c.l.b16 %v62
    %v95 = vunpack.c.h.b16 %v62
    %v96 = vpack.c.b16 %v92, %v92
    %v97 = vpack.c.b16 %v93, %v93
    %v98 = vpack.c.b16 %v94, %v94
    %v99 = vpack.c.b16 %v95, %v95
    %vm100 = vcmask 64512
    %v102 = vsel %vm100, %v89, 0
    %vm104 = vcmask 1043456
    %v106 = vsel %vm104, %v96, 0
    %v109 = vsel %vm104, %v97, 0
    %v112 = vsel %vm104, %v98, 0
    %v115 = vsel %vm104, %v99, 0
    %117 = vmatprep.subr.bf16.mxu0 %v109
    %118 = vmatpush1.bf16.msra.mxu0 %v106
    %119 = vmatprep.subr.bf16.mxu0 0
    %120 = vmatpush1.bf16.msra.mxu0 0
    %121 = vmatprep.subr.bf16.mxu0 0
    %122 = vmatpush1.bf16.msra.mxu0 0
    %123 = vmatprep.subr.bf16.mxu0 0
    %124 = vmatpush1.bf16.msra.mxu0 0
    %125 = vmatprep.subr.bf16.mxu0 0
    %126 = vmatpush1.bf16.msra.mxu0 0
    %127 = vmatprep.subr.bf16.mxu0 0
    %128 = vmatpush1.bf16.msra.mxu0 0
    %129 = vmatprep.subr.bf16.mxu0 0
    %130 = vmatpush1.bf16.msra.mxu0 0
    %131 = vmatprep.subr.bf16.mxu0 0
    %132 = vmatpush1.bf16.msra.mxu0 0
    %133 = vmatprep.subr.bf16.mxu0 0
    %134 = vmatpush1.bf16.msra.mxu0 0
    %135 = vmatprep.subr.bf16.mxu0 0
    %136 = vmatpush1.bf16.msra.mxu0 0
    %137 = vmatprep.subr.bf16.mxu0 0
    %138 = vmatpush1.bf16.msra.mxu0 0
    %139 = vmatprep.subr.bf16.mxu0 0
    %140 = vmatpush1.bf16.msra.mxu0 0
    %141 = vmatprep.subr.bf16.mxu0 0
    %142 = vmatpush1.bf16.msra.mxu0 0
    %143 = vmatprep.subr.bf16.mxu0 0
    %144 = vmatpush1.bf16.msra.mxu0 0
    %145 = vmatprep.subr.bf16.mxu0 0
    %146 = vmatpush1.bf16.msra.mxu0 0
    %147 = vmatprep.subr.bf16.mxu0 0
    %148 = vmatpush1.bf16.msra.mxu0 0
    %149 = vmatprep.mubr.bf16.mxu0 0
    %150 = vmatmul.mubr.bf16.gmra.mrb[0].mxu0 %v102
    %v151 = vpop.f32.mrb[0].mxu0
    %v152 = vadd.f32 %v68, %v151
    %v153 = vpop.f32.mrb[0].mxu0
    %v154 = vadd.f32 %v72, %v153
    %v155 = vpop.f32.mrb[0].mxu0
    %v156 = vadd.f32 %v68, %v155
    %v157 = vpop.f32.mrb[0].mxu0
    %v158 = vadd.f32 %v72, %v157
    %159 = vdwg.mxu0
    %160 = vmatprep.subr.bf16.mxu0 %v115
    %161 = vmatpush1.bf16.msra.mxu0 %v112
    %162 = vmatprep.subr.bf16.mxu0 0
    %163 = vmatpush1.bf16.msra.mxu0 0
    %164 = vmatprep.subr.bf16.mxu0 0
    %165 = vmatpush1.bf16.msra.mxu0 0
    %166 = vmatprep.subr.bf16.mxu0 0
    %167 = vmatpush1.bf16.msra.mxu0 0
    %168 = vmatprep.subr.bf16.mxu0 0
    %169 = vmatpush1.bf16.msra.mxu0 0
    %170 = vmatprep.subr.bf16.mxu0 0
    %171 = vmatpush1.bf16.msra.mxu0 0
    %172 = vmatprep.subr.bf16.mxu0 0
    %173 = vmatpush1.bf16.msra.mxu0 0
    %174 = vmatprep.subr.bf16.mxu0 0
    %175 = vmatpush1.bf16.msra.mxu0 0
    %176 = vmatprep.subr.bf16.mxu0 0
    %177 = vmatpush1.bf16.msra.mxu0 0
    %178 = vmatprep.subr.bf16.mxu0 0
    %179 = vmatpush1.bf16.msra.mxu0 0
    %180 = vmatprep.subr.bf16.mxu0 0
    %181 = vmatpush1.bf16.msra.mxu0 0
    %182 = vmatprep.subr.bf16.mxu0 0
    %183 = vmatpush1.bf16.msra.mxu0 0
    %184 = vmatprep.subr.bf16.mxu0 0
    %185 = vmatpush1.bf16.msra.mxu0 0
    %186 = vmatprep.subr.bf16.mxu0 0
    %187 = vmatpush1.bf16.msra.mxu0 0
    %188 = vmatprep.subr.bf16.mxu0 0
    %189 = vmatpush1.bf16.msra.mxu0 0
    %190 = vmatprep.subr.bf16.mxu0 0
    %191 = vmatpush1.bf16.msra.mxu0 0
    %192 = vmatprep.mubr.bf16.mxu0 0
    %193 = vmatmul.mubr.bf16.gmra.mrb[0].mxu0 %v102
    %v194 = vpop.f32.mrb[0].mxu0
    %v195 = vadd.f32 %v76, %v194
    %v196 = vpop.f32.mrb[0].mxu0
    %v197 = vadd.f32 %v80, %v196
    %v198 = vpop.f32.mrb[0].mxu0
    %v199 = vadd.f32 %v76, %v198
    %v200 = vpop.f32.mrb[0].mxu0
    %v201 = vadd.f32 %v80, %v200
    %202 = vdwg.mxu0
    %203 = vst [vmem:[#allocation2] sm:$0xff] %v152
    %204 = vst [vmem:[#allocation2 + $0x8] sm:$0xff] %v154
    %205 = vst [vmem:[#allocation2 + $0x10] sm:$0xff] %v195
    %206 = vst [vmem:[#allocation2 + $0x18] sm:$0xff] %v197
    %207 = vst [vmem:[#allocation2 + $0x20] sm:$0xff] %v156
    %208 = vst [vmem:[#allocation2 + $0x28] sm:$0xff] %v158
    %209 = vst [vmem:[#allocation2 + $0x30] sm:$0xff] %v199
    %210 = vst [vmem:[#allocation2 + $0x38] sm:$0xff] %v201
    %v211 = vld [vmem:[%s5] sm:$0xf]
    %v213 = vlaneseq
    %v214 = vshrl.u32 %v213, 7
    %v215 = vsub.s32 0, %v214
    %v216 = vrot.slane %v211, %v215
    %v217 = vlaneseq
    %v218 = vshrl.u32 %v217, 7
    %v219 = vsub.s32 1, %v218
    %v220 = vrot.slane %v211, %v219
    %v221 = vlaneseq
    %v222 = vshrl.u32 %v221, 7
    %v223 = vsub.s32 2, %v222
    %v224 = vrot.slane %v211, %v223
    %v225 = vlaneseq
    %v226 = vshrl.u32 %v225, 7
    %v227 = vsub.s32 3, %v226
    %v228 = vrot.slane %v211, %v227
    %v233 = vld [vmem:[#allocation2] sm:$0x3]
    %v234 = vld [vmem:[#allocation2 + $0x10] sm:$0x3]
    %v235 = vld [vmem:[#allocation2 + $0x18] sm:$0x3]
    %v236 = vxor.u32 %v233, 2147483648
    %v237 = vmul.f32 %v236, 1.442695
    %v238 = vpow.pop %v237
    %v239 = vadd.f32 %v238, 1.0
    %v240 = vrcp.pop %v239
    %v241 = vmul.f32 1.0, %v240
    %v242 = vtanh.pop %v234
    %v243 = vxor.u32 %v235, 2147483648
    %v244 = vmul.f32 %v243, 1.442695
    %v245 = vpow.pop %v244
    %v246 = vadd.f32 %v245, 1.0
    %v247 = vrcp.pop %v246
    %v248 = vmul.f32 1.0, %v247
    %v249 = vmul.f32 %v241, %v242
    %v250 = vtanh.pop %v249
    %v251 = vmul.f32 %v248, %v250
    %v252 = vpack.c.bf16 %v251, %v251
    %v253 = vld [vmem:[#allocation3] sm:$0xff]
    %v254 = vld [vmem:[#allocation3 + $0x8] sm:$0xff]
    %v255 = vld [vmem:[#allocation3 + $0x10] sm:$0xff]
    %v256 = vld [vmem:[#allocation3 + $0x18] sm:$0xff]
    %v257 = vld [vmem:[#allocation3 + $0x20] sm:$0xff]
    %v258 = vld [vmem:[#allocation3 + $0x28] sm:$0xff]
    %v259 = vld [vmem:[#allocation3 + $0x30] sm:$0xff]
    %v260 = vld [vmem:[#allocation3 + $0x38] sm:$0xff]
    %v261 = vld [vmem:[#allocation3 + $0x40] sm:$0xff]
    %v262 = vld [vmem:[#allocation3 + $0x48] sm:$0xff]
    %v263 = vld [vmem:[#allocation3 + $0x50] sm:$0xff]
    %v264 = vld [vmem:[#allocation3 + $0x58] sm:$0xff]
    %v265 = vld [vmem:[#allocation3 + $0x60] sm:$0xff]
    %v266 = vld [vmem:[#allocation3 + $0x68] sm:$0xff]
    %v267 = vld [vmem:[#allocation3 + $0x70] sm:$0xff]
    %v268 = vld [vmem:[#allocation3 + $0x78] sm:$0xff]
    %v269 = vld [vmem:[#allocation3 + $0x80] sm:$0xff]
    %v270 = vld [vmem:[#allocation3 + $0x88] sm:$0xff]
    %v271 = vld [vmem:[#allocation3 + $0x90] sm:$0xff]
    %v272 = vld [vmem:[#allocation3 + $0x98] sm:$0xff]
    %v273 = vld [vmem:[#allocation3 + $0xa0] sm:$0xff]
    %v274 = vld [vmem:[#allocation3 + $0xa8] sm:$0xff]
    %v275 = vld [vmem:[#allocation3 + $0xb0] sm:$0xff]
    %v276 = vld [vmem:[#allocation3 + $0xb8] sm:$0xff]
    %v277 = vld [vmem:[#allocation3 + $0xc0] sm:$0xff]
    %v278 = vld [vmem:[#allocation3 + $0xc8] sm:$0xff]
    %v279 = vld [vmem:[#allocation3 + $0xd0] sm:$0xff]
    %v280 = vld [vmem:[#allocation3 + $0xd8] sm:$0xff]
    %v281 = vld [vmem:[#allocation3 + $0xe0] sm:$0xff]
    %v282 = vld [vmem:[#allocation3 + $0xe8] sm:$0xff]
    %v283 = vld [vmem:[#allocation3 + $0xf0] sm:$0xff]
    %v284 = vld [vmem:[#allocation3 + $0xf8] sm:$0xff]
    %v285 = vld [vmem:[#allocation3 + $0x100] sm:$0xff]
    %v286 = vld [vmem:[#allocation3 + $0x108] sm:$0xff]
    %v287 = vld [vmem:[#allocation3 + $0x110] sm:$0xff]
    %v288 = vld [vmem:[#allocation3 + $0x118] sm:$0xff]
    %v289 = vld [vmem:[#allocation3 + $0x120] sm:$0xff]
    %v290 = vld [vmem:[#allocation3 + $0x128] sm:$0xff]
    %v291 = vld [vmem:[#allocation3 + $0x130] sm:$0xff]
    %v292 = vld [vmem:[#allocation3 + $0x138] sm:$0xff]
    %v293 = vld [vmem:[#allocation3 + $0x140] sm:$0xff]
    %v294 = vld [vmem:[#allocation3 + $0x148] sm:$0xff]
    %v295 = vld [vmem:[#allocation3 + $0x150] sm:$0xff]
    %v296 = vld [vmem:[#allocation3 + $0x158] sm:$0xff]
    %v297 = vld [vmem:[#allocation3 + $0x160] sm:$0xff]
    %v298 = vld [vmem:[#allocation3 + $0x168] sm:$0xff]
    %v299 = vld [vmem:[#allocation3 + $0x170] sm:$0xff]
    %v300 = vld [vmem:[#allocation3 + $0x178] sm:$0xff]
    %v301 = vld [vmem:[#allocation3 + $0x180] sm:$0xff]
    %v302 = vld [vmem:[#allocation3 + $0x188] sm:$0xff]
    %v303 = vld [vmem:[#allocation3 + $0x190] sm:$0xff]
    %v304 = vld [vmem:[#allocation3 + $0x198] sm:$0xff]
    %v305 = vld [vmem:[#allocation3 + $0x1a0] sm:$0xff]
    %v306 = vld [vmem:[#allocation3 + $0x1a8] sm:$0xff]
    %v307 = vld [vmem:[#allocation3 + $0x1b0] sm:$0xff]
    %v308 = vld [vmem:[#allocation3 + $0x1b8] sm:$0xff]
    %v309 = vld [vmem:[#allocation3 + $0x1c0] sm:$0xff]
    %v310 = vld [vmem:[#allocation3 + $0x1c8] sm:$0xff]
    %v311 = vld [vmem:[#allocation3 + $0x1d0] sm:$0xff]
    %v312 = vld [vmem:[#allocation3 + $0x1d8] sm:$0xff]
    %v313 = vld [vmem:[#allocation3 + $0x1e0] sm:$0xff]
    %v314 = vld [vmem:[#allocation3 + $0x1e8] sm:$0xff]
    %v315 = vld [vmem:[#allocation3 + $0x1f0] sm:$0xff]
    %v316 = vld [vmem:[#allocation3 + $0x1f8] sm:$0xff]
    %v381 = vunpack.c.l.b16 %v253
    %v382 = vunpack.c.h.b16 %v253
    %v383 = vunpack.c.l.b16 %v254
    %v384 = vunpack.c.h.b16 %v254
    %v385 = vunpack.c.l.b16 %v255
    %v386 = vunpack.c.h.b16 %v255
    %v387 = vunpack.c.l.b16 %v256
    %v388 = vunpack.c.h.b16 %v256
    %v389 = vunpack.c.l.b16 %v257
    %v390 = vunpack.c.h.b16 %v257
    %v391 = vunpack.c.l.b16 %v258
    %v392 = vunpack.c.h.b16 %v258
    %v393 = vunpack.c.l.b16 %v259
    %v394 = vunpack.c.h.b16 %v259
    %v395 = vunpack.c.l.b16 %v260
    %v396 = vunpack.c.h.b16 %v260
    %v397 = vunpack.c.l.b16 %v261
    %v398 = vunpack.c.h.b16 %v261
    %v399 = vunpack.c.l.b16 %v262
    %v400 = vunpack.c.h.b16 %v262
    %v401 = vunpack.c.l.b16 %v263
    %v402 = vunpack.c.h.b16 %v263
    %v403 = vunpack.c.l.b16 %v264
    %v404 = vunpack.c.h.b16 %v264
    %v405 = vunpack.c.l.b16 %v265
    %v406 = vunpack.c.h.b16 %v265
    %v407 = vunpack.c.l.b16 %v266
    %v408 = vunpack.c.h.b16 %v266
    %v409 = vunpack.c.l.b16 %v267
    %v410 = vunpack.c.h.b16 %v267
    %v411 = vunpack.c.l.b16 %v268
    %v412 = vunpack.c.h.b16 %v268
    %v413 = vunpack.c.l.b16 %v269
    %v414 = vunpack.c.h.b16 %v269
    %v415 = vunpack.c.l.b16 %v270
    %v416 = vunpack.c.h.b16 %v270
    %v417 = vunpack.c.l.b16 %v271
    %v418 = vunpack.c.h.b16 %v271
    %v419 = vunpack.c.l.b16 %v272
    %v420 = vunpack.c.h.b16 %v272
    %v421 = vunpack.c.l.b16 %v273
    %v422 = vunpack.c.h.b16 %v273
    %v423 = vunpack.c.l.b16 %v274
    %v424 = vunpack.c.h.b16 %v274
    %v425 = vunpack.c.l.b16 %v275
    %v426 = vunpack.c.h.b16 %v275
    %v427 = vunpack.c.l.b16 %v276
    %v428 = vunpack.c.h.b16 %v276
    %v429 = vunpack.c.l.b16 %v277
    %v430 = vunpack.c.h.b16 %v277
    %v431 = vunpack.c.l.b16 %v278
    %v432 = vunpack.c.h.b16 %v278
    %v433 = vunpack.c.l.b16 %v279
    %v434 = vunpack.c.h.b16 %v279
    %v435 = vunpack.c.l.b16 %v280
    %v436 = vunpack.c.h.b16 %v280
    %v437 = vunpack.c.l.b16 %v281
    %v438 = vunpack.c.h.b16 %v281
    %v439 = vunpack.c.l.b16 %v282
    %v440 = vunpack.c.h.b16 %v282
    %v441 = vunpack.c.l.b16 %v283
    %v442 = vunpack.c.h.b16 %v283
    %v443 = vunpack.c.l.b16 %v284
    %v444 = vunpack.c.h.b16 %v284
    %v445 = vunpack.c.l.b16 %v285
    %v446 = vunpack.c.h.b16 %v285
    %v447 = vunpack.c.l.b16 %v286
    %v448 = vunpack.c.h.b16 %v286
    %v449 = vunpack.c.l.b16 %v287
    %v450 = vunpack.c.h.b16 %v287
    %v451 = vunpack.c.l.b16 %v288
    %v452 = vunpack.c.h.b16 %v288
    %v453 = vunpack.c.l.b16 %v289
    %v454 = vunpack.c.h.b16 %v289
    %v455 = vunpack.c.l.b16 %v290
    %v456 = vunpack.c.h.b16 %v290
    %v457 = vunpack.c.l.b16 %v291
    %v458 = vunpack.c.h.b16 %v291
    %v459 = vunpack.c.l.b16 %v292
    %v460 = vunpack.c.h.b16 %v292
    %v461 = vunpack.c.l.b16 %v293
    %v462 = vunpack.c.h.b16 %v293
    %v463 = vunpack.c.l.b16 %v294
    %v464 = vunpack.c.h.b16 %v294
    %v465 = vunpack.c.l.b16 %v295
    %v466 = vunpack.c.h.b16 %v295
    %v467 = vunpack.c.l.b16 %v296
    %v468 = vunpack.c.h.b16 %v296
    %v469 = vunpack.c.l.b16 %v297
    %v470 = vunpack.c.h.b16 %v297
    %v471 = vunpack.c.l.b16 %v298
    %v472 = vunpack.c.h.b16 %v298
    %v473 = vunpack.c.l.b16 %v299
    %v474 = vunpack.c.h.b16 %v299
    %v475 = vunpack.c.l.b16 %v300
    %v476 = vunpack.c.h.b16 %v300
    %v477 = vunpack.c.l.b16 %v301
    %v478 = vunpack.c.h.b16 %v301
    %v479 = vunpack.c.l.b16 %v302
    %v480 = vunpack.c.h.b16 %v302
    %v481 = vunpack.c.l.b16 %v303
    %v482 = vunpack.c.h.b16 %v303
    %v483 = vunpack.c.l.b16 %v304
    %v484 = vunpack.c.h.b16 %v304
    %v485 = vunpack.c.l.b16 %v305
    %v486 = vunpack.c.h.b16 %v305
    %v487 = vunpack.c.l.b16 %v306
    %v488 = vunpack.c.h.b16 %v306
    %v489 = vunpack.c.l.b16 %v307
    %v490 = vunpack.c.h.b16 %v307
    %v491 = vunpack.c.l.b16 %v308
    %v492 = vunpack.c.h.b16 %v308
    %v493 = vunpack.c.l.b16 %v309
    %v494 = vunpack.c.h.b16 %v309
    %v495 = vunpack.c.l.b16 %v310
    %v496 = vunpack.c.h.b16 %v310
    %v497 = vunpack.c.l.b16 %v311
    %v498 = vunpack.c.h.b16 %v311
    %v499 = vunpack.c.l.b16 %v312
    %v500 = vunpack.c.h.b16 %v312
    %v501 = vunpack.c.l.b16 %v313
    %v502 = vunpack.c.h.b16 %v313
    %v503 = vunpack.c.l.b16 %v314
    %v504 = vunpack.c.h.b16 %v314
    %v505 = vunpack.c.l.b16 %v315
    %v506 = vunpack.c.h.b16 %v315
    %v507 = vunpack.c.l.b16 %v316
    %v508 = vunpack.c.h.b16 %v316
    %v509 = vpack.c.b16 %v389, %v381
    %v510 = vpack.c.b16 %v390, %v382
    %v511 = vpack.c.b16 %v391, %v383
    %v512 = vpack.c.b16 %v392, %v384
    %v513 = vpack.c.b16 %v393, %v385
    %v514 = vpack.c.b16 %v394, %v386
    %v515 = vpack.c.b16 %v395, %v387
    %v516 = vpack.c.b16 %v396, %v388
    %v517 = vpack.c.b16 %v405, %v397
    %v518 = vpack.c.b16 %v406, %v398
    %v519 = vpack.c.b16 %v407, %v399
    %v520 = vpack.c.b16 %v408, %v400
    %v521 = vpack.c.b16 %v409, %v401
    %v522 = vpack.c.b16 %v410, %v402
    %v523 = vpack.c.b16 %v411, %v403
    %v524 = vpack.c.b16 %v412, %v404
    %v525 = vpack.c.b16 %v421, %v413
    %v526 = vpack.c.b16 %v422, %v414
    %v527 = vpack.c.b16 %v423, %v415
    %v528 = vpack.c.b16 %v424, %v416
    %v529 = vpack.c.b16 %v425, %v417
    %v530 = vpack.c.b16 %v426, %v418
    %v531 = vpack.c.b16 %v427, %v419
    %v532 = vpack.c.b16 %v428, %v420
    %v533 = vpack.c.b16 %v437, %v429
    %v534 = vpack.c.b16 %v438, %v430
    %v535 = vpack.c.b16 %v439, %v431
    %v536 = vpack.c.b16 %v440, %v432
    %v537 = vpack.c.b16 %v441, %v433
    %v538 = vpack.c.b16 %v442, %v434
    %v539 = vpack.c.b16 %v443, %v435
    %v540 = vpack.c.b16 %v444, %v436
    %v541 = vpack.c.b16 %v453, %v445
    %v542 = vpack.c.b16 %v454, %v446
    %v543 = vpack.c.b16 %v455, %v447
    %v544 = vpack.c.b16 %v456, %v448
    %v545 = vpack.c.b16 %v457, %v449
    %v546 = vpack.c.b16 %v458, %v450
    %v547 = vpack.c.b16 %v459, %v451
    %v548 = vpack.c.b16 %v460, %v452
    %v549 = vpack.c.b16 %v469, %v461
    %v550 = vpack.c.b16 %v470, %v462
    %v551 = vpack.c.b16 %v471, %v463
    %v552 = vpack.c.b16 %v472, %v464
    %v553 = vpack.c.b16 %v473, %v465
    %v554 = vpack.c.b16 %v474, %v466
    %v555 = vpack.c.b16 %v475, %v467
    %v556 = vpack.c.b16 %v476, %v468
    %v557 = vpack.c.b16 %v485, %v477
    %v558 = vpack.c.b16 %v486, %v478
    %v559 = vpack.c.b16 %v487, %v479
    %v560 = vpack.c.b16 %v488, %v480
    %v561 = vpack.c.b16 %v489, %v481
    %v562 = vpack.c.b16 %v490, %v482
    %v563 = vpack.c.b16 %v491, %v483
    %v564 = vpack.c.b16 %v492, %v484
    %v565 = vpack.c.b16 %v501, %v493
    %v566 = vpack.c.b16 %v502, %v494
    %v567 = vpack.c.b16 %v503, %v495
    %v568 = vpack.c.b16 %v504, %v496
    %v569 = vpack.c.b16 %v505, %v497
    %v570 = vpack.c.b16 %v506, %v498
    %v571 = vpack.c.b16 %v507, %v499
    %v572 = vpack.c.b16 %v508, %v500
    %637 = vmatprep.subr.bf16.mxu0 %v510
    %638 = vmatpush1.bf16.msra.mxu0 %v509
    %639 = vmatprep.subr.bf16.mxu0 %v518
    %640 = vmatpush1.bf16.msra.mxu0 %v517
    %641 = vmatprep.subr.bf16.mxu0 %v526
    %642 = vmatpush1.bf16.msra.mxu0 %v525
    %643 = vmatprep.subr.bf16.mxu0 %v534
    %644 = vmatpush1.bf16.msra.mxu0 %v533
    %645 = vmatprep.subr.bf16.mxu0 %v542
    %646 = vmatpush1.bf16.msra.mxu0 %v541
    %647 = vmatprep.subr.bf16.mxu0 %v550
    %648 = vmatpush1.bf16.msra.mxu0 %v549
    %649 = vmatprep.subr.bf16.mxu0 %v558
    %650 = vmatpush1.bf16.msra.mxu0 %v557
    %651 = vmatprep.subr.bf16.mxu0 %v566
    %652 = vmatpush1.bf16.msra.mxu0 %v565
    %653 = vmatprep.subr.bf16.mxu0 0
    %654 = vmatpush1.bf16.msra.mxu0 0
    %655 = vmatprep.subr.bf16.mxu0 0
    %656 = vmatpush1.bf16.msra.mxu0 0
    %657 = vmatprep.subr.bf16.mxu0 0
    %658 = vmatpush1.bf16.msra.mxu0 0
    %659 = vmatprep.subr.bf16.mxu0 0
    %660 = vmatpush1.bf16.msra.mxu0 0
    %661 = vmatprep.subr.bf16.mxu0 0
    %662 = vmatpush1.bf16.msra.mxu0 0
    %663 = vmatprep.subr.bf16.mxu0 0
    %664 = vmatpush1.bf16.msra.mxu0 0
    %665 = vmatprep.subr.bf16.mxu0 0
    %666 = vmatpush1.bf16.msra.mxu0 0
    %667 = vmatprep.subr.bf16.mxu0 0
    %668 = vmatpush1.bf16.msra.mxu0 0
    %669 = vmatprep.mubr.bf16.mxu0 0
    %670 = vmatmul.mubr.bf16.gmra.mrb[0].mxu0 %v252
    %v671 = vpop.f32.mrb[0].mxu0
    %v672 = vadd.f32 0.0, %v671
    %v673 = vpop.f32.mrb[0].mxu0
    %v674 = vadd.f32 0.0, %v673
    %v675 = vpop.f32.mrb[0].mxu0
    %v676 = vpop.f32.mrb[0].mxu0
    %677 = vdwg.mxu0
    %678 = vmatprep.subr.bf16.mxu0 %v512
    %679 = vmatpush1.bf16.msra.mxu0 %v511
    %680 = vmatprep.subr.bf16.mxu0 %v520
    %681 = vmatpush1.bf16.msra.mxu0 %v519
    %682 = vmatprep.subr.bf16.mxu0 %v528
    %683 = vmatpush1.bf16.msra.mxu0 %v527
    %684 = vmatprep.subr.bf16.mxu0 %v536
    %685 = vmatpush1.bf16.msra.mxu0 %v535
    %686 = vmatprep.subr.bf16.mxu0 %v544
    %687 = vmatpush1.bf16.msra.mxu0 %v543
    %688 = vmatprep.subr.bf16.mxu0 %v552
    %689 = vmatpush1.bf16.msra.mxu0 %v551
    %690 = vmatprep.subr.bf16.mxu0 %v560
    %691 = vmatpush1.bf16.msra.mxu0 %v559
    %692 = vmatprep.subr.bf16.mxu0 %v568
    %693 = vmatpush1.bf16.msra.mxu0 %v567
    %694 = vmatprep.subr.bf16.mxu0 0
    %695 = vmatpush1.bf16.msra.mxu0 0
    %696 = vmatprep.subr.bf16.mxu0 0
    %697 = vmatpush1.bf16.msra.mxu0 0
    %698 = vmatprep.subr.bf16.mxu0 0
    %699 = vmatpush1.bf16.msra.mxu0 0
    %700 = vmatprep.subr.bf16.mxu0 0
    %701 = vmatpush1.bf16.msra.mxu0 0
    %702 = vmatprep.subr.bf16.mxu0 0
    %703 = vmatpush1.bf16.msra.mxu0 0
    %704 = vmatprep.subr.bf16.mxu0 0
    %705 = vmatpush1.bf16.msra.mxu0 0
    %706 = vmatprep.subr.bf16.mxu0 0
    %707 = vmatpush1.bf16.msra.mxu0 0
    %708 = vmatprep.subr.bf16.mxu0 0
    %709 = vmatpush1.bf16.msra.mxu0 0
    %710 = vmatprep.mubr.bf16.mxu0 0
    %711 = vmatmul.mubr.bf16.gmra.mrb[0].mxu0 %v252
    %v712 = vpop.f32.mrb[0].mxu0
    %v713 = vadd.f32 0.0, %v712
    %v714 = vpop.f32.mrb[0].mxu0
    %v715 = vadd.f32 0.0, %v714
    %v716 = vpop.f32.mrb[0].mxu0
    %v717 = vpop.f32.mrb[0].mxu0
    %718 = vdwg.mxu0
    %719 = vmatprep.subr.bf16.mxu0 %v514
    %720 = vmatpush1.bf16.msra.mxu0 %v513
    %721 = vmatprep.subr.bf16.mxu0 %v522
    %722 = vmatpush1.bf16.msra.mxu0 %v521
    %723 = vmatprep.subr.bf16.mxu0 %v530
    %724 = vmatpush1.bf16.msra.mxu0 %v529
    %725 = vmatprep.subr.bf16.mxu0 %v538
    %726 = vmatpush1.bf16.msra.mxu0 %v537
    %727 = vmatprep.subr.bf16.mxu0 %v546
    %728 = vmatpush1.bf16.msra.mxu0 %v545
    %729 = vmatprep.subr.bf16.mxu0 %v554
    %730 = vmatpush1.bf16.msra.mxu0 %v553
    %731 = vmatprep.subr.bf16.mxu0 %v562
    %732 = vmatpush1.bf16.msra.mxu0 %v561
    %733 = vmatprep.subr.bf16.mxu0 %v570
    %734 = vmatpush1.bf16.msra.mxu0 %v569
    %735 = vmatprep.subr.bf16.mxu0 0
    %736 = vmatpush1.bf16.msra.mxu0 0
    %737 = vmatprep.subr.bf16.mxu0 0
    %738 = vmatpush1.bf16.msra.mxu0 0
    %739 = vmatprep.subr.bf16.mxu0 0
    %740 = vmatpush1.bf16.msra.mxu0 0
    %741 = vmatprep.subr.bf16.mxu0 0
    %742 = vmatpush1.bf16.msra.mxu0 0
    %743 = vmatprep.subr.bf16.mxu0 0
    %744 = vmatpush1.bf16.msra.mxu0 0
    %745 = vmatprep.subr.bf16.mxu0 0
    %746 = vmatpush1.bf16.msra.mxu0 0
    %747 = vmatprep.subr.bf16.mxu0 0
    %748 = vmatpush1.bf16.msra.mxu0 0
    %749 = vmatprep.subr.bf16.mxu0 0
    %750 = vmatpush1.bf16.msra.mxu0 0
    %751 = vmatprep.mubr.bf16.mxu0 0
    %752 = vmatmul.mubr.bf16.gmra.mrb[0].mxu0 %v252
    %v753 = vpop.f32.mrb[0].mxu0
    %v754 = vadd.f32 0.0, %v753
    %v755 = vpop.f32.mrb[0].mxu0
    %v756 = vadd.f32 0.0, %v755
    %v757 = vpop.f32.mrb[0].mxu0
    %v758 = vpop.f32.mrb[0].mxu0
    %759 = vdwg.mxu0
    %760 = vmatprep.subr.bf16.mxu0 %v516
    %761 = vmatpush1.bf16.msra.mxu0 %v515
    %762 = vmatprep.subr.bf16.mxu0 %v524
    %763 = vmatpush1.bf16.msra.mxu0 %v523
    %764 = vmatprep.subr.bf16.mxu0 %v532
    %765 = vmatpush1.bf16.msra.mxu0 %v531
    %766 = vmatprep.subr.bf16.mxu0 %v540
    %767 = vmatpush1.bf16.msra.mxu0 %v539
    %768 = vmatprep.subr.bf16.mxu0 %v548
    %769 = vmatpush1.bf16.msra.mxu0 %v547
    %770 = vmatprep.subr.bf16.mxu0 %v556
    %771 = vmatpush1.bf16.msra.mxu0 %v555
    %772 = vmatprep.subr.bf16.mxu0 %v564
    %773 = vmatpush1.bf16.msra.mxu0 %v563
    %774 = vmatprep.subr.bf16.mxu0 %v572
    %775 = vmatpush1.bf16.msra.mxu0 %v571
    %776 = vmatprep.subr.bf16.mxu0 0
    %777 = vmatpush1.bf16.msra.mxu0 0
    %778 = vmatprep.subr.bf16.mxu0 0
    %779 = vmatpush1.bf16.msra.mxu0 0
    %780 = vmatprep.subr.bf16.mxu0 0
    %781 = vmatpush1.bf16.msra.mxu0 0
    %782 = vmatprep.subr.bf16.mxu0 0
    %783 = vmatpush1.bf16.msra.mxu0 0
    %784 = vmatprep.subr.bf16.mxu0 0
    %785 = vmatpush1.bf16.msra.mxu0 0
    %786 = vmatprep.subr.bf16.mxu0 0
    %787 = vmatpush1.bf16.msra.mxu0 0
    %788 = vmatprep.subr.bf16.mxu0 0
    %789 = vmatpush1.bf16.msra.mxu0 0
    %790 = vmatprep.subr.bf16.mxu0 0
    %791 = vmatpush1.bf16.msra.mxu0 0
    %792 = vmatprep.mubr.bf16.mxu0 0
    %793 = vmatmul.mubr.bf16.gmra.mrb[0].mxu0 %v252
    %v794 = vpop.f32.mrb[0].mxu0
    %v795 = vadd.f32 0.0, %v794
    %v796 = vpop.f32.mrb[0].mxu0
    %v797 = vadd.f32 0.0, %v796
    %v798 = vpop.f32.mrb[0].mxu0
    %v799 = vpop.f32.mrb[0].mxu0
    %800 = vdwg.mxu0
    %v801 = vld [vmem:[#allocation6] sm:$0xff]
    %v802 = vld [vmem:[#allocation6 + $0x8] sm:$0xff]
    %v803 = vld [vmem:[#allocation6 + $0x10] sm:$0xff]
    %v804 = vld [vmem:[#allocation6 + $0x18] sm:$0xff]
    %v805 = vld [vmem:[#allocation6 + $0x20] sm:$0xff]
    %v806 = vld [vmem:[#allocation6 + $0x28] sm:$0xff]
    %v807 = vld [vmem:[#allocation6 + $0x30] sm:$0xff]
    %v808 = vld [vmem:[#allocation6 + $0x38] sm:$0xff]
    %v809 = vld [vmem:[#allocation6 + $0x40] sm:$0xff]
    %v810 = vld [vmem:[#allocation6 + $0x48] sm:$0xff]
    %v811 = vld [vmem:[#allocation6 + $0x50] sm:$0xff]
    %v812 = vld [vmem:[#allocation6 + $0x58] sm:$0xff]
    %v813 = vld [vmem:[#allocation6 + $0x60] sm:$0xff]
    %v814 = vld [vmem:[#allocation6 + $0x68] sm:$0xff]
    %v815 = vld [vmem:[#allocation6 + $0x70] sm:$0xff]
    %v816 = vld [vmem:[#allocation6 + $0x78] sm:$0xff]
    %v817 = vld [vmem:[#allocation6 + $0x80] sm:$0xff]
    %v818 = vld [vmem:[#allocation6 + $0x88] sm:$0xff]
    %v819 = vld [vmem:[#allocation6 + $0x90] sm:$0xff]
    %v820 = vld [vmem:[#allocation6 + $0x98] sm:$0xff]
    %v821 = vld [vmem:[#allocation6 + $0xa0] sm:$0xff]
    %v822 = vld [vmem:[#allocation6 + $0xa8] sm:$0xff]
    %v823 = vld [vmem:[#allocation6 + $0xb0] sm:$0xff]
    %v824 = vld [vmem:[#allocation6 + $0xb8] sm:$0xff]
    %v825 = vld [vmem:[#allocation6 + $0xc0] sm:$0xff]
    %v826 = vld [vmem:[#allocation6 + $0xc8] sm:$0xff]
    %v827 = vld [vmem:[#allocation6 + $0xd0] sm:$0xff]
    %v828 = vld [vmem:[#allocation6 + $0xd8] sm:$0xff]
    %v829 = vld [vmem:[#allocation6 + $0xe0] sm:$0xff]
    %v830 = vld [vmem:[#allocation6 + $0xe8] sm:$0xff]
    %v831 = vld [vmem:[#allocation6 + $0xf0] sm:$0xff]
    %v832 = vld [vmem:[#allocation6 + $0xf8] sm:$0xff]
    %v865 = vunpack.c.l.b16 %v801
    %v866 = vunpack.c.h.b16 %v801
    %v867 = vunpack.c.l.b16 %v802
    %v868 = vunpack.c.h.b16 %v802
    %v869 = vunpack.c.l.b16 %v803
    %v870 = vunpack.c.h.b16 %v803
    %v871 = vunpack.c.l.b16 %v804
    %v872 = vunpack.c.h.b16 %v804
    %v873 = vunpack.c.l.b16 %v805
    %v874 = vunpack.c.h.b16 %v805
    %v875 = vunpack.c.l.b16 %v806
    %v876 = vunpack.c.h.b16 %v806
    %v877 = vunpack.c.l.b16 %v807
    %v878 = vunpack.c.h.b16 %v807
    %v879 = vunpack.c.l.b16 %v808
    %v880 = vunpack.c.h.b16 %v808
    %v881 = vunpack.c.l.b16 %v809
    %v882 = vunpack.c.h.b16 %v809
    %v883 = vunpack.c.l.b16 %v810
    %v884 = vunpack.c.h.b16 %v810
    %v885 = vunpack.c.l.b16 %v811
    %v886 = vunpack.c.h.b16 %v811
    %v887 = vunpack.c.l.b16 %v812
    %v888 = vunpack.c.h.b16 %v812
    %v889 = vunpack.c.l.b16 %v813
    %v890 = vunpack.c.h.b16 %v813
    %v891 = vunpack.c.l.b16 %v814
    %v892 = vunpack.c.h.b16 %v814
    %v893 = vunpack.c.l.b16 %v815
    %v894 = vunpack.c.h.b16 %v815
    %v895 = vunpack.c.l.b16 %v816
    %v896 = vunpack.c.h.b16 %v816
    %v897 = vunpack.c.l.b16 %v817
    %v898 = vunpack.c.h.b16 %v817
    %v899 = vunpack.c.l.b16 %v818
    %v900 = vunpack.c.h.b16 %v818
    %v901 = vunpack.c.l.b16 %v819
    %v902 = vunpack.c.h.b16 %v819
    %v903 = vunpack.c.l.b16 %v820
    %v904 = vunpack.c.h.b16 %v820
    %v905 = vunpack.c.l.b16 %v821
    %v906 = vunpack.c.h.b16 %v821
    %v907 = vunpack.c.l.b16 %v822
    %v908 = vunpack.c.h.b16 %v822
    %v909 = vunpack.c.l.b16 %v823
    %v910 = vunpack.c.h.b16 %v823
    %v911 = vunpack.c.l.b16 %v824
    %v912 = vunpack.c.h.b16 %v824
    %v913 = vunpack.c.l.b16 %v825
    %v914 = vunpack.c.h.b16 %v825
    %v915 = vunpack.c.l.b16 %v826
    %v916 = vunpack.c.h.b16 %v826
    %v917 = vunpack.c.l.b16 %v827
    %v918 = vunpack.c.h.b16 %v827
    %v919 = vunpack.c.l.b16 %v828
    %v920 = vunpack.c.h.b16 %v828
    %v921 = vunpack.c.l.b16 %v829
    %v922 = vunpack.c.h.b16 %v829
    %v923 = vunpack.c.l.b16 %v830
    %v924 = vunpack.c.h.b16 %v830
    %v925 = vunpack.c.l.b16 %v831
    %v926 = vunpack.c.h.b16 %v831
    %v927 = vunpack.c.l.b16 %v832
    %v928 = vunpack.c.h.b16 %v832
    %v929 = vpack.c.b16 %v869, %v865
    %v930 = vpack.c.b16 %v870, %v866
    %v931 = vpack.c.b16 %v871, %v867
    %v932 = vpack.c.b16 %v872, %v868
    %v933 = vpack.c.b16 %v877, %v873
    %v934 = vpack.c.b16 %v878, %v874
    %v935 = vpack.c.b16 %v879, %v875
    %v936 = vpack.c.b16 %v880, %v876
    %v937 = vpack.c.b16 %v885, %v881
    %v938 = vpack.c.b16 %v886, %v882
    %v939 = vpack.c.b16 %v887, %v883
    %v940 = vpack.c.b16 %v888, %v884
    %v941 = vpack.c.b16 %v893, %v889
    %v942 = vpack.c.b16 %v894, %v890
    %v943 = vpack.c.b16 %v895, %v891
    %v944 = vpack.c.b16 %v896, %v892
    %v945 = vpack.c.b16 %v901, %v897
    %v946 = vpack.c.b16 %v902, %v898
    %v947 = vpack.c.b16 %v903, %v899
    %v948 = vpack.c.b16 %v904, %v900
    %v949 = vpack.c.b16 %v909, %v905
    %v950 = vpack.c.b16 %v910, %v906
    %v951 = vpack.c.b16 %v911, %v907
    %v952 = vpack.c.b16 %v912, %v908
    %v953 = vpack.c.b16 %v917, %v913
    %v954 = vpack.c.b16 %v918, %v914
    %v955 = vpack.c.b16 %v919, %v915
    %v956 = vpack.c.b16 %v920, %v916
    %v957 = vpack.c.b16 %v925, %v921
    %v958 = vpack.c.b16 %v926, %v922
    %v959 = vpack.c.b16 %v927, %v923
    %v960 = vpack.c.b16 %v928, %v924
    %993 = vmatprep.subr.bf16.mxu0 %v930
    %994 = vmatpush1.bf16.msra.mxu0 %v929
    %995 = vmatprep.subr.bf16.mxu0 %v934
    %996 = vmatpush1.bf16.msra.mxu0 %v933
    %997 = vmatprep.subr.bf16.mxu0 %v938
    %998 = vmatpush1.bf16.msra.mxu0 %v937
    %999 = vmatprep.subr.bf16.mxu0 %v942
    %1000 = vmatpush1.bf16.msra.mxu0 %v941
    %1001 = vmatprep.subr.bf16.mxu0 %v946
    %1002 = vmatpush1.bf16.msra.mxu0 %v945
    %1003 = vmatprep.subr.bf16.mxu0 %v950
    %1004 = vmatpush1.bf16.msra.mxu0 %v949
    %1005 = vmatprep.subr.bf16.mxu0 %v954
    %1006 = vmatpush1.bf16.msra.mxu0 %v953
    %1007 = vmatprep.subr.bf16.mxu0 %v958
    %1008 = vmatpush1.bf16.msra.mxu0 %v957
    %1009 = vmatprep.subr.bf16.mxu0 0
    %1010 = vmatpush1.bf16.msra.mxu0 0
    %1011 = vmatprep.subr.bf16.mxu0 0
    %1012 = vmatpush1.bf16.msra.mxu0 0
    %1013 = vmatprep.subr.bf16.mxu0 0
    %1014 = vmatpush1.bf16.msra.mxu0 0
    %1015 = vmatprep.subr.bf16.mxu0 0
    %1016 = vmatpush1.bf16.msra.mxu0 0
    %1017 = vmatprep.subr.bf16.mxu0 0
    %1018 = vmatpush1.bf16.msra.mxu0 0
    %1019 = vmatprep.subr.bf16.mxu0 0
    %1020 = vmatpush1.bf16.msra.mxu0 0
    %1021 = vmatprep.subr.bf16.mxu0 0
    %1022 = vmatpush1.bf16.msra.mxu0 0
    %1023 = vmatprep.subr.bf16.mxu0 0
    %1024 = vmatpush1.bf16.msra.mxu0 0
    %1025 = vmatprep.mubr.bf16.mxu0 0
    %1026 = vmatmul.mubr.bf16.gmra.mrb[0].mxu0 0
    %v1027 = vpop.f32.mrb[0].mxu0
    %v1028 = vadd.f32 0.0, %v1027
    %v1029 = vpop.f32.mrb[0].mxu0
    %v1030 = vadd.f32 0.0, %v1029
    %v1031 = vpop.f32.mrb[0].mxu0
    %v1032 = vpop.f32.mrb[0].mxu0
    %1033 = vdwg.mxu0
    %1034 = vmatprep.subr.bf16.mxu0 %v932
    %1035 = vmatpush1.bf16.msra.mxu0 %v931
    %1036 = vmatprep.subr.bf16.mxu0 %v936
    %1037 = vmatpush1.bf16.msra.mxu0 %v935
    %1038 = vmatprep.subr.bf16.mxu0 %v940
    %1039 = vmatpush1.bf16.msra.mxu0 %v939
    %1040 = vmatprep.subr.bf16.mxu0 %v944
    %1041 = vmatpush1.bf16.msra.mxu0 %v943
    %1042 = vmatprep.subr.bf16.mxu0 %v948
    %1043 = vmatpush1.bf16.msra.mxu0 %v947
    %1044 = vmatprep.subr.bf16.mxu0 %v952
    %1045 = vmatpush1.bf16.msra.mxu0 %v951
    %1046 = vmatprep.subr.bf16.mxu0 %v956
    %1047 = vmatpush1.bf16.msra.mxu0 %v955
    %1048 = vmatprep.subr.bf16.mxu0 %v960
    %1049 = vmatpush1.bf16.msra.mxu0 %v959
    %1050 = vmatprep.subr.bf16.mxu0 0
    %1051 = vmatpush1.bf16.msra.mxu0 0
    %1052 = vmatprep.subr.bf16.mxu0 0
    %1053 = vmatpush1.bf16.msra.mxu0 0
    %1054 = vmatprep.subr.bf16.mxu0 0
    %1055 = vmatpush1.bf16.msra.mxu0 0
    %1056 = vmatprep.subr.bf16.mxu0 0
    %1057 = vmatpush1.bf16.msra.mxu0 0
    %1058 = vmatprep.subr.bf16.mxu0 0
    %1059 = vmatpush1.bf16.msra.mxu0 0
    %1060 = vmatprep.subr.bf16.mxu0 0
    %1061 = vmatpush1.bf16.msra.mxu0 0
    %1062 = vmatprep.subr.bf16.mxu0 0
    %1063 = vmatpush1.bf16.msra.mxu0 0
    %1064 = vmatprep.subr.bf16.mxu0 0
    %1065 = vmatpush1.bf16.msra.mxu0 0
    %1066 = vmatprep.mubr.bf16.mxu0 0
    %1067 = vmatmul.mubr.bf16.gmra.mrb[0].mxu0 0
    %v1068 = vpop.f32.mrb[0].mxu0
    %v1069 = vadd.f32 0.0, %v1068
    %v1070 = vpop.f32.mrb[0].mxu0
    %v1071 = vadd.f32 0.0, %v1070
    %v1072 = vpop.f32.mrb[0].mxu0
    %v1073 = vpop.f32.mrb[0].mxu0
    %1074 = vdwg.mxu0
    %v1075 = vadd.f32 %v754, %v1028
    %v1076 = vadd.f32 %v756, %v1030
    %v1077 = vadd.f32 %v795, %v1069
    %v1078 = vadd.f32 %v797, %v1071
    %v1079 = vadd.f32 %v1075, %v216
    %v1080 = vadd.f32 %v1076, %v220
    %v1081 = vadd.f32 %v1077, %v224
    %v1082 = vadd.f32 %v1078, %v228
    %v1083 = vld [vmem:[#allocation2] sm:$0xc]
    %v1084 = vld [vmem:[#allocation2 + $0x8] sm:$0xc]
    %v1085 = vld [vmem:[#allocation2 + $0x10] sm:$0xc]
    %v1086 = vld [vmem:[#allocation2 + $0x18] sm:$0xc]
    %v1091 = vrot.slane %v672, 6
    %v1092 = vrot.slane %v674, 6
    %v1093 = vrot.slane %v713, 6
    %v1094 = vrot.slane %v715, 6
    %v1099 = vadd.f32 %v1083, %v1091
    %v1100 = vadd.f32 %v1084, %v1092
    %v1101 = vadd.f32 %v1085, %v1093
    %v1102 = vadd.f32 %v1086, %v1094
    %vm1103 = vcmask 1041408
    %v1104 = vsel %vm1103, %v1079, %v1099
    %v1105 = vsel %vm1103, %v1080, %v1100
    %v1106 = vsel %vm1103, %v1081, %v1101
    %v1107 = vsel %vm1103, %v1082, %v1102
    %v1109 = vrot.slane %v249, 6
    %v1111 = vsel %vm1103, 0.0, %v1109
    %v1112 = vxor.u32 %v1104, 2147483648
    %v1113 = vmul.f32 %v1112, 1.442695
    %v1114 = vpow.pop %v1113
    %v1115 = vadd.f32 %v1114, 1.0
    %v1116 = vrcp.pop %v1115
    %v1117 = vmul.f32 1.0, %v1116
    %v1118 = vxor.u32 %v1105, 2147483648
    %v1119 = vmul.f32 %v1118, 1.442695
    %v1120 = vpow.pop %v1119
    %v1121 = vadd.f32 %v1120, 1.0
    %v1122 = vrcp.pop %v1121
    %v1123 = vmul.f32 1.0, %v1122
    %v1124 = vtanh.pop %v1106
    %v1125 = vxor.u32 %v1107, 2147483648
    %v1126 = vmul.f32 %v1125, 1.442695
    %v1127 = vpow.pop %v1126
    %v1128 = vadd.f32 %v1127, 1.0
    %v1129 = vrcp.pop %v1128
    %v1130 = vmul.f32 1.0, %v1129
    %v1131 = vmul.f32 %v1123, %v1111
    %v1132 = vmul.f32 %v1117, %v1124
    %v1133 = vadd.f32 %v1131, %v1132
    %v1134 = vtanh.pop %v1133
    %v1135 = vmul.f32 %v1130, %v1134
    %v1136 = vpack.c.bf16 %v1135, %v1135
    %v1138 = vrot.slane %v1136, 1
    %1140 = vmatprep.subr.bf16.mxu0 %v510
    %1141 = vmatpush1.bf16.msra.mxu0 %v509
    %1142 = vmatprep.subr.bf16.mxu0 %v518
    %1143 = vmatpush1.bf16.msra.mxu0 %v517
    %1144 = vmatprep.subr.bf16.mxu0 %v526
    %1145 = vmatpush1.bf16.msra.mxu0 %v525
    %1146 = vmatprep.subr.bf16.mxu0 %v534
    %1147 = vmatpush1.bf16.msra.mxu0 %v533
    %1148 = vmatprep.subr.bf16.mxu0 %v542
    %1149 = vmatpush1.bf16.msra.mxu0 %v541
    %1150 = vmatprep.subr.bf16.mxu0 %v550
    %1151 = vmatpush1.bf16.msra.mxu0 %v549
    %1152 = vmatprep.subr.bf16.mxu0 %v558
    %1153 = vmatpush1.bf16.msra.mxu0 %v557
    %1154 = vmatprep.subr.bf16.mxu0 %v566
    %1155 = vmatpush1.bf16.msra.mxu0 %v565
    %1156 = vmatprep.subr.bf16.mxu0 0
    %1157 = vmatpush1.bf16.msra.mxu0 0
    %1158 = vmatprep.subr.bf16.mxu0 0
    %1159 = vmatpush1.bf16.msra.mxu0 0
    %1160 = vmatprep.subr.bf16.mxu0 0
    %1161 = vmatpush1.bf16.msra.mxu0 0
    %1162 = vmatprep.subr.bf16.mxu0 0
    %1163 = vmatpush1.bf16.msra.mxu0 0
    %1164 = vmatprep.subr.bf16.mxu0 0
    %1165 = vmatpush1.bf16.msra.mxu0 0
    %1166 = vmatprep.subr.bf16.mxu0 0
    %1167 = vmatpush1.bf16.msra.mxu0 0
    %1168 = vmatprep.subr.bf16.mxu0 0
    %1169 = vmatpush1.bf16.msra.mxu0 0
    %1170 = vmatprep.subr.bf16.mxu0 0
    %1171 = vmatpush1.bf16.msra.mxu0 0
    %1172 = vmatprep.mubr.bf16.mxu0 0
    %1173 = vmatmul.mubr.bf16.gmra.mrb[0].mxu0 %v1138
    %v1174 = vpop.f32.mrb[0].mxu0
    %v1175 = vadd.f32 0.0, %v1174
    %v1176 = vpop.f32.mrb[0].mxu0
    %v1177 = vadd.f32 0.0, %v1176
    %v1178 = vpop.f32.mrb[0].mxu0
    %v1179 = vpop.f32.mrb[0].mxu0
    %1180 = vdwg.mxu0
    %1181 = vmatprep.subr.bf16.mxu0 %v512
    %1182 = vmatpush1.bf16.msra.mxu0 %v511
    %1183 = vmatprep.subr.bf16.mxu0 %v520
    %1184 = vmatpush1.bf16.msra.mxu0 %v519
    %1185 = vmatprep.subr.bf16.mxu0 %v528
    %1186 = vmatpush1.bf16.msra.mxu0 %v527
    %1187 = vmatprep.subr.bf16.mxu0 %v536
    %1188 = vmatpush1.bf16.msra.mxu0 %v535
    %1189 = vmatprep.subr.bf16.mxu0 %v544
    %1190 = vmatpush1.bf16.msra.mxu0 %v543
    %1191 = vmatprep.subr.bf16.mxu0 %v552
    %1192 = vmatpush1.bf16.msra.mxu0 %v551
    %1193 = vmatprep.subr.bf16.mxu0 %v560
    %1194 = vmatpush1.bf16.msra.mxu0 %v559
    %1195 = vmatprep.subr.bf16.mxu0 %v568
    %1196 = vmatpush1.bf16.msra.mxu0 %v567
    %1197 = vmatprep.subr.bf16.mxu0 0
    %1198 = vmatpush1.bf16.msra.mxu0 0
    %1199 = vmatprep.subr.bf16.mxu0 0
    %1200 = vmatpush1.bf16.msra.mxu0 0
    %1201 = vmatprep.subr.bf16.mxu0 0
    %1202 = vmatpush1.bf16.msra.mxu0 0
    %1203 = vmatprep.subr.bf16.mxu0 0
    %1204 = vmatpush1.bf16.msra.mxu0 0
    %1205 = vmatprep.subr.bf16.mxu0 0
    %1206 = vmatpush1.bf16.msra.mxu0 0
    %1207 = vmatprep.subr.bf16.mxu0 0
    %1208 = vmatpush1.bf16.msra.mxu0 0
    %1209 = vmatprep.subr.bf16.mxu0 0
    %1210 = vmatpush1.bf16.msra.mxu0 0
    %1211 = vmatprep.subr.bf16.mxu0 0
    %1212 = vmatpush1.bf16.msra.mxu0 0
    %1213 = vmatprep.mubr.bf16.mxu0 0
    %1214 = vmatmul.mubr.bf16.gmra.mrb[0].mxu0 %v1138
    %v1215 = vpop.f32.mrb[0].mxu0
    %v1216 = vadd.f32 0.0, %v1215
    %v1217 = vpop.f32.mrb[0].mxu0
    %v1218 = vadd.f32 0.0, %v1217
    %v1219 = vpop.f32.mrb[0].mxu0
    %v1220 = vpop.f32.mrb[0].mxu0
    %1221 = vdwg.mxu0
    %1222 = vmatprep.subr.bf16.mxu0 %v514
    %1223 = vmatpush1.bf16.msra.mxu0 %v513
    %1224 = vmatprep.subr.bf16.mxu0 %v522
    %1225 = vmatpush1.bf16.msra.mxu0 %v521
    %1226 = vmatprep.subr.bf16.mxu0 %v530
    %1227 = vmatpush1.bf16.msra.mxu0 %v529
    %1228 = vmatprep.subr.bf16.mxu0 %v538
    %1229 = vmatpush1.bf16.msra.mxu0 %v537
    %1230 = vmatprep.subr.bf16.mxu0 %v546
    %1231 = vmatpush1.bf16.msra.mxu0 %v545
    %1232 = vmatprep.subr.bf16.mxu0 %v554
    %1233 = vmatpush1.bf16.msra.mxu0 %v553
    %1234 = vmatprep.subr.bf16.mxu0 %v562
    %1235 = vmatpush1.bf16.msra.mxu0 %v561
    %1236 = vmatprep.subr.bf16.mxu0 %v570
    %1237 = vmatpush1.bf16.msra.mxu0 %v569
    %1238 = vmatprep.subr.bf16.mxu0 0
    %1239 = vmatpush1.bf16.msra.mxu0 0
    %1240 = vmatprep.subr.bf16.mxu0 0
    %1241 = vmatpush1.bf16.msra.mxu0 0
    %1242 = vmatprep.subr.bf16.mxu0 0
    %1243 = vmatpush1.bf16.msra.mxu0 0
    %1244 = vmatprep.subr.bf16.mxu0 0
    %1245 = vmatpush1.bf16.msra.mxu0 0
    %1246 = vmatprep.subr.bf16.mxu0 0
    %1247 = vmatpush1.bf16.msra.mxu0 0
    %1248 = vmatprep.subr.bf16.mxu0 0
    %1249 = vmatpush1.bf16.msra.mxu0 0
    %1250 = vmatprep.subr.bf16.mxu0 0
    %1251 = vmatpush1.bf16.msra.mxu0 0
    %1252 = vmatprep.subr.bf16.mxu0 0
    %1253 = vmatpush1.bf16.msra.mxu0 0
    %1254 = vmatprep.mubr.bf16.mxu0 0
    %1255 = vmatmul.mubr.bf16.gmra.mrb[0].mxu0 %v1138
    %v1256 = vpop.f32.mrb[0].mxu0
    %v1257 = vadd.f32 0.0, %v1256
    %v1258 = vpop.f32.mrb[0].mxu0
    %v1259 = vadd.f32 0.0, %v1258
    %v1260 = vpop.f32.mrb[0].mxu0
    %v1261 = vpop.f32.mrb[0].mxu0
    %1262 = vdwg.mxu0
    %1263 = vmatprep.subr.bf16.mxu0 %v516
    %1264 = vmatpush1.bf16.msra.mxu0 %v515
    %1265 = vmatprep.subr.bf16.mxu0 %v524
    %1266 = vmatpush1.bf16.msra.mxu0 %v523
    %1267 = vmatprep.subr.bf16.mxu0 %v532
    %1268 = vmatpush1.bf16.msra.mxu0 %v531
    %1269 = vmatprep.subr.bf16.mxu0 %v540
    %1270 = vmatpush1.bf16.msra.mxu0 %v539
    %1271 = vmatprep.subr.bf16.mxu0 %v548
    %1272 = vmatpush1.bf16.msra.mxu0 %v547
    %1273 = vmatprep.subr.bf16.mxu0 %v556
    %1274 = vmatpush1.bf16.msra.mxu0 %v555
    %1275 = vmatprep.subr.bf16.mxu0 %v564
    %1276 = vmatpush1.bf16.msra.mxu0 %v563
    %1277 = vmatprep.subr.bf16.mxu0 %v572
    %1278 = vmatpush1.bf16.msra.mxu0 %v571
    %1279 = vmatprep.subr.bf16.mxu0 0
    %1280 = vmatpush1.bf16.msra.mxu0 0
    %1281 = vmatprep.subr.bf16.mxu0 0
    %1282 = vmatpush1.bf16.msra.mxu0 0
    %1283 = vmatprep.subr.bf16.mxu0 0
    %1284 = vmatpush1.bf16.msra.mxu0 0
    %1285 = vmatprep.subr.bf16.mxu0 0
    %1286 = vmatpush1.bf16.msra.mxu0 0
    %1287 = vmatprep.subr.bf16.mxu0 0
    %1288 = vmatpush1.bf16.msra.mxu0 0
    %1289 = vmatprep.subr.bf16.mxu0 0
    %1290 = vmatpush1.bf16.msra.mxu0 0
    %1291 = vmatprep.subr.bf16.mxu0 0
    %1292 = vmatpush1.bf16.msra.mxu0 0
    %1293 = vmatprep.subr.bf16.mxu0 0
    %1294 = vmatpush1.bf16.msra.mxu0 0
    %1295 = vmatprep.mubr.bf16.mxu0 0
    %1296 = vmatmul.mubr.bf16.gmra.mrb[0].mxu0 %v1138
    %v1297 = vpop.f32.mrb[0].mxu0
    %v1298 = vadd.f32 0.0, %v1297
    %v1299 = vpop.f32.mrb[0].mxu0
    %v1300 = vadd.f32 0.0, %v1299
    %v1301 = vpop.f32.mrb[0].mxu0
    %v1302 = vpop.f32.mrb[0].mxu0
    %1303 = vdwg.mxu0
    %1304 = vmatprep.subr.bf16.mxu0 %v930
    %1305 = vmatpush1.bf16.msra.mxu0 %v929
    %1306 = vmatprep.subr.bf16.mxu0 %v934
    %1307 = vmatpush1.bf16.msra.mxu0 %v933
    %1308 = vmatprep.subr.bf16.mxu0 %v938
    %1309 = vmatpush1.bf16.msra.mxu0 %v937
    %1310 = vmatprep.subr.bf16.mxu0 %v942
    %1311 = vmatpush1.bf16.msra.mxu0 %v941
    %1312 = vmatprep.subr.bf16.mxu0 %v946
    %1313 = vmatpush1.bf16.msra.mxu0 %v945
    %1314 = vmatprep.subr.bf16.mxu0 %v950
    %1315 = vmatpush1.bf16.msra.mxu0 %v949
    %1316 = vmatprep.subr.bf16.mxu0 %v954
    %1317 = vmatpush1.bf16.msra.mxu0 %v953
    %1318 = vmatprep.subr.bf16.mxu0 %v958
    %1319 = vmatpush1.bf16.msra.mxu0 %v957
    %1320 = vmatprep.subr.bf16.mxu0 0
    %1321 = vmatpush1.bf16.msra.mxu0 0
    %1322 = vmatprep.subr.bf16.mxu0 0
    %1323 = vmatpush1.bf16.msra.mxu0 0
    %1324 = vmatprep.subr.bf16.mxu0 0
    %1325 = vmatpush1.bf16.msra.mxu0 0
    %1326 = vmatprep.subr.bf16.mxu0 0
    %1327 = vmatpush1.bf16.msra.mxu0 0
    %1328 = vmatprep.subr.bf16.mxu0 0
    %1329 = vmatpush1.bf16.msra.mxu0 0
    %1330 = vmatprep.subr.bf16.mxu0 0
    %1331 = vmatpush1.bf16.msra.mxu0 0
    %1332 = vmatprep.subr.bf16.mxu0 0
    %1333 = vmatpush1.bf16.msra.mxu0 0
    %1334 = vmatprep.subr.bf16.mxu0 0
    %1335 = vmatpush1.bf16.msra.mxu0 0
    %1336 = vmatprep.mubr.bf16.mxu0 0
    %1337 = vmatmul.mubr.bf16.gmra.mrb[0].mxu0 %v1136
    %v1338 = vpop.f32.mrb[0].mxu0
    %v1339 = vadd.f32 0.0, %v1338
    %v1340 = vpop.f32.mrb[0].mxu0
    %v1341 = vadd.f32 0.0, %v1340
    %v1342 = vpop.f32.mrb[0].mxu0
    %v1343 = vpop.f32.mrb[0].mxu0
    %1344 = vdwg.mxu0
    %1345 = vmatprep.subr.bf16.mxu0 %v932
    %1346 = vmatpush1.bf16.msra.mxu0 %v931
    %1347 = vmatprep.subr.bf16.mxu0 %v936
    %1348 = vmatpush1.bf16.msra.mxu0 %v935
    %1349 = vmatprep.subr.bf16.mxu0 %v940
    %1350 = vmatpush1.bf16.msra.mxu0 %v939
    %1351 = vmatprep.subr.bf16.mxu0 %v944
    %1352 = vmatpush1.bf16.msra.mxu0 %v943
    %1353 = vmatprep.subr.bf16.mxu0 %v948
    %1354 = vmatpush1.bf16.msra.mxu0 %v947
    %1355 = vmatprep.subr.bf16.mxu0 %v952
    %1356 = vmatpush1.bf16.msra.mxu0 %v951
    %1357 = vmatprep.subr.bf16.mxu0 %v956
    %1358 = vmatpush1.bf16.msra.mxu0 %v955
    %1359 = vmatprep.subr.bf16.mxu0 %v960
    %1360 = vmatpush1.bf16.msra.mxu0 %v959
    %1361 = vmatprep.subr.bf16.mxu0 0
    %1362 = vmatpush1.bf16.msra.mxu0 0
    %1363 = vmatprep.subr.bf16.mxu0 0
    %1364 = vmatpush1.bf16.msra.mxu0 0
    %1365 = vmatprep.subr.bf16.mxu0 0
    %1366 = vmatpush1.bf16.msra.mxu0 0
    %1367 = vmatprep.subr.bf16.mxu0 0
    %1368 = vmatpush1.bf16.msra.mxu0 0
    %1369 = vmatprep.subr.bf16.mxu0 0
    %1370 = vmatpush1.bf16.msra.mxu0 0
    %1371 = vmatprep.subr.bf16.mxu0 0
    %1372 = vmatpush1.bf16.msra.mxu0 0
    %1373 = vmatprep.subr.bf16.mxu0 0
    %1374 = vmatpush1.bf16.msra.mxu0 0
    %1375 = vmatprep.subr.bf16.mxu0 0
    %1376 = vmatpush1.bf16.msra.mxu0 0
    %1377 = vmatprep.mubr.bf16.mxu0 0
    %1378 = vmatmul.mubr.bf16.gmra.mrb[0].mxu0 %v1136
    %v1379 = vpop.f32.mrb[0].mxu0
    %v1380 = vadd.f32 0.0, %v1379
    %v1381 = vpop.f32.mrb[0].mxu0
    %v1382 = vadd.f32 0.0, %v1381
    %v1383 = vpop.f32.mrb[0].mxu0
    %v1384 = vpop.f32.mrb[0].mxu0
    %1385 = vdwg.mxu0
    %v1386 = vadd.f32 %v1257, %v1339
    %v1387 = vadd.f32 %v1259, %v1341
    %v1388 = vadd.f32 %v1298, %v1380
    %v1389 = vadd.f32 %v1300, %v1382
    %v1390 = vadd.f32 %v1386, %v216
    %v1391 = vadd.f32 %v1387, %v220
    %v1392 = vadd.f32 %v1388, %v224
    %v1393 = vadd.f32 %v1389, %v228
    %v1394 = vld [vmem:[#allocation2] sm:$0x30]
    %v1395 = vld [vmem:[#allocation2 + $0x8] sm:$0x30]
    %v1396 = vld [vmem:[#allocation2 + $0x10] sm:$0x30]
    %v1397 = vld [vmem:[#allocation2 + $0x18] sm:$0x30]
    %v1402 = vrot.slane %v1175, 4
    %v1403 = vrot.slane %v1177, 4
    %v1404 = vrot.slane %v1216, 4
    %v1405 = vrot.slane %v1218, 4
    %v1410 = vadd.f32 %v1394, %v1402
    %v1411 = vadd.f32 %v1395, %v1403
    %v1412 = vadd.f32 %v1396, %v1404
    %v1413 = vadd.f32 %v1397, %v1405
    %v1418 = vrot.slane %v1410, 2
    %v1419 = vrot.slane %v1411, 2
    %v1420 = vrot.slane %v1412, 2
    %v1421 = vrot.slane %v1413, 2
    %v1426 = vsel %vm1103, %v1390, %v1418
    %v1427 = vsel %vm1103, %v1391, %v1419
    %v1428 = vsel %vm1103, %v1392, %v1420
    %v1429 = vsel %vm1103, %v1393, %v1421
    %v1430 = vxor.u32 %v1426, 2147483648
    %v1431 = vmul.f32 %v1430, 1.442695
    %v1432 = vpow.pop %v1431
    %v1433 = vadd.f32 %v1432, 1.0
    %v1434 = vrcp.pop %v1433
    %v1435 = vmul.f32 1.0, %v1434
    %v1436 = vxor.u32 %v1427, 2147483648
    %v1437 = vmul.f32 %v1436, 1.442695
    %v1438 = vpow.pop %v1437
    %v1439 = vadd.f32 %v1438, 1.0
    %v1440 = vrcp.pop %v1439
    %v1441 = vmul.f32 1.0, %v1440
    %v1442 = vtanh.pop %v1428
    %v1443 = vxor.u32 %v1429, 2147483648
    %v1444 = vmul.f32 %v1443, 1.442695
    %v1445 = vpow.pop %v1444
    %v1446 = vadd.f32 %v1445, 1.0
    %v1447 = vrcp.pop %v1446
    %v1448 = vmul.f32 1.0, %v1447
    %v1449 = vmul.f32 %v1441, %v1133
    %v1450 = vmul.f32 %v1435, %v1442
    %v1451 = vadd.f32 %v1449, %v1450
    %v1452 = vtanh.pop %v1451
    %v1453 = vmul.f32 %v1448, %v1452
    %v1454 = vpack.c.bf16 %v1453, %v1453
    %v1456 = vrot.slane %v1454, 1
    %1458 = vmatprep.subr.bf16.mxu0 %v510
    %1459 = vmatpush1.bf16.msra.mxu0 %v509
    %1460 = vmatprep.subr.bf16.mxu0 %v518
    %1461 = vmatpush1.bf16.msra.mxu0 %v517
    %1462 = vmatprep.subr.bf16.mxu0 %v526
    %1463 = vmatpush1.bf16.msra.mxu0 %v525
    %1464 = vmatprep.subr.bf16.mxu0 %v534
    %1465 = vmatpush1.bf16.msra.mxu0 %v533
    %1466 = vmatprep.subr.bf16.mxu0 %v542
    %1467 = vmatpush1.bf16.msra.mxu0 %v541
    %1468 = vmatprep.subr.bf16.mxu0 %v550
    %1469 = vmatpush1.bf16.msra.mxu0 %v549
    %1470 = vmatprep.subr.bf16.mxu0 %v558
    %1471 = vmatpush1.bf16.msra.mxu0 %v557
    %1472 = vmatprep.subr.bf16.mxu0 %v566
    %1473 = vmatpush1.bf16.msra.mxu0 %v565
    %1474 = vmatprep.subr.bf16.mxu0 0
    %1475 = vmatpush1.bf16.msra.mxu0 0
    %1476 = vmatprep.subr.bf16.mxu0 0
    %1477 = vmatpush1.bf16.msra.mxu0 0
    %1478 = vmatprep.subr.bf16.mxu0 0
    %1479 = vmatpush1.bf16.msra.mxu0 0
    %1480 = vmatprep.subr.bf16.mxu0 0
    %1481 = vmatpush1.bf16.msra.mxu0 0
    %1482 = vmatprep.subr.bf16.mxu0 0
    %1483 = vmatpush1.bf16.msra.mxu0 0
    %1484 = vmatprep.subr.bf16.mxu0 0
    %1485 = vmatpush1.bf16.msra.mxu0 0
    %1486 = vmatprep.subr.bf16.mxu0 0
    %1487 = vmatpush1.bf16.msra.mxu0 0
    %1488 = vmatprep.subr.bf16.mxu0 0
    %1489 = vmatpush1.bf16.msra.mxu0 0
    %1490 = vmatprep.mubr.bf16.mxu0 0
    %1491 = vmatmul.mubr.bf16.gmra.mrb[0].mxu0 %v1456
    %v1492 = vpop.f32.mrb[0].mxu0
    %v1493 = vadd.f32 0.0, %v1492
    %v1494 = vpop.f32.mrb[0].mxu0
    %v1495 = vadd.f32 0.0, %v1494
    %v1496 = vpop.f32.mrb[0].mxu0
    %v1497 = vpop.f32.mrb[0].mxu0
    %1498 = vdwg.mxu0
    %1499 = vmatprep.subr.bf16.mxu0 %v512
    %1500 = vmatpush1.bf16.msra.mxu0 %v511
    %1501 = vmatprep.subr.bf16.mxu0 %v520
    %1502 = vmatpush1.bf16.msra.mxu0 %v519
    %1503 = vmatprep.subr.bf16.mxu0 %v528
    %1504 = vmatpush1.bf16.msra.mxu0 %v527
    %1505 = vmatprep.subr.bf16.mxu0 %v536
    %1506 = vmatpush1.bf16.msra.mxu0 %v535
    %1507 = vmatprep.subr.bf16.mxu0 %v544
    %1508 = vmatpush1.bf16.msra.mxu0 %v543
    %1509 = vmatprep.subr.bf16.mxu0 %v552
    %1510 = vmatpush1.bf16.msra.mxu0 %v551
    %1511 = vmatprep.subr.bf16.mxu0 %v560
    %1512 = vmatpush1.bf16.msra.mxu0 %v559
    %1513 = vmatprep.subr.bf16.mxu0 %v568
    %1514 = vmatpush1.bf16.msra.mxu0 %v567
    %1515 = vmatprep.subr.bf16.mxu0 0
    %1516 = vmatpush1.bf16.msra.mxu0 0
    %1517 = vmatprep.subr.bf16.mxu0 0
    %1518 = vmatpush1.bf16.msra.mxu0 0
    %1519 = vmatprep.subr.bf16.mxu0 0
    %1520 = vmatpush1.bf16.msra.mxu0 0
    %1521 = vmatprep.subr.bf16.mxu0 0
    %1522 = vmatpush1.bf16.msra.mxu0 0
    %1523 = vmatprep.subr.bf16.mxu0 0
    %1524 = vmatpush1.bf16.msra.mxu0 0
    %1525 = vmatprep.subr.bf16.mxu0 0
    %1526 = vmatpush1.bf16.msra.mxu0 0
    %1527 = vmatprep.subr.bf16.mxu0 0
    %1528 = vmatpush1.bf16.msra.mxu0 0
    %1529 = vmatprep.subr.bf16.mxu0 0
    %1530 = vmatpush1.bf16.msra.mxu0 0
    %1531 = vmatprep.mubr.bf16.mxu0 0
    %1532 = vmatmul.mubr.bf16.gmra.mrb[0].mxu0 %v1456
    %v1533 = vpop.f32.mrb[0].mxu0
    %v1534 = vadd.f32 0.0, %v1533
    %v1535 = vpop.f32.mrb[0].mxu0
    %v1536 = vadd.f32 0.0, %v1535
    %v1537 = vpop.f32.mrb[0].mxu0
    %v1538 = vpop.f32.mrb[0].mxu0
    %1539 = vdwg.mxu0
    %1540 = vmatprep.subr.bf16.mxu0 %v514
    %1541 = vmatpush1.bf16.msra.mxu0 %v513
    %1542 = vmatprep.subr.bf16.mxu0 %v522
    %1543 = vmatpush1.bf16.msra.mxu0 %v521
    %1544 = vmatprep.subr.bf16.mxu0 %v530
    %1545 = vmatpush1.bf16.msra.mxu0 %v529
    %1546 = vmatprep.subr.bf16.mxu0 %v538
    %1547 = vmatpush1.bf16.msra.mxu0 %v537
    %1548 = vmatprep.subr.bf16.mxu0 %v546
    %1549 = vmatpush1.bf16.msra.mxu0 %v545
    %1550 = vmatprep.subr.bf16.mxu0 %v554
    %1551 = vmatpush1.bf16.msra.mxu0 %v553
    %1552 = vmatprep.subr.bf16.mxu0 %v562
    %1553 = vmatpush1.bf16.msra.mxu0 %v561
    %1554 = vmatprep.subr.bf16.mxu0 %v570
    %1555 = vmatpush1.bf16.msra.mxu0 %v569
    %1556 = vmatprep.subr.bf16.mxu0 0
    %1557 = vmatpush1.bf16.msra.mxu0 0
    %1558 = vmatprep.subr.bf16.mxu0 0
    %1559 = vmatpush1.bf16.msra.mxu0 0
    %1560 = vmatprep.subr.bf16.mxu0 0
    %1561 = vmatpush1.bf16.msra.mxu0 0
    %1562 = vmatprep.subr.bf16.mxu0 0
    %1563 = vmatpush1.bf16.msra.mxu0 0
    %1564 = vmatprep.subr.bf16.mxu0 0
    %1565 = vmatpush1.bf16.msra.mxu0 0
    %1566 = vmatprep.subr.bf16.mxu0 0
    %1567 = vmatpush1.bf16.msra.mxu0 0
    %1568 = vmatprep.subr.bf16.mxu0 0
    %1569 = vmatpush1.bf16.msra.mxu0 0
    %1570 = vmatprep.subr.bf16.mxu0 0
    %1571 = vmatpush1.bf16.msra.mxu0 0
    %1572 = vmatprep.mubr.bf16.mxu0 0
    %1573 = vmatmul.mubr.bf16.gmra.mrb[0].mxu0 %v1456
    %v1574 = vpop.f32.mrb[0].mxu0
    %v1575 = vadd.f32 0.0, %v1574
    %v1576 = vpop.f32.mrb[0].mxu0
    %v1577 = vadd.f32 0.0, %v1576
    %v1578 = vpop.f32.mrb[0].mxu0
    %v1579 = vpop.f32.mrb[0].mxu0
    %1580 = vdwg.mxu0
    %1581 = vmatprep.subr.bf16.mxu0 %v516
    %1582 = vmatpush1.bf16.msra.mxu0 %v515
    %1583 = vmatprep.subr.bf16.mxu0 %v524
    %1584 = vmatpush1.bf16.msra.mxu0 %v523
    %1585 = vmatprep.subr.bf16.mxu0 %v532
    %1586 = vmatpush1.bf16.msra.mxu0 %v531
    %1587 = vmatprep.subr.bf16.mxu0 %v540
    %1588 = vmatpush1.bf16.msra.mxu0 %v539
    %1589 = vmatprep.subr.bf16.mxu0 %v548
    %1590 = vmatpush1.bf16.msra.mxu0 %v547
    %1591 = vmatprep.subr.bf16.mxu0 %v556
    %1592 = vmatpush1.bf16.msra.mxu0 %v555
    %1593 = vmatprep.subr.bf16.mxu0 %v564
    %1594 = vmatpush1.bf16.msra.mxu0 %v563
    %1595 = vmatprep.subr.bf16.mxu0 %v572
    %1596 = vmatpush1.bf16.msra.mxu0 %v571
    %1597 = vmatprep.subr.bf16.mxu0 0
    %1598 = vmatpush1.bf16.msra.mxu0 0
    %1599 = vmatprep.subr.bf16.mxu0 0
    %1600 = vmatpush1.bf16.msra.mxu0 0
    %1601 = vmatprep.subr.bf16.mxu0 0
    %1602 = vmatpush1.bf16.msra.mxu0 0
    %1603 = vmatprep.subr.bf16.mxu0 0
    %1604 = vmatpush1.bf16.msra.mxu0 0
    %1605 = vmatprep.subr.bf16.mxu0 0
    %1606 = vmatpush1.bf16.msra.mxu0 0
    %1607 = vmatprep.subr.bf16.mxu0 0
    %1608 = vmatpush1.bf16.msra.mxu0 0
    %1609 = vmatprep.subr.bf16.mxu0 0
    %1610 = vmatpush1.bf16.msra.mxu0 0
    %1611 = vmatprep.subr.bf16.mxu0 0
    %1612 = vmatpush1.bf16.msra.mxu0 0
    %1613 = vmatprep.mubr.bf16.mxu0 0
    %1614 = vmatmul.mubr.bf16.gmra.mrb[0].mxu0 %v1456
    %v1615 = vpop.f32.mrb[0].mxu0
    %v1616 = vadd.f32 0.0, %v1615
    %v1617 = vpop.f32.mrb[0].mxu0
    %v1618 = vadd.f32 0.0, %v1617
    %v1619 = vpop.f32.mrb[0].mxu0
    %v1620 = vpop.f32.mrb[0].mxu0
    %1621 = vdwg.mxu0
    %1622 = vmatprep.subr.bf16.mxu0 %v930
    %1623 = vmatpush1.bf16.msra.mxu0 %v929
    %1624 = vmatprep.subr.bf16.mxu0 %v934
    %1625 = vmatpush1.bf16.msra.mxu0 %v933
    %1626 = vmatprep.subr.bf16.mxu0 %v938
    %1627 = vmatpush1.bf16.msra.mxu0 %v937
    %1628 = vmatprep.subr.bf16.mxu0 %v942
    %1629 = vmatpush1.bf16.msra.mxu0 %v941
    %1630 = vmatprep.subr.bf16.mxu0 %v946
    %1631 = vmatpush1.bf16.msra.mxu0 %v945
    %1632 = vmatprep.subr.bf16.mxu0 %v950
    %1633 = vmatpush1.bf16.msra.mxu0 %v949
    %1634 = vmatprep.subr.bf16.mxu0 %v954
    %1635 = vmatpush1.bf16.msra.mxu0 %v953
    %1636 = vmatprep.subr.bf16.mxu0 %v958
    %1637 = vmatpush1.bf16.msra.mxu0 %v957
    %1638 = vmatprep.subr.bf16.mxu0 0
    %1639 = vmatpush1.bf16.msra.mxu0 0
    %1640 = vmatprep.subr.bf16.mxu0 0
    %1641 = vmatpush1.bf16.msra.mxu0 0
    %1642 = vmatprep.subr.bf16.mxu0 0
    %1643 = vmatpush1.bf16.msra.mxu0 0
    %1644 = vmatprep.subr.bf16.mxu0 0
    %1645 = vmatpush1.bf16.msra.mxu0 0
    %1646 = vmatprep.subr.bf16.mxu0 0
    %1647 = vmatpush1.bf16.msra.mxu0 0
    %1648 = vmatprep.subr.bf16.mxu0 0
    %1649 = vmatpush1.bf16.msra.mxu0 0
    %1650 = vmatprep.subr.bf16.mxu0 0
    %1651 = vmatpush1.bf16.msra.mxu0 0
    %1652 = vmatprep.subr.bf16.mxu0 0
    %1653 = vmatpush1.bf16.msra.mxu0 0
    %1654 = vmatprep.mubr.bf16.mxu0 0
    %1655 = vmatmul.mubr.bf16.gmra.mrb[0].mxu0 %v1454
    %v1656 = vpop.f32.mrb[0].mxu0
    %v1657 = vadd.f32 0.0, %v1656
    %v1658 = vpop.f32.mrb[0].mxu0
    %v1659 = vadd.f32 0.0, %v1658
    %v1660 = vpop.f32.mrb[0].mxu0
    %v1661 = vpop.f32.mrb[0].mxu0
    %1662 = vdwg.mxu0
    %1663 = vmatprep.subr.bf16.mxu0 %v932
    %1664 = vmatpush1.bf16.msra.mxu0 %v931
    %1665 = vmatprep.subr.bf16.mxu0 %v936
    %1666 = vmatpush1.bf16.msra.mxu0 %v935
    %1667 = vmatprep.subr.bf16.mxu0 %v940
    %1668 = vmatpush1.bf16.msra.mxu0 %v939
    %1669 = vmatprep.subr.bf16.mxu0 %v944
    %1670 = vmatpush1.bf16.msra.mxu0 %v943
    %1671 = vmatprep.subr.bf16.mxu0 %v948
    %1672 = vmatpush1.bf16.msra.mxu0 %v947
    %1673 = vmatprep.subr.bf16.mxu0 %v952
    %1674 = vmatpush1.bf16.msra.mxu0 %v951
    %1675 = vmatprep.subr.bf16.mxu0 %v956
    %1676 = vmatpush1.bf16.msra.mxu0 %v955
    %1677 = vmatprep.subr.bf16.mxu0 %v960
    %1678 = vmatpush1.bf16.msra.mxu0 %v959
    %1679 = vmatprep.subr.bf16.mxu0 0
    %1680 = vmatpush1.bf16.msra.mxu0 0
    %1681 = vmatprep.subr.bf16.mxu0 0
    %1682 = vmatpush1.bf16.msra.mxu0 0
    %1683 = vmatprep.subr.bf16.mxu0 0
    %1684 = vmatpush1.bf16.msra.mxu0 0
    %1685 = vmatprep.subr.bf16.mxu0 0
    %1686 = vmatpush1.bf16.msra.mxu0 0
    %1687 = vmatprep.subr.bf16.mxu0 0
    %1688 = vmatpush1.bf16.msra.mxu0 0
    %1689 = vmatprep.subr.bf16.mxu0 0
    %1690 = vmatpush1.bf16.msra.mxu0 0
    %1691 = vmatprep.subr.bf16.mxu0 0
    %1692 = vmatpush1.bf16.msra.mxu0 0
    %1693 = vmatprep.subr.bf16.mxu0 0
    %1694 = vmatpush1.bf16.msra.mxu0 0
    %1695 = vmatprep.mubr.bf16.mxu0 0
    %1696 = vmatmul.mubr.bf16.gmra.mrb[0].mxu0 %v1454
    %v1697 = vpop.f32.mrb[0].mxu0
    %v1698 = vadd.f32 0.0, %v1697
    %v1699 = vpop.f32.mrb[0].mxu0
    %v1700 = vadd.f32 0.0, %v1699
    %v1701 = vpop.f32.mrb[0].mxu0
    %v1702 = vpop.f32.mrb[0].mxu0
    %1703 = vdwg.mxu0
    %v1704 = vadd.f32 %v1575, %v1657
    %v1705 = vadd.f32 %v1577, %v1659
    %v1706 = vadd.f32 %v1616, %v1698
    %v1707 = vadd.f32 %v1618, %v1700
    %v1708 = vadd.f32 %v1704, %v216
    %v1709 = vadd.f32 %v1705, %v220
    %v1710 = vadd.f32 %v1706, %v224
    %v1711 = vadd.f32 %v1707, %v228
    %v1712 = vld [vmem:[#allocation2] sm:$0xc0]
    %v1713 = vld [vmem:[#allocation2 + $0x8] sm:$0xc0]
    %v1714 = vld [vmem:[#allocation2 + $0x10] sm:$0xc0]
    %v1715 = vld [vmem:[#allocation2 + $0x18] sm:$0xc0]
    %v1720 = vrot.slane %v1493, 2
    %v1721 = vrot.slane %v1495, 2
    %v1722 = vrot.slane %v1534, 2
    %v1723 = vrot.slane %v1536, 2
    %v1728 = vadd.f32 %v1712, %v1720
    %v1729 = vadd.f32 %v1713, %v1721
    %v1730 = vadd.f32 %v1714, %v1722
    %v1731 = vadd.f32 %v1715, %v1723
    %v1736 = vrot.slane %v1728, 4
    %v1737 = vrot.slane %v1729, 4
    %v1738 = vrot.slane %v1730, 4
    %v1739 = vrot.slane %v1731, 4
    %v1744 = vsel %vm1103, %v1708, %v1736
    %v1745 = vsel %vm1103, %v1709, %v1737
    %v1746 = vsel %vm1103, %v1710, %v1738
    %v1747 = vsel %vm1103, %v1711, %v1739
    %v1748 = vxor.u32 %v1744, 2147483648
    %v1749 = vmul.f32 %v1748, 1.442695
    %v1750 = vpow.pop %v1749
    %v1751 = vadd.f32 %v1750, 1.0
    %v1752 = vrcp.pop %v1751
    %v1753 = vmul.f32 1.0, %v1752
    %v1754 = vxor.u32 %v1745, 2147483648
    %v1755 = vmul.f32 %v1754, 1.442695
    %v1756 = vpow.pop %v1755
    %v1757 = vadd.f32 %v1756, 1.0
    %v1758 = vrcp.pop %v1757
    %v1759 = vmul.f32 1.0, %v1758
    %v1760 = vtanh.pop %v1746
    %v1761 = vxor.u32 %v1747, 2147483648
    %v1762 = vmul.f32 %v1761, 1.442695
    %v1763 = vpow.pop %v1762
    %v1764 = vadd.f32 %v1763, 1.0
    %v1765 = vrcp.pop %v1764
    %v1766 = vmul.f32 1.0, %v1765
    %v1767 = vmul.f32 %v1759, %v1451
    %v1768 = vmul.f32 %v1753, %v1760
    %v1769 = vadd.f32 %v1767, %v1768
    %v1770 = vtanh.pop %v1769
    %v1771 = vmul.f32 %v1766, %v1770
    %v1772 = vpack.c.bf16 %v1771, %v1771
    %v1774 = vrot.slane %v1772, 1
    %1776 = vmatprep.subr.bf16.mxu0 %v510
    %1777 = vmatpush1.bf16.msra.mxu0 %v509
    %1778 = vmatprep.subr.bf16.mxu0 %v518
    %1779 = vmatpush1.bf16.msra.mxu0 %v517
    %1780 = vmatprep.subr.bf16.mxu0 %v526
    %1781 = vmatpush1.bf16.msra.mxu0 %v525
    %1782 = vmatprep.subr.bf16.mxu0 %v534
    %1783 = vmatpush1.bf16.msra.mxu0 %v533
    %1784 = vmatprep.subr.bf16.mxu0 %v542
    %1785 = vmatpush1.bf16.msra.mxu0 %v541
    %1786 = vmatprep.subr.bf16.mxu0 %v550
    %1787 = vmatpush1.bf16.msra.mxu0 %v549
    %1788 = vmatprep.subr.bf16.mxu0 %v558
    %1789 = vmatpush1.bf16.msra.mxu0 %v557
    %1790 = vmatprep.subr.bf16.mxu0 %v566
    %1791 = vmatpush1.bf16.msra.mxu0 %v565
    %1792 = vmatprep.subr.bf16.mxu0 0
    %1793 = vmatpush1.bf16.msra.mxu0 0
    %1794 = vmatprep.subr.bf16.mxu0 0
    %1795 = vmatpush1.bf16.msra.mxu0 0
    %1796 = vmatprep.subr.bf16.mxu0 0
    %1797 = vmatpush1.bf16.msra.mxu0 0
    %1798 = vmatprep.subr.bf16.mxu0 0
    %1799 = vmatpush1.bf16.msra.mxu0 0
    %1800 = vmatprep.subr.bf16.mxu0 0
    %1801 = vmatpush1.bf16.msra.mxu0 0
    %1802 = vmatprep.subr.bf16.mxu0 0
    %1803 = vmatpush1.bf16.msra.mxu0 0
    %1804 = vmatprep.subr.bf16.mxu0 0
    %1805 = vmatpush1.bf16.msra.mxu0 0
    %1806 = vmatprep.subr.bf16.mxu0 0
    %1807 = vmatpush1.bf16.msra.mxu0 0
    %1808 = vmatprep.mubr.bf16.mxu0 0
    %1809 = vmatmul.mubr.bf16.gmra.mrb[0].mxu0 %v1774
    %v1810 = vpop.f32.mrb[0].mxu0
    %v1811 = vadd.f32 0.0, %v1810
    %v1812 = vpop.f32.mrb[0].mxu0
    %v1813 = vadd.f32 0.0, %v1812
    %v1814 = vpop.f32.mrb[0].mxu0
    %v1815 = vpop.f32.mrb[0].mxu0
    %1816 = vdwg.mxu0
    %1817 = vmatprep.subr.bf16.mxu0 %v512
    %1818 = vmatpush1.bf16.msra.mxu0 %v511
    %1819 = vmatprep.subr.bf16.mxu0 %v520
    %1820 = vmatpush1.bf16.msra.mxu0 %v519
    %1821 = vmatprep.subr.bf16.mxu0 %v528
    %1822 = vmatpush1.bf16.msra.mxu0 %v527
    %1823 = vmatprep.subr.bf16.mxu0 %v536
    %1824 = vmatpush1.bf16.msra.mxu0 %v535
    %1825 = vmatprep.subr.bf16.mxu0 %v544
    %1826 = vmatpush1.bf16.msra.mxu0 %v543
    %1827 = vmatprep.subr.bf16.mxu0 %v552
    %1828 = vmatpush1.bf16.msra.mxu0 %v551
    %1829 = vmatprep.subr.bf16.mxu0 %v560
    %1830 = vmatpush1.bf16.msra.mxu0 %v559
    %1831 = vmatprep.subr.bf16.mxu0 %v568
    %1832 = vmatpush1.bf16.msra.mxu0 %v567
    %1833 = vmatprep.subr.bf16.mxu0 0
    %1834 = vmatpush1.bf16.msra.mxu0 0
    %1835 = vmatprep.subr.bf16.mxu0 0
    %1836 = vmatpush1.bf16.msra.mxu0 0
    %1837 = vmatprep.subr.bf16.mxu0 0
    %1838 = vmatpush1.bf16.msra.mxu0 0
    %1839 = vmatprep.subr.bf16.mxu0 0
    %1840 = vmatpush1.bf16.msra.mxu0 0
    %1841 = vmatprep.subr.bf16.mxu0 0
    %1842 = vmatpush1.bf16.msra.mxu0 0
    %1843 = vmatprep.subr.bf16.mxu0 0
    %1844 = vmatpush1.bf16.msra.mxu0 0
    %1845 = vmatprep.subr.bf16.mxu0 0
    %1846 = vmatpush1.bf16.msra.mxu0 0
    %1847 = vmatprep.subr.bf16.mxu0 0
    %1848 = vmatpush1.bf16.msra.mxu0 0
    %1849 = vmatprep.mubr.bf16.mxu0 0
    %1850 = vmatmul.mubr.bf16.gmra.mrb[0].mxu0 %v1774
    %v1851 = vpop.f32.mrb[0].mxu0
    %v1852 = vadd.f32 0.0, %v1851
    %v1853 = vpop.f32.mrb[0].mxu0
    %v1854 = vadd.f32 0.0, %v1853
    %v1855 = vpop.f32.mrb[0].mxu0
    %v1856 = vpop.f32.mrb[0].mxu0
    %1857 = vdwg.mxu0
    %1858 = vmatprep.subr.bf16.mxu0 %v514
    %1859 = vmatpush1.bf16.msra.mxu0 %v513
    %1860 = vmatprep.subr.bf16.mxu0 %v522
    %1861 = vmatpush1.bf16.msra.mxu0 %v521
    %1862 = vmatprep.subr.bf16.mxu0 %v530
    %1863 = vmatpush1.bf16.msra.mxu0 %v529
    %1864 = vmatprep.subr.bf16.mxu0 %v538
    %1865 = vmatpush1.bf16.msra.mxu0 %v537
    %1866 = vmatprep.subr.bf16.mxu0 %v546
    %1867 = vmatpush1.bf16.msra.mxu0 %v545
    %1868 = vmatprep.subr.bf16.mxu0 %v554
    %1869 = vmatpush1.bf16.msra.mxu0 %v553
    %1870 = vmatprep.subr.bf16.mxu0 %v562
    %1871 = vmatpush1.bf16.msra.mxu0 %v561
    %1872 = vmatprep.subr.bf16.mxu0 %v570
    %1873 = vmatpush1.bf16.msra.mxu0 %v569
    %1874 = vmatprep.subr.bf16.mxu0 0
    %1875 = vmatpush1.bf16.msra.mxu0 0
    %1876 = vmatprep.subr.bf16.mxu0 0
    %1877 = vmatpush1.bf16.msra.mxu0 0
    %1878 = vmatprep.subr.bf16.mxu0 0
    %1879 = vmatpush1.bf16.msra.mxu0 0
    %1880 = vmatprep.subr.bf16.mxu0 0
    %1881 = vmatpush1.bf16.msra.mxu0 0
    %1882 = vmatprep.subr.bf16.mxu0 0
    %1883 = vmatpush1.bf16.msra.mxu0 0
    %1884 = vmatprep.subr.bf16.mxu0 0
    %1885 = vmatpush1.bf16.msra.mxu0 0
    %1886 = vmatprep.subr.bf16.mxu0 0
    %1887 = vmatpush1.bf16.msra.mxu0 0
    %1888 = vmatprep.subr.bf16.mxu0 0
    %1889 = vmatpush1.bf16.msra.mxu0 0
    %1890 = vmatprep.mubr.bf16.mxu0 0
    %1891 = vmatmul.mubr.bf16.gmra.mrb[0].mxu0 %v1774
    %v1892 = vpop.f32.mrb[0].mxu0
    %v1893 = vadd.f32 0.0, %v1892
    %v1894 = vpop.f32.mrb[0].mxu0
    %v1895 = vadd.f32 0.0, %v1894
    %v1896 = vpop.f32.mrb[0].mxu0
    %v1897 = vpop.f32.mrb[0].mxu0
    %1898 = vdwg.mxu0
    %1899 = vmatprep.subr.bf16.mxu0 %v516
    %1900 = vmatpush1.bf16.msra.mxu0 %v515
    %1901 = vmatprep.subr.bf16.mxu0 %v524
    %1902 = vmatpush1.bf16.msra.mxu0 %v523
    %1903 = vmatprep.subr.bf16.mxu0 %v532
    %1904 = vmatpush1.bf16.msra.mxu0 %v531
    %1905 = vmatprep.subr.bf16.mxu0 %v540
    %1906 = vmatpush1.bf16.msra.mxu0 %v539
    %1907 = vmatprep.subr.bf16.mxu0 %v548
    %1908 = vmatpush1.bf16.msra.mxu0 %v547
    %1909 = vmatprep.subr.bf16.mxu0 %v556
    %1910 = vmatpush1.bf16.msra.mxu0 %v555
    %1911 = vmatprep.subr.bf16.mxu0 %v564
    %1912 = vmatpush1.bf16.msra.mxu0 %v563
    %1913 = vmatprep.subr.bf16.mxu0 %v572
    %1914 = vmatpush1.bf16.msra.mxu0 %v571
    %1915 = vmatprep.subr.bf16.mxu0 0
    %1916 = vmatpush1.bf16.msra.mxu0 0
    %1917 = vmatprep.subr.bf16.mxu0 0
    %1918 = vmatpush1.bf16.msra.mxu0 0
    %1919 = vmatprep.subr.bf16.mxu0 0
    %1920 = vmatpush1.bf16.msra.mxu0 0
    %1921 = vmatprep.subr.bf16.mxu0 0
    %1922 = vmatpush1.bf16.msra.mxu0 0
    %1923 = vmatprep.subr.bf16.mxu0 0
    %1924 = vmatpush1.bf16.msra.mxu0 0
    %1925 = vmatprep.subr.bf16.mxu0 0
    %1926 = vmatpush1.bf16.msra.mxu0 0
    %1927 = vmatprep.subr.bf16.mxu0 0
    %1928 = vmatpush1.bf16.msra.mxu0 0
    %1929 = vmatprep.subr.bf16.mxu0 0
    %1930 = vmatpush1.bf16.msra.mxu0 0
    %1931 = vmatprep.mubr.bf16.mxu0 0
    %1932 = vmatmul.mubr.bf16.gmra.mrb[0].mxu0 %v1774
    %v1933 = vpop.f32.mrb[0].mxu0
    %v1934 = vadd.f32 0.0, %v1933
    %v1935 = vpop.f32.mrb[0].mxu0
    %v1936 = vadd.f32 0.0, %v1935
    %v1937 = vpop.f32.mrb[0].mxu0
    %v1938 = vpop.f32.mrb[0].mxu0
    %1939 = vdwg.mxu0
    %1940 = vmatprep.subr.bf16.mxu0 %v930
    %1941 = vmatpush1.bf16.msra.mxu0 %v929
    %1942 = vmatprep.subr.bf16.mxu0 %v934
    %1943 = vmatpush1.bf16.msra.mxu0 %v933
    %1944 = vmatprep.subr.bf16.mxu0 %v938
    %1945 = vmatpush1.bf16.msra.mxu0 %v937
    %1946 = vmatprep.subr.bf16.mxu0 %v942
    %1947 = vmatpush1.bf16.msra.mxu0 %v941
    %1948 = vmatprep.subr.bf16.mxu0 %v946
    %1949 = vmatpush1.bf16.msra.mxu0 %v945
    %1950 = vmatprep.subr.bf16.mxu0 %v950
    %1951 = vmatpush1.bf16.msra.mxu0 %v949
    %1952 = vmatprep.subr.bf16.mxu0 %v954
    %1953 = vmatpush1.bf16.msra.mxu0 %v953
    %1954 = vmatprep.subr.bf16.mxu0 %v958
    %1955 = vmatpush1.bf16.msra.mxu0 %v957
    %1956 = vmatprep.subr.bf16.mxu0 0
    %1957 = vmatpush1.bf16.msra.mxu0 0
    %1958 = vmatprep.subr.bf16.mxu0 0
    %1959 = vmatpush1.bf16.msra.mxu0 0
    %1960 = vmatprep.subr.bf16.mxu0 0
    %1961 = vmatpush1.bf16.msra.mxu0 0
    %1962 = vmatprep.subr.bf16.mxu0 0
    %1963 = vmatpush1.bf16.msra.mxu0 0
    %1964 = vmatprep.subr.bf16.mxu0 0
    %1965 = vmatpush1.bf16.msra.mxu0 0
    %1966 = vmatprep.subr.bf16.mxu0 0
    %1967 = vmatpush1.bf16.msra.mxu0 0
    %1968 = vmatprep.subr.bf16.mxu0 0
    %1969 = vmatpush1.bf16.msra.mxu0 0
    %1970 = vmatprep.subr.bf16.mxu0 0
    %1971 = vmatpush1.bf16.msra.mxu0 0
    %1972 = vmatprep.mubr.bf16.mxu0 0
    %1973 = vmatmul.mubr.bf16.gmra.mrb[0].mxu0 %v1772
    %v1974 = vpop.f32.mrb[0].mxu0
    %v1975 = vadd.f32 0.0, %v1974
    %v1976 = vpop.f32.mrb[0].mxu0
    %v1977 = vadd.f32 0.0, %v1976
    %v1978 = vpop.f32.mrb[0].mxu0
    %v1979 = vpop.f32.mrb[0].mxu0
    %1980 = vdwg.mxu0
    %1981 = vmatprep.subr.bf16.mxu0 %v932
    %1982 = vmatpush1.bf16.msra.mxu0 %v931
    %1983 = vmatprep.subr.bf16.mxu0 %v936
    %1984 = vmatpush1.bf16.msra.mxu0 %v935
    %1985 = vmatprep.subr.bf16.mxu0 %v940
    %1986 = vmatpush1.bf16.msra.mxu0 %v939
    %1987 = vmatprep.subr.bf16.mxu0 %v944
    %1988 = vmatpush1.bf16.msra.mxu0 %v943
    %1989 = vmatprep.subr.bf16.mxu0 %v948
    %1990 = vmatpush1.bf16.msra.mxu0 %v947
    %1991 = vmatprep.subr.bf16.mxu0 %v952
    %1992 = vmatpush1.bf16.msra.mxu0 %v951
    %1993 = vmatprep.subr.bf16.mxu0 %v956
    %1994 = vmatpush1.bf16.msra.mxu0 %v955
    %1995 = vmatprep.subr.bf16.mxu0 %v960
    %1996 = vmatpush1.bf16.msra.mxu0 %v959
    %1997 = vmatprep.subr.bf16.mxu0 0
    %1998 = vmatpush1.bf16.msra.mxu0 0
    %1999 = vmatprep.subr.bf16.mxu0 0
    %2000 = vmatpush1.bf16.msra.mxu0 0
    %2001 = vmatprep.subr.bf16.mxu0 0
    %2002 = vmatpush1.bf16.msra.mxu0 0
    %2003 = vmatprep.subr.bf16.mxu0 0
    %2004 = vmatpush1.bf16.msra.mxu0 0
    %2005 = vmatprep.subr.bf16.mxu0 0
    %2006 = vmatpush1.bf16.msra.mxu0 0
    %2007 = vmatprep.subr.bf16.mxu0 0
    %2008 = vmatpush1.bf16.msra.mxu0 0
    %2009 = vmatprep.subr.bf16.mxu0 0
    %2010 = vmatpush1.bf16.msra.mxu0 0
    %2011 = vmatprep.subr.bf16.mxu0 0
    %2012 = vmatpush1.bf16.msra.mxu0 0
    %2013 = vmatprep.mubr.bf16.mxu0 0
    %2014 = vmatmul.mubr.bf16.gmra.mrb[0].mxu0 %v1772
    %v2015 = vpop.f32.mrb[0].mxu0
    %v2016 = vadd.f32 0.0, %v2015
    %v2017 = vpop.f32.mrb[0].mxu0
    %v2018 = vadd.f32 0.0, %v2017
    %v2019 = vpop.f32.mrb[0].mxu0
    %v2020 = vpop.f32.mrb[0].mxu0
    %2021 = vdwg.mxu0
    %v2022 = vadd.f32 %v1893, %v1975
    %v2023 = vadd.f32 %v1895, %v1977
    %v2024 = vadd.f32 %v1934, %v2016
    %v2025 = vadd.f32 %v1936, %v2018
    %v2026 = vadd.f32 %v2022, %v216
    %v2027 = vadd.f32 %v2023, %v220
    %v2028 = vadd.f32 %v2024, %v224
    %v2029 = vadd.f32 %v2025, %v228
    %v2030 = vld [vmem:[#allocation2 + $0x20] sm:$0x3]
    %v2031 = vld [vmem:[#allocation2 + $0x28] sm:$0x3]
    %v2032 = vld [vmem:[#allocation2 + $0x30] sm:$0x3]
    %v2033 = vld [vmem:[#allocation2 + $0x38] sm:$0x3]
    %v2034 = vadd.f32 %v2030, %v1811
    %v2035 = vadd.f32 %v2031, %v1813
    %v2036 = vadd.f32 %v2032, %v1852
    %v2037 = vadd.f32 %v2033, %v1854
    %v2042 = vrot.slane %v2034, 6
    %v2043 = vrot.slane %v2035, 6
    %v2044 = vrot.slane %v2036, 6
    %v2045 = vrot.slane %v2037, 6
    %v2050 = vsel %vm1103, %v2026, %v2042
    %v2051 = vsel %vm1103, %v2027, %v2043
    %v2052 = vsel %vm1103, %v2028, %v2044
    %v2053 = vsel %vm1103, %v2029, %v2045
    %v2054 = vxor.u32 %v2050, 2147483648
    %v2055 = vmul.f32 %v2054, 1.442695
    %v2056 = vpow.pop %v2055
    %v2057 = vadd.f32 %v2056, 1.0
    %v2058 = vrcp.pop %v2057
    %v2059 = vmul.f32 1.0, %v2058
    %v2060 = vxor.u32 %v2051, 2147483648
    %v2061 = vmul.f32 %v2060, 1.442695
    %v2062 = vpow.pop %v2061
    %v2063 = vadd.f32 %v2062, 1.0
    %v2064 = vrcp.pop %v2063
    %v2065 = vmul.f32 1.0, %v2064
    %v2066 = vtanh.pop %v2052
    %v2067 = vxor.u32 %v2053, 2147483648
    %v2068 = vmul.f32 %v2067, 1.442695
    %v2069 = vpow.pop %v2068
    %v2070 = vadd.f32 %v2069, 1.0
    %v2071 = vrcp.pop %v2070
    %v2072 = vmul.f32 1.0, %v2071
    %v2073 = vmul.f32 %v2065, %v1769
    %v2074 = vmul.f32 %v2059, %v2066
    %v2075 = vadd.f32 %v2073, %v2074
    %v2076 = vtanh.pop %v2075
    %v2077 = vmul.f32 %v2072, %v2076
    %v2078 = vpack.c.bf16 %v2077, %v2077
    %v2080 = vrot.slane %v2078, 1
    %2082 = vmatprep.subr.bf16.mxu0 %v510
    %2083 = vmatpush1.bf16.msra.mxu0 %v509
    %2084 = vmatprep.subr.bf16.mxu0 %v518
    %2085 = vmatpush1.bf16.msra.mxu0 %v517
    %2086 = vmatprep.subr.bf16.mxu0 %v526
    %2087 = vmatpush1.bf16.msra.mxu0 %v525
    %2088 = vmatprep.subr.bf16.mxu0 %v534
    %2089 = vmatpush1.bf16.msra.mxu0 %v533
    %2090 = vmatprep.subr.bf16.mxu0 %v542
    %2091 = vmatpush1.bf16.msra.mxu0 %v541
    %2092 = vmatprep.subr.bf16.mxu0 %v550
    %2093 = vmatpush1.bf16.msra.mxu0 %v549
    %2094 = vmatprep.subr.bf16.mxu0 %v558
    %2095 = vmatpush1.bf16.msra.mxu0 %v557
    %2096 = vmatprep.subr.bf16.mxu0 %v566
    %2097 = vmatpush1.bf16.msra.mxu0 %v565
    %2098 = vmatprep.subr.bf16.mxu0 0
    %2099 = vmatpush1.bf16.msra.mxu0 0
    %2100 = vmatprep.subr.bf16.mxu0 0
    %2101 = vmatpush1.bf16.msra.mxu0 0
    %2102 = vmatprep.subr.bf16.mxu0 0
    %2103 = vmatpush1.bf16.msra.mxu0 0
    %2104 = vmatprep.subr.bf16.mxu0 0
    %2105 = vmatpush1.bf16.msra.mxu0 0
    %2106 = vmatprep.subr.bf16.mxu0 0
    %2107 = vmatpush1.bf16.msra.mxu0 0
    %2108 = vmatprep.subr.bf16.mxu0 0
    %2109 = vmatpush1.bf16.msra.mxu0 0
    %2110 = vmatprep.subr.bf16.mxu0 0
    %2111 = vmatpush1.bf16.msra.mxu0 0
    %2112 = vmatprep.subr.bf16.mxu0 0
    %2113 = vmatpush1.bf16.msra.mxu0 0
    %2114 = vmatprep.mubr.bf16.mxu0 0
    %2115 = vmatmul.mubr.bf16.gmra.mrb[0].mxu0 %v2080
    %v2116 = vpop.f32.mrb[0].mxu0
    %v2117 = vadd.f32 0.0, %v2116
    %v2118 = vpop.f32.mrb[0].mxu0
    %v2119 = vadd.f32 0.0, %v2118
    %v2120 = vpop.f32.mrb[0].mxu0
    %v2121 = vpop.f32.mrb[0].mxu0
    %2122 = vdwg.mxu0
    %2123 = vmatprep.subr.bf16.mxu0 %v512
    %2124 = vmatpush1.bf16.msra.mxu0 %v511
    %2125 = vmatprep.subr.bf16.mxu0 %v520
    %2126 = vmatpush1.bf16.msra.mxu0 %v519
    %2127 = vmatprep.subr.bf16.mxu0 %v528
    %2128 = vmatpush1.bf16.msra.mxu0 %v527
    %2129 = vmatprep.subr.bf16.mxu0 %v536
    %2130 = vmatpush1.bf16.msra.mxu0 %v535
    %2131 = vmatprep.subr.bf16.mxu0 %v544
    %2132 = vmatpush1.bf16.msra.mxu0 %v543
    %2133 = vmatprep.subr.bf16.mxu0 %v552
    %2134 = vmatpush1.bf16.msra.mxu0 %v551
    %2135 = vmatprep.subr.bf16.mxu0 %v560
    %2136 = vmatpush1.bf16.msra.mxu0 %v559
    %2137 = vmatprep.subr.bf16.mxu0 %v568
    %2138 = vmatpush1.bf16.msra.mxu0 %v567
    %2139 = vmatprep.subr.bf16.mxu0 0
    %2140 = vmatpush1.bf16.msra.mxu0 0
    %2141 = vmatprep.subr.bf16.mxu0 0
    %2142 = vmatpush1.bf16.msra.mxu0 0
    %2143 = vmatprep.subr.bf16.mxu0 0
    %2144 = vmatpush1.bf16.msra.mxu0 0
    %2145 = vmatprep.subr.bf16.mxu0 0
    %2146 = vmatpush1.bf16.msra.mxu0 0
    %2147 = vmatprep.subr.bf16.mxu0 0
    %2148 = vmatpush1.bf16.msra.mxu0 0
    %2149 = vmatprep.subr.bf16.mxu0 0
    %2150 = vmatpush1.bf16.msra.mxu0 0
    %2151 = vmatprep.subr.bf16.mxu0 0
    %2152 = vmatpush1.bf16.msra.mxu0 0
    %2153 = vmatprep.subr.bf16.mxu0 0
    %2154 = vmatpush1.bf16.msra.mxu0 0
    %2155 = vmatprep.mubr.bf16.mxu0 0
    %2156 = vmatmul.mubr.bf16.gmra.mrb[0].mxu0 %v2080
    %v2157 = vpop.f32.mrb[0].mxu0
    %v2158 = vadd.f32 0.0, %v2157
    %v2159 = vpop.f32.mrb[0].mxu0
    %v2160 = vadd.f32 0.0, %v2159
    %v2161 = vpop.f32.mrb[0].mxu0
    %v2162 = vpop.f32.mrb[0].mxu0
    %2163 = vdwg.mxu0
    %2164 = vmatprep.subr.bf16.mxu0 %v514
    %2165 = vmatpush1.bf16.msra.mxu0 %v513
    %2166 = vmatprep.subr.bf16.mxu0 %v522
    %2167 = vmatpush1.bf16.msra.mxu0 %v521
    %2168 = vmatprep.subr.bf16.mxu0 %v530
    %2169 = vmatpush1.bf16.msra.mxu0 %v529
    %2170 = vmatprep.subr.bf16.mxu0 %v538
    %2171 = vmatpush1.bf16.msra.mxu0 %v537
    %2172 = vmatprep.subr.bf16.mxu0 %v546
    %2173 = vmatpush1.bf16.msra.mxu0 %v545
    %2174 = vmatprep.subr.bf16.mxu0 %v554
    %2175 = vmatpush1.bf16.msra.mxu0 %v553
    %2176 = vmatprep.subr.bf16.mxu0 %v562
    %2177 = vmatpush1.bf16.msra.mxu0 %v561
    %2178 = vmatprep.subr.bf16.mxu0 %v570
    %2179 = vmatpush1.bf16.msra.mxu0 %v569
    %2180 = vmatprep.subr.bf16.mxu0 0
    %2181 = vmatpush1.bf16.msra.mxu0 0
    %2182 = vmatprep.subr.bf16.mxu0 0
    %2183 = vmatpush1.bf16.msra.mxu0 0
    %2184 = vmatprep.subr.bf16.mxu0 0
    %2185 = vmatpush1.bf16.msra.mxu0 0
    %2186 = vmatprep.subr.bf16.mxu0 0
    %2187 = vmatpush1.bf16.msra.mxu0 0
    %2188 = vmatprep.subr.bf16.mxu0 0
    %2189 = vmatpush1.bf16.msra.mxu0 0
    %2190 = vmatprep.subr.bf16.mxu0 0
    %2191 = vmatpush1.bf16.msra.mxu0 0
    %2192 = vmatprep.subr.bf16.mxu0 0
    %2193 = vmatpush1.bf16.msra.mxu0 0
    %2194 = vmatprep.subr.bf16.mxu0 0
    %2195 = vmatpush1.bf16.msra.mxu0 0
    %2196 = vmatprep.mubr.bf16.mxu0 0
    %2197 = vmatmul.mubr.bf16.gmra.mrb[0].mxu0 %v2080
    %v2198 = vpop.f32.mrb[0].mxu0
    %v2199 = vadd.f32 0.0, %v2198
    %v2200 = vpop.f32.mrb[0].mxu0
    %v2201 = vadd.f32 0.0, %v2200
    %v2202 = vpop.f32.mrb[0].mxu0
    %v2203 = vpop.f32.mrb[0].mxu0
    %2204 = vdwg.mxu0
    %2205 = vmatprep.subr.bf16.mxu0 %v516
    %2206 = vmatpush1.bf16.msra.mxu0 %v515
    %2207 = vmatprep.subr.bf16.mxu0 %v524
    %2208 = vmatpush1.bf16.msra.mxu0 %v523
    %2209 = vmatprep.subr.bf16.mxu0 %v532
    %2210 = vmatpush1.bf16.msra.mxu0 %v531
    %2211 = vmatprep.subr.bf16.mxu0 %v540
    %2212 = vmatpush1.bf16.msra.mxu0 %v539
    %2213 = vmatprep.subr.bf16.mxu0 %v548
    %2214 = vmatpush1.bf16.msra.mxu0 %v547
    %2215 = vmatprep.subr.bf16.mxu0 %v556
    %2216 = vmatpush1.bf16.msra.mxu0 %v555
    %2217 = vmatprep.subr.bf16.mxu0 %v564
    %2218 = vmatpush1.bf16.msra.mxu0 %v563
    %2219 = vmatprep.subr.bf16.mxu0 %v572
    %2220 = vmatpush1.bf16.msra.mxu0 %v571
    %2221 = vmatprep.subr.bf16.mxu0 0
    %2222 = vmatpush1.bf16.msra.mxu0 0
    %2223 = vmatprep.subr.bf16.mxu0 0
    %2224 = vmatpush1.bf16.msra.mxu0 0
    %2225 = vmatprep.subr.bf16.mxu0 0
    %2226 = vmatpush1.bf16.msra.mxu0 0
    %2227 = vmatprep.subr.bf16.mxu0 0
    %2228 = vmatpush1.bf16.msra.mxu0 0
    %2229 = vmatprep.subr.bf16.mxu0 0
    %2230 = vmatpush1.bf16.msra.mxu0 0
    %2231 = vmatprep.subr.bf16.mxu0 0
    %2232 = vmatpush1.bf16.msra.mxu0 0
    %2233 = vmatprep.subr.bf16.mxu0 0
    %2234 = vmatpush1.bf16.msra.mxu0 0
    %2235 = vmatprep.subr.bf16.mxu0 0
    %2236 = vmatpush1.bf16.msra.mxu0 0
    %2237 = vmatprep.mubr.bf16.mxu0 0
    %2238 = vmatmul.mubr.bf16.gmra.mrb[0].mxu0 %v2080
    %v2239 = vpop.f32.mrb[0].mxu0
    %v2240 = vadd.f32 0.0, %v2239
    %v2241 = vpop.f32.mrb[0].mxu0
    %v2242 = vadd.f32 0.0, %v2241
    %v2243 = vpop.f32.mrb[0].mxu0
    %v2244 = vpop.f32.mrb[0].mxu0
    %2245 = vdwg.mxu0
    %2246 = vmatprep.subr.bf16.mxu0 %v930
    %2247 = vmatpush1.bf16.msra.mxu0 %v929
    %2248 = vmatprep.subr.bf16.mxu0 %v934
    %2249 = vmatpush1.bf16.msra.mxu0 %v933
    %2250 = vmatprep.subr.bf16.mxu0 %v938
    %2251 = vmatpush1.bf16.msra.mxu0 %v937
    %2252 = vmatprep.subr.bf16.mxu0 %v942
    %2253 = vmatpush1.bf16.msra.mxu0 %v941
    %2254 = vmatprep.subr.bf16.mxu0 %v946
    %2255 = vmatpush1.bf16.msra.mxu0 %v945
    %2256 = vmatprep.subr.bf16.mxu0 %v950
    %2257 = vmatpush1.bf16.msra.mxu0 %v949
    %2258 = vmatprep.subr.bf16.mxu0 %v954
    %2259 = vmatpush1.bf16.msra.mxu0 %v953
    %2260 = vmatprep.subr.bf16.mxu0 %v958
    %2261 = vmatpush1.bf16.msra.mxu0 %v957
    %2262 = vmatprep.subr.bf16.mxu0 0
    %2263 = vmatpush1.bf16.msra.mxu0 0
    %2264 = vmatprep.subr.bf16.mxu0 0
    %2265 = vmatpush1.bf16.msra.mxu0 0
    %2266 = vmatprep.subr.bf16.mxu0 0
    %2267 = vmatpush1.bf16.msra.mxu0 0
    %2268 = vmatprep.subr.bf16.mxu0 0
    %2269 = vmatpush1.bf16.msra.mxu0 0
    %2270 = vmatprep.subr.bf16.mxu0 0
    %2271 = vmatpush1.bf16.msra.mxu0 0
    %2272 = vmatprep.subr.bf16.mxu0 0
    %2273 = vmatpush1.bf16.msra.mxu0 0
    %2274 = vmatprep.subr.bf16.mxu0 0
    %2275 = vmatpush1.bf16.msra.mxu0 0
    %2276 = vmatprep.subr.bf16.mxu0 0
    %2277 = vmatpush1.bf16.msra.mxu0 0
    %2278 = vmatprep.mubr.bf16.mxu0 0
    %2279 = vmatmul.mubr.bf16.gmra.mrb[0].mxu0 %v2078
    %v2280 = vpop.f32.mrb[0].mxu0
    %v2281 = vadd.f32 0.0, %v2280
    %v2282 = vpop.f32.mrb[0].mxu0
    %v2283 = vadd.f32 0.0, %v2282
    %v2284 = vpop.f32.mrb[0].mxu0
    %v2285 = vpop.f32.mrb[0].mxu0
    %2286 = vdwg.mxu0
    %2287 = vmatprep.subr.bf16.mxu0 %v932
    %2288 = vmatpush1.bf16.msra.mxu0 %v931
    %2289 = vmatprep.subr.bf16.mxu0 %v936
    %2290 = vmatpush1.bf16.msra.mxu0 %v935
    %2291 = vmatprep.subr.bf16.mxu0 %v940
    %2292 = vmatpush1.bf16.msra.mxu0 %v939
    %2293 = vmatprep.subr.bf16.mxu0 %v944
    %2294 = vmatpush1.bf16.msra.mxu0 %v943
    %2295 = vmatprep.subr.bf16.mxu0 %v948
    %2296 = vmatpush1.bf16.msra.mxu0 %v947
    %2297 = vmatprep.subr.bf16.mxu0 %v952
    %2298 = vmatpush1.bf16.msra.mxu0 %v951
    %2299 = vmatprep.subr.bf16.mxu0 %v956
    %2300 = vmatpush1.bf16.msra.mxu0 %v955
    %2301 = vmatprep.subr.bf16.mxu0 %v960
    %2302 = vmatpush1.bf16.msra.mxu0 %v959
    %2303 = vmatprep.subr.bf16.mxu0 0
    %2304 = vmatpush1.bf16.msra.mxu0 0
    %2305 = vmatprep.subr.bf16.mxu0 0
    %2306 = vmatpush1.bf16.msra.mxu0 0
    %2307 = vmatprep.subr.bf16.mxu0 0
    %2308 = vmatpush1.bf16.msra.mxu0 0
    %2309 = vmatprep.subr.bf16.mxu0 0
    %2310 = vmatpush1.bf16.msra.mxu0 0
    %2311 = vmatprep.subr.bf16.mxu0 0
    %2312 = vmatpush1.bf16.msra.mxu0 0
    %2313 = vmatprep.subr.bf16.mxu0 0
    %2314 = vmatpush1.bf16.msra.mxu0 0
    %2315 = vmatprep.subr.bf16.mxu0 0
    %2316 = vmatpush1.bf16.msra.mxu0 0
    %2317 = vmatprep.subr.bf16.mxu0 0
    %2318 = vmatpush1.bf16.msra.mxu0 0
    %2319 = vmatprep.mubr.bf16.mxu0 0
    %2320 = vmatmul.mubr.bf16.gmra.mrb[0].mxu0 %v2078
    %v2321 = vpop.f32.mrb[0].mxu0
    %v2322 = vadd.f32 0.0, %v2321
    %v2323 = vpop.f32.mrb[0].mxu0
    %v2324 = vadd.f32 0.0, %v2323
    %v2325 = vpop.f32.mrb[0].mxu0
    %v2326 = vpop.f32.mrb[0].mxu0
    %2327 = vdwg.mxu0
    %v2328 = vadd.f32 %v2199, %v2281
    %v2329 = vadd.f32 %v2201, %v2283
    %v2330 = vadd.f32 %v2240, %v2322
    %v2331 = vadd.f32 %v2242, %v2324
    %v2332 = vadd.f32 %v2328, %v216
    %v2333 = vadd.f32 %v2329, %v220
    %v2334 = vadd.f32 %v2330, %v224
    %v2335 = vadd.f32 %v2331, %v228
    %v2336 = vld [vmem:[#allocation2 + $0x20] sm:$0xc]
    %v2337 = vld [vmem:[#allocation2 + $0x28] sm:$0xc]
    %v2338 = vld [vmem:[#allocation2 + $0x30] sm:$0xc]
    %v2339 = vld [vmem:[#allocation2 + $0x38] sm:$0xc]
    %v2344 = vrot.slane %v2117, 6
    %v2345 = vrot.slane %v2119, 6
    %v2346 = vrot.slane %v2158, 6
    %v2347 = vrot.slane %v2160, 6
    %v2352 = vadd.f32 %v2336, %v2344
    %v2353 = vadd.f32 %v2337, %v2345
    %v2354 = vadd.f32 %v2338, %v2346
    %v2355 = vadd.f32 %v2339, %v2347
    %v2356 = vsel %vm1103, %v2332, %v2352
    %v2357 = vsel %vm1103, %v2333, %v2353
    %v2358 = vsel %vm1103, %v2334, %v2354
    %v2359 = vsel %vm1103, %v2335, %v2355
    %v2360 = vxor.u32 %v2356, 2147483648
    %v2361 = vmul.f32 %v2360, 1.442695
    %v2362 = vpow.pop %v2361
    %v2363 = vadd.f32 %v2362, 1.0
    %v2364 = vrcp.pop %v2363
    %v2365 = vmul.f32 1.0, %v2364
    %v2366 = vxor.u32 %v2357, 2147483648
    %v2367 = vmul.f32 %v2366, 1.442695
    %v2368 = vpow.pop %v2367
    %v2369 = vadd.f32 %v2368, 1.0
    %v2370 = vrcp.pop %v2369
    %v2371 = vmul.f32 1.0, %v2370
    %v2372 = vtanh.pop %v2358
    %v2373 = vxor.u32 %v2359, 2147483648
    %v2374 = vmul.f32 %v2373, 1.442695
    %v2375 = vpow.pop %v2374
    %v2376 = vadd.f32 %v2375, 1.0
    %v2377 = vrcp.pop %v2376
    %v2378 = vmul.f32 1.0, %v2377
    %v2379 = vmul.f32 %v2371, %v2075
    %v2380 = vmul.f32 %v2365, %v2372
    %v2381 = vadd.f32 %v2379, %v2380
    %v2382 = vtanh.pop %v2381
    %v2383 = vmul.f32 %v2378, %v2382
    %v2384 = vpack.c.bf16 %v2383, %v2383
    %v2386 = vrot.slane %v2384, 1
    %2388 = vmatprep.subr.bf16.mxu0 %v510
    %2389 = vmatpush1.bf16.msra.mxu0 %v509
    %2390 = vmatprep.subr.bf16.mxu0 %v518
    %2391 = vmatpush1.bf16.msra.mxu0 %v517
    %2392 = vmatprep.subr.bf16.mxu0 %v526
    %2393 = vmatpush1.bf16.msra.mxu0 %v525
    %2394 = vmatprep.subr.bf16.mxu0 %v534
    %2395 = vmatpush1.bf16.msra.mxu0 %v533
    %2396 = vmatprep.subr.bf16.mxu0 %v542
    %2397 = vmatpush1.bf16.msra.mxu0 %v541
    %2398 = vmatprep.subr.bf16.mxu0 %v550
    %2399 = vmatpush1.bf16.msra.mxu0 %v549
    %2400 = vmatprep.subr.bf16.mxu0 %v558
    %2401 = vmatpush1.bf16.msra.mxu0 %v557
    %2402 = vmatprep.subr.bf16.mxu0 %v566
    %2403 = vmatpush1.bf16.msra.mxu0 %v565
    %2404 = vmatprep.subr.bf16.mxu0 0
    %2405 = vmatpush1.bf16.msra.mxu0 0
    %2406 = vmatprep.subr.bf16.mxu0 0
    %2407 = vmatpush1.bf16.msra.mxu0 0
    %2408 = vmatprep.subr.bf16.mxu0 0
    %2409 = vmatpush1.bf16.msra.mxu0 0
    %2410 = vmatprep.subr.bf16.mxu0 0
    %2411 = vmatpush1.bf16.msra.mxu0 0
    %2412 = vmatprep.subr.bf16.mxu0 0
    %2413 = vmatpush1.bf16.msra.mxu0 0
    %2414 = vmatprep.subr.bf16.mxu0 0
    %2415 = vmatpush1.bf16.msra.mxu0 0
    %2416 = vmatprep.subr.bf16.mxu0 0
    %2417 = vmatpush1.bf16.msra.mxu0 0
    %2418 = vmatprep.subr.bf16.mxu0 0
    %2419 = vmatpush1.bf16.msra.mxu0 0
    %2420 = vmatprep.mubr.bf16.mxu0 0
    %2421 = vmatmul.mubr.bf16.gmra.mrb[0].mxu0 %v2386
    %v2422 = vpop.f32.mrb[0].mxu0
    %v2423 = vadd.f32 0.0, %v2422
    %v2424 = vpop.f32.mrb[0].mxu0
    %v2425 = vadd.f32 0.0, %v2424
    %v2426 = vpop.f32.mrb[0].mxu0
    %v2427 = vpop.f32.mrb[0].mxu0
    %2428 = vdwg.mxu0
    %2429 = vmatprep.subr.bf16.mxu0 %v512
    %2430 = vmatpush1.bf16.msra.mxu0 %v511
    %2431 = vmatprep.subr.bf16.mxu0 %v520
    %2432 = vmatpush1.bf16.msra.mxu0 %v519
    %2433 = vmatprep.subr.bf16.mxu0 %v528
    %2434 = vmatpush1.bf16.msra.mxu0 %v527
    %2435 = vmatprep.subr.bf16.mxu0 %v536
    %2436 = vmatpush1.bf16.msra.mxu0 %v535
    %2437 = vmatprep.subr.bf16.mxu0 %v544
    %2438 = vmatpush1.bf16.msra.mxu0 %v543
    %2439 = vmatprep.subr.bf16.mxu0 %v552
    %2440 = vmatpush1.bf16.msra.mxu0 %v551
    %2441 = vmatprep.subr.bf16.mxu0 %v560
    %2442 = vmatpush1.bf16.msra.mxu0 %v559
    %2443 = vmatprep.subr.bf16.mxu0 %v568
    %2444 = vmatpush1.bf16.msra.mxu0 %v567
    %2445 = vmatprep.subr.bf16.mxu0 0
    %2446 = vmatpush1.bf16.msra.mxu0 0
    %2447 = vmatprep.subr.bf16.mxu0 0
    %2448 = vmatpush1.bf16.msra.mxu0 0
    %2449 = vmatprep.subr.bf16.mxu0 0
    %2450 = vmatpush1.bf16.msra.mxu0 0
    %2451 = vmatprep.subr.bf16.mxu0 0
    %2452 = vmatpush1.bf16.msra.mxu0 0
    %2453 = vmatprep.subr.bf16.mxu0 0
    %2454 = vmatpush1.bf16.msra.mxu0 0
    %2455 = vmatprep.subr.bf16.mxu0 0
    %2456 = vmatpush1.bf16.msra.mxu0 0
    %2457 = vmatprep.subr.bf16.mxu0 0
    %2458 = vmatpush1.bf16.msra.mxu0 0
    %2459 = vmatprep.subr.bf16.mxu0 0
    %2460 = vmatpush1.bf16.msra.mxu0 0
    %2461 = vmatprep.mubr.bf16.mxu0 0
    %2462 = vmatmul.mubr.bf16.gmra.mrb[0].mxu0 %v2386
    %v2463 = vpop.f32.mrb[0].mxu0
    %v2464 = vadd.f32 0.0, %v2463
    %v2465 = vpop.f32.mrb[0].mxu0
    %v2466 = vadd.f32 0.0, %v2465
    %v2467 = vpop.f32.mrb[0].mxu0
    %v2468 = vpop.f32.mrb[0].mxu0
    %2469 = vdwg.mxu0
    %2470 = vmatprep.subr.bf16.mxu0 %v514
    %2471 = vmatpush1.bf16.msra.mxu0 %v513
    %2472 = vmatprep.subr.bf16.mxu0 %v522
    %2473 = vmatpush1.bf16.msra.mxu0 %v521
    %2474 = vmatprep.subr.bf16.mxu0 %v530
    %2475 = vmatpush1.bf16.msra.mxu0 %v529
    %2476 = vmatprep.subr.bf16.mxu0 %v538
    %2477 = vmatpush1.bf16.msra.mxu0 %v537
    %2478 = vmatprep.subr.bf16.mxu0 %v546
    %2479 = vmatpush1.bf16.msra.mxu0 %v545
    %2480 = vmatprep.subr.bf16.mxu0 %v554
    %2481 = vmatpush1.bf16.msra.mxu0 %v553
    %2482 = vmatprep.subr.bf16.mxu0 %v562
    %2483 = vmatpush1.bf16.msra.mxu0 %v561
    %2484 = vmatprep.subr.bf16.mxu0 %v570
    %2485 = vmatpush1.bf16.msra.mxu0 %v569
    %2486 = vmatprep.subr.bf16.mxu0 0
    %2487 = vmatpush1.bf16.msra.mxu0 0
    %2488 = vmatprep.subr.bf16.mxu0 0
    %2489 = vmatpush1.bf16.msra.mxu0 0
    %2490 = vmatprep.subr.bf16.mxu0 0
    %2491 = vmatpush1.bf16.msra.mxu0 0
    %2492 = vmatprep.subr.bf16.mxu0 0
    %2493 = vmatpush1.bf16.msra.mxu0 0
    %2494 = vmatprep.subr.bf16.mxu0 0
    %2495 = vmatpush1.bf16.msra.mxu0 0
    %2496 = vmatprep.subr.bf16.mxu0 0
    %2497 = vmatpush1.bf16.msra.mxu0 0
    %2498 = vmatprep.subr.bf16.mxu0 0
    %2499 = vmatpush1.bf16.msra.mxu0 0
    %2500 = vmatprep.subr.bf16.mxu0 0
    %2501 = vmatpush1.bf16.msra.mxu0 0
    %2502 = vmatprep.mubr.bf16.mxu0 0
    %2503 = vmatmul.mubr.bf16.gmra.mrb[0].mxu0 %v2386
    %v2504 = vpop.f32.mrb[0].mxu0
    %v2505 = vadd.f32 0.0, %v2504
    %v2506 = vpop.f32.mrb[0].mxu0
    %v2507 = vadd.f32 0.0, %v2506
    %v2508 = vpop.f32.mrb[0].mxu0
    %v2509 = vpop.f32.mrb[0].mxu0
    %2510 = vdwg.mxu0
    %2511 = vmatprep.subr.bf16.mxu0 %v516
    %2512 = vmatpush1.bf16.msra.mxu0 %v515
    %2513 = vmatprep.subr.bf16.mxu0 %v524
    %2514 = vmatpush1.bf16.msra.mxu0 %v523
    %2515 = vmatprep.subr.bf16.mxu0 %v532
    %2516 = vmatpush1.bf16.msra.mxu0 %v531
    %2517 = vmatprep.subr.bf16.mxu0 %v540
    %2518 = vmatpush1.bf16.msra.mxu0 %v539
    %2519 = vmatprep.subr.bf16.mxu0 %v548
    %2520 = vmatpush1.bf16.msra.mxu0 %v547
    %2521 = vmatprep.subr.bf16.mxu0 %v556
    %2522 = vmatpush1.bf16.msra.mxu0 %v555
    %2523 = vmatprep.subr.bf16.mxu0 %v564
    %2524 = vmatpush1.bf16.msra.mxu0 %v563
    %2525 = vmatprep.subr.bf16.mxu0 %v572
    %2526 = vmatpush1.bf16.msra.mxu0 %v571
    %2527 = vmatprep.subr.bf16.mxu0 0
    %2528 = vmatpush1.bf16.msra.mxu0 0
    %2529 = vmatprep.subr.bf16.mxu0 0
    %2530 = vmatpush1.bf16.msra.mxu0 0
    %2531 = vmatprep.subr.bf16.mxu0 0
    %2532 = vmatpush1.bf16.msra.mxu0 0
    %2533 = vmatprep.subr.bf16.mxu0 0
    %2534 = vmatpush1.bf16.msra.mxu0 0
    %2535 = vmatprep.subr.bf16.mxu0 0
    %2536 = vmatpush1.bf16.msra.mxu0 0
    %2537 = vmatprep.subr.bf16.mxu0 0
    %2538 = vmatpush1.bf16.msra.mxu0 0
    %2539 = vmatprep.subr.bf16.mxu0 0
    %2540 = vmatpush1.bf16.msra.mxu0 0
    %2541 = vmatprep.subr.bf16.mxu0 0
    %2542 = vmatpush1.bf16.msra.mxu0 0
    %2543 = vmatprep.mubr.bf16.mxu0 0
    %2544 = vmatmul.mubr.bf16.gmra.mrb[0].mxu0 %v2386
    %v2545 = vpop.f32.mrb[0].mxu0
    %v2546 = vadd.f32 0.0, %v2545
    %v2547 = vpop.f32.mrb[0].mxu0
    %v2548 = vadd.f32 0.0, %v2547
    %v2549 = vpop.f32.mrb[0].mxu0
    %v2550 = vpop.f32.mrb[0].mxu0
    %2551 = vdwg.mxu0
    %2552 = vmatprep.subr.bf16.mxu0 %v930
    %2553 = vmatpush1.bf16.msra.mxu0 %v929
    %2554 = vmatprep.subr.bf16.mxu0 %v934
    %2555 = vmatpush1.bf16.msra.mxu0 %v933
    %2556 = vmatprep.subr.bf16.mxu0 %v938
    %2557 = vmatpush1.bf16.msra.mxu0 %v937
    %2558 = vmatprep.subr.bf16.mxu0 %v942
    %2559 = vmatpush1.bf16.msra.mxu0 %v941
    %2560 = vmatprep.subr.bf16.mxu0 %v946
    %2561 = vmatpush1.bf16.msra.mxu0 %v945
    %2562 = vmatprep.subr.bf16.mxu0 %v950
    %2563 = vmatpush1.bf16.msra.mxu0 %v949
    %2564 = vmatprep.subr.bf16.mxu0 %v954
    %2565 = vmatpush1.bf16.msra.mxu0 %v953
    %2566 = vmatprep.subr.bf16.mxu0 %v958
    %2567 = vmatpush1.bf16.msra.mxu0 %v957
    %2568 = vmatprep.subr.bf16.mxu0 0
    %2569 = vmatpush1.bf16.msra.mxu0 0
    %2570 = vmatprep.subr.bf16.mxu0 0
    %2571 = vmatpush1.bf16.msra.mxu0 0
    %2572 = vmatprep.subr.bf16.mxu0 0
    %2573 = vmatpush1.bf16.msra.mxu0 0
    %2574 = vmatprep.subr.bf16.mxu0 0
    %2575 = vmatpush1.bf16.msra.mxu0 0
    %2576 = vmatprep.subr.bf16.mxu0 0
    %2577 = vmatpush1.bf16.msra.mxu0 0
    %2578 = vmatprep.subr.bf16.mxu0 0
    %2579 = vmatpush1.bf16.msra.mxu0 0
    %2580 = vmatprep.subr.bf16.mxu0 0
    %2581 = vmatpush1.bf16.msra.mxu0 0
    %2582 = vmatprep.subr.bf16.mxu0 0
    %2583 = vmatpush1.bf16.msra.mxu0 0
    %2584 = vmatprep.mubr.bf16.mxu0 0
    %2585 = vmatmul.mubr.bf16.gmra.mrb[0].mxu0 %v2384
    %v2586 = vpop.f32.mrb[0].mxu0
    %v2587 = vadd.f32 0.0, %v2586
    %v2588 = vpop.f32.mrb[0].mxu0
    %v2589 = vadd.f32 0.0, %v2588
    %v2590 = vpop.f32.mrb[0].mxu0
    %v2591 = vpop.f32.mrb[0].mxu0
    %2592 = vdwg.mxu0
    %2593 = vmatprep.subr.bf16.mxu0 %v932
    %2594 = vmatpush1.bf16.msra.mxu0 %v931
    %2595 = vmatprep.subr.bf16.mxu0 %v936
    %2596 = vmatpush1.bf16.msra.mxu0 %v935
    %2597 = vmatprep.subr.bf16.mxu0 %v940
    %2598 = vmatpush1.bf16.msra.mxu0 %v939
    %2599 = vmatprep.subr.bf16.mxu0 %v944
    %2600 = vmatpush1.bf16.msra.mxu0 %v943
    %2601 = vmatprep.subr.bf16.mxu0 %v948
    %2602 = vmatpush1.bf16.msra.mxu0 %v947
    %2603 = vmatprep.subr.bf16.mxu0 %v952
    %2604 = vmatpush1.bf16.msra.mxu0 %v951
    %2605 = vmatprep.subr.bf16.mxu0 %v956
    %2606 = vmatpush1.bf16.msra.mxu0 %v955
    %2607 = vmatprep.subr.bf16.mxu0 %v960
    %2608 = vmatpush1.bf16.msra.mxu0 %v959
    %2609 = vmatprep.subr.bf16.mxu0 0
    %2610 = vmatpush1.bf16.msra.mxu0 0
    %2611 = vmatprep.subr.bf16.mxu0 0
    %2612 = vmatpush1.bf16.msra.mxu0 0
    %2613 = vmatprep.subr.bf16.mxu0 0
    %2614 = vmatpush1.bf16.msra.mxu0 0
    %2615 = vmatprep.subr.bf16.mxu0 0
    %2616 = vmatpush1.bf16.msra.mxu0 0
    %2617 = vmatprep.subr.bf16.mxu0 0
    %2618 = vmatpush1.bf16.msra.mxu0 0
    %2619 = vmatprep.subr.bf16.mxu0 0
    %2620 = vmatpush1.bf16.msra.mxu0 0
    %2621 = vmatprep.subr.bf16.mxu0 0
    %2622 = vmatpush1.bf16.msra.mxu0 0
    %2623 = vmatprep.subr.bf16.mxu0 0
    %2624 = vmatpush1.bf16.msra.mxu0 0
    %2625 = vmatprep.mubr.bf16.mxu0 0
    %2626 = vmatmul.mubr.bf16.gmra.mrb[0].mxu0 %v2384
    %v2627 = vpop.f32.mrb[0].mxu0
    %v2628 = vadd.f32 0.0, %v2627
    %v2629 = vpop.f32.mrb[0].mxu0
    %v2630 = vadd.f32 0.0, %v2629
    %v2631 = vpop.f32.mrb[0].mxu0
    %v2632 = vpop.f32.mrb[0].mxu0
    %2633 = vdwg.mxu0
    %v2634 = vadd.f32 %v2505, %v2587
    %v2635 = vadd.f32 %v2507, %v2589
    %v2636 = vadd.f32 %v2546, %v2628
    %v2637 = vadd.f32 %v2548, %v2630
    %v2638 = vadd.f32 %v2634, %v216
    %v2639 = vadd.f32 %v2635, %v220
    %v2640 = vadd.f32 %v2636, %v224
    %v2641 = vadd.f32 %v2637, %v228
    %v2642 = vld [vmem:[#allocation2 + $0x20] sm:$0x30]
    %v2643 = vld [vmem:[#allocation2 + $0x28] sm:$0x30]
    %v2644 = vld [vmem:[#allocation2 + $0x30] sm:$0x30]
    %v2645 = vld [vmem:[#allocation2 + $0x38] sm:$0x30]
    %v2650 = vrot.slane %v2423, 4
    %v2651 = vrot.slane %v2425, 4
    %v2652 = vrot.slane %v2464, 4
    %v2653 = vrot.slane %v2466, 4
    %v2658 = vadd.f32 %v2642, %v2650
    %v2659 = vadd.f32 %v2643, %v2651
    %v2660 = vadd.f32 %v2644, %v2652
    %v2661 = vadd.f32 %v2645, %v2653
    %v2666 = vrot.slane %v2658, 2
    %v2667 = vrot.slane %v2659, 2
    %v2668 = vrot.slane %v2660, 2
    %v2669 = vrot.slane %v2661, 2
    %v2674 = vsel %vm1103, %v2638, %v2666
    %v2675 = vsel %vm1103, %v2639, %v2667
    %v2676 = vsel %vm1103, %v2640, %v2668
    %v2677 = vsel %vm1103, %v2641, %v2669
    %v2678 = vxor.u32 %v2674, 2147483648
    %v2679 = vmul.f32 %v2678, 1.442695
    %v2680 = vpow.pop %v2679
    %v2681 = vadd.f32 %v2680, 1.0
    %v2682 = vrcp.pop %v2681
    %v2683 = vmul.f32 1.0, %v2682
    %v2684 = vxor.u32 %v2675, 2147483648
    %v2685 = vmul.f32 %v2684, 1.442695
    %v2686 = vpow.pop %v2685
    %v2687 = vadd.f32 %v2686, 1.0
    %v2688 = vrcp.pop %v2687
    %v2689 = vmul.f32 1.0, %v2688
    %v2690 = vtanh.pop %v2676
    %v2691 = vxor.u32 %v2677, 2147483648
    %v2692 = vmul.f32 %v2691, 1.442695
    %v2693 = vpow.pop %v2692
    %v2694 = vadd.f32 %v2693, 1.0
    %v2695 = vrcp.pop %v2694
    %v2696 = vmul.f32 1.0, %v2695
    %v2697 = vmul.f32 %v2689, %v2381
    %v2698 = vmul.f32 %v2683, %v2690
    %v2699 = vadd.f32 %v2697, %v2698
    %v2700 = vtanh.pop %v2699
    %v2701 = vmul.f32 %v2696, %v2700
    %v2702 = vpack.c.bf16 %v2701, %v2701
    %v2704 = vrot.slane %v2702, 1
    %2706 = vmatprep.subr.bf16.mxu0 %v510
    %2707 = vmatpush1.bf16.msra.mxu0 %v509
    %2708 = vmatprep.subr.bf16.mxu0 %v518
    %2709 = vmatpush1.bf16.msra.mxu0 %v517
    %2710 = vmatprep.subr.bf16.mxu0 %v526
    %2711 = vmatpush1.bf16.msra.mxu0 %v525
    %2712 = vmatprep.subr.bf16.mxu0 %v534
    %2713 = vmatpush1.bf16.msra.mxu0 %v533
    %2714 = vmatprep.subr.bf16.mxu0 %v542
    %2715 = vmatpush1.bf16.msra.mxu0 %v541
    %2716 = vmatprep.subr.bf16.mxu0 %v550
    %2717 = vmatpush1.bf16.msra.mxu0 %v549
    %2718 = vmatprep.subr.bf16.mxu0 %v558
    %2719 = vmatpush1.bf16.msra.mxu0 %v557
    %2720 = vmatprep.subr.bf16.mxu0 %v566
    %2721 = vmatpush1.bf16.msra.mxu0 %v565
    %2722 = vmatprep.subr.bf16.mxu0 0
    %2723 = vmatpush1.bf16.msra.mxu0 0
    %2724 = vmatprep.subr.bf16.mxu0 0
    %2725 = vmatpush1.bf16.msra.mxu0 0
    %2726 = vmatprep.subr.bf16.mxu0 0
    %2727 = vmatpush1.bf16.msra.mxu0 0
    %2728 = vmatprep.subr.bf16.mxu0 0
    %2729 = vmatpush1.bf16.msra.mxu0 0
    %2730 = vmatprep.subr.bf16.mxu0 0
    %2731 = vmatpush1.bf16.msra.mxu0 0
    %2732 = vmatprep.subr.bf16.mxu0 0
    %2733 = vmatpush1.bf16.msra.mxu0 0
    %2734 = vmatprep.subr.bf16.mxu0 0
    %2735 = vmatpush1.bf16.msra.mxu0 0
    %2736 = vmatprep.subr.bf16.mxu0 0
    %2737 = vmatpush1.bf16.msra.mxu0 0
    %2738 = vmatprep.mubr.bf16.mxu0 0
    %2739 = vmatmul.mubr.bf16.gmra.mrb[0].mxu0 %v2704
    %v2740 = vpop.f32.mrb[0].mxu0
    %v2741 = vadd.f32 0.0, %v2740
    %v2742 = vpop.f32.mrb[0].mxu0
    %v2743 = vadd.f32 0.0, %v2742
    %v2744 = vpop.f32.mrb[0].mxu0
    %v2745 = vpop.f32.mrb[0].mxu0
    %2746 = vdwg.mxu0
    %2747 = vmatprep.subr.bf16.mxu0 %v512
    %2748 = vmatpush1.bf16.msra.mxu0 %v511
    %2749 = vmatprep.subr.bf16.mxu0 %v520
    %2750 = vmatpush1.bf16.msra.mxu0 %v519
    %2751 = vmatprep.subr.bf16.mxu0 %v528
    %2752 = vmatpush1.bf16.msra.mxu0 %v527
    %2753 = vmatprep.subr.bf16.mxu0 %v536
    %2754 = vmatpush1.bf16.msra.mxu0 %v535
    %2755 = vmatprep.subr.bf16.mxu0 %v544
    %2756 = vmatpush1.bf16.msra.mxu0 %v543
    %2757 = vmatprep.subr.bf16.mxu0 %v552
    %2758 = vmatpush1.bf16.msra.mxu0 %v551
    %2759 = vmatprep.subr.bf16.mxu0 %v560
    %2760 = vmatpush1.bf16.msra.mxu0 %v559
    %2761 = vmatprep.subr.bf16.mxu0 %v568
    %2762 = vmatpush1.bf16.msra.mxu0 %v567
    %2763 = vmatprep.subr.bf16.mxu0 0
    %2764 = vmatpush1.bf16.msra.mxu0 0
    %2765 = vmatprep.subr.bf16.mxu0 0
    %2766 = vmatpush1.bf16.msra.mxu0 0
    %2767 = vmatprep.subr.bf16.mxu0 0
    %2768 = vmatpush1.bf16.msra.mxu0 0
    %2769 = vmatprep.subr.bf16.mxu0 0
    %2770 = vmatpush1.bf16.msra.mxu0 0
    %2771 = vmatprep.subr.bf16.mxu0 0
    %2772 = vmatpush1.bf16.msra.mxu0 0
    %2773 = vmatprep.subr.bf16.mxu0 0
    %2774 = vmatpush1.bf16.msra.mxu0 0
    %2775 = vmatprep.subr.bf16.mxu0 0
    %2776 = vmatpush1.bf16.msra.mxu0 0
    %2777 = vmatprep.subr.bf16.mxu0 0
    %2778 = vmatpush1.bf16.msra.mxu0 0
    %2779 = vmatprep.mubr.bf16.mxu0 0
    %2780 = vmatmul.mubr.bf16.gmra.mrb[0].mxu0 %v2704
    %v2781 = vpop.f32.mrb[0].mxu0
    %v2782 = vadd.f32 0.0, %v2781
    %v2783 = vpop.f32.mrb[0].mxu0
    %v2784 = vadd.f32 0.0, %v2783
    %v2785 = vpop.f32.mrb[0].mxu0
    %v2786 = vpop.f32.mrb[0].mxu0
    %2787 = vdwg.mxu0
    %2788 = vmatprep.subr.bf16.mxu0 %v514
    %2789 = vmatpush1.bf16.msra.mxu0 %v513
    %2790 = vmatprep.subr.bf16.mxu0 %v522
    %2791 = vmatpush1.bf16.msra.mxu0 %v521
    %2792 = vmatprep.subr.bf16.mxu0 %v530
    %2793 = vmatpush1.bf16.msra.mxu0 %v529
    %2794 = vmatprep.subr.bf16.mxu0 %v538
    %2795 = vmatpush1.bf16.msra.mxu0 %v537
    %2796 = vmatprep.subr.bf16.mxu0 %v546
    %2797 = vmatpush1.bf16.msra.mxu0 %v545
    %2798 = vmatprep.subr.bf16.mxu0 %v554
    %2799 = vmatpush1.bf16.msra.mxu0 %v553
    %2800 = vmatprep.subr.bf16.mxu0 %v562
    %2801 = vmatpush1.bf16.msra.mxu0 %v561
    %2802 = vmatprep.subr.bf16.mxu0 %v570
    %2803 = vmatpush1.bf16.msra.mxu0 %v569
    %2804 = vmatprep.subr.bf16.mxu0 0
    %2805 = vmatpush1.bf16.msra.mxu0 0
    %2806 = vmatprep.subr.bf16.mxu0 0
    %2807 = vmatpush1.bf16.msra.mxu0 0
    %2808 = vmatprep.subr.bf16.mxu0 0
    %2809 = vmatpush1.bf16.msra.mxu0 0
    %2810 = vmatprep.subr.bf16.mxu0 0
    %2811 = vmatpush1.bf16.msra.mxu0 0
    %2812 = vmatprep.subr.bf16.mxu0 0
    %2813 = vmatpush1.bf16.msra.mxu0 0
    %2814 = vmatprep.subr.bf16.mxu0 0
    %2815 = vmatpush1.bf16.msra.mxu0 0
    %2816 = vmatprep.subr.bf16.mxu0 0
    %2817 = vmatpush1.bf16.msra.mxu0 0
    %2818 = vmatprep.subr.bf16.mxu0 0
    %2819 = vmatpush1.bf16.msra.mxu0 0
    %2820 = vmatprep.mubr.bf16.mxu0 0
    %2821 = vmatmul.mubr.bf16.gmra.mrb[0].mxu0 %v2704
    %v2822 = vpop.f32.mrb[0].mxu0
    %v2823 = vadd.f32 0.0, %v2822
    %v2824 = vpop.f32.mrb[0].mxu0
    %v2825 = vadd.f32 0.0, %v2824
    %v2826 = vpop.f32.mrb[0].mxu0
    %v2827 = vpop.f32.mrb[0].mxu0
    %2828 = vdwg.mxu0
    %2829 = vmatprep.subr.bf16.mxu0 %v516
    %2830 = vmatpush1.bf16.msra.mxu0 %v515
    %2831 = vmatprep.subr.bf16.mxu0 %v524
    %2832 = vmatpush1.bf16.msra.mxu0 %v523
    %2833 = vmatprep.subr.bf16.mxu0 %v532
    %2834 = vmatpush1.bf16.msra.mxu0 %v531
    %2835 = vmatprep.subr.bf16.mxu0 %v540
    %2836 = vmatpush1.bf16.msra.mxu0 %v539
    %2837 = vmatprep.subr.bf16.mxu0 %v548
    %2838 = vmatpush1.bf16.msra.mxu0 %v547
    %2839 = vmatprep.subr.bf16.mxu0 %v556
    %2840 = vmatpush1.bf16.msra.mxu0 %v555
    %2841 = vmatprep.subr.bf16.mxu0 %v564
    %2842 = vmatpush1.bf16.msra.mxu0 %v563
    %2843 = vmatprep.subr.bf16.mxu0 %v572
    %2844 = vmatpush1.bf16.msra.mxu0 %v571
    %2845 = vmatprep.subr.bf16.mxu0 0
    %2846 = vmatpush1.bf16.msra.mxu0 0
    %2847 = vmatprep.subr.bf16.mxu0 0
    %2848 = vmatpush1.bf16.msra.mxu0 0
    %2849 = vmatprep.subr.bf16.mxu0 0
    %2850 = vmatpush1.bf16.msra.mxu0 0
    %2851 = vmatprep.subr.bf16.mxu0 0
    %2852 = vmatpush1.bf16.msra.mxu0 0
    %2853 = vmatprep.subr.bf16.mxu0 0
    %2854 = vmatpush1.bf16.msra.mxu0 0
    %2855 = vmatprep.subr.bf16.mxu0 0
    %2856 = vmatpush1.bf16.msra.mxu0 0
    %2857 = vmatprep.subr.bf16.mxu0 0
    %2858 = vmatpush1.bf16.msra.mxu0 0
    %2859 = vmatprep.subr.bf16.mxu0 0
    %2860 = vmatpush1.bf16.msra.mxu0 0
    %2861 = vmatprep.mubr.bf16.mxu0 0
    %2862 = vmatmul.mubr.bf16.gmra.mrb[0].mxu0 %v2704
    %v2863 = vpop.f32.mrb[0].mxu0
    %v2864 = vadd.f32 0.0, %v2863
    %v2865 = vpop.f32.mrb[0].mxu0
    %v2866 = vadd.f32 0.0, %v2865
    %v2867 = vpop.f32.mrb[0].mxu0
    %v2868 = vpop.f32.mrb[0].mxu0
    %2869 = vdwg.mxu0
    %2870 = vmatprep.subr.bf16.mxu0 %v930
    %2871 = vmatpush1.bf16.msra.mxu0 %v929
    %2872 = vmatprep.subr.bf16.mxu0 %v934
    %2873 = vmatpush1.bf16.msra.mxu0 %v933
    %2874 = vmatprep.subr.bf16.mxu0 %v938
    %2875 = vmatpush1.bf16.msra.mxu0 %v937
    %2876 = vmatprep.subr.bf16.mxu0 %v942
    %2877 = vmatpush1.bf16.msra.mxu0 %v941
    %2878 = vmatprep.subr.bf16.mxu0 %v946
    %2879 = vmatpush1.bf16.msra.mxu0 %v945
    %2880 = vmatprep.subr.bf16.mxu0 %v950
    %2881 = vmatpush1.bf16.msra.mxu0 %v949
    %2882 = vmatprep.subr.bf16.mxu0 %v954
    %2883 = vmatpush1.bf16.msra.mxu0 %v953
    %2884 = vmatprep.subr.bf16.mxu0 %v958
    %2885 = vmatpush1.bf16.msra.mxu0 %v957
    %2886 = vmatprep.subr.bf16.mxu0 0
    %2887 = vmatpush1.bf16.msra.mxu0 0
    %2888 = vmatprep.subr.bf16.mxu0 0
    %2889 = vmatpush1.bf16.msra.mxu0 0
    %2890 = vmatprep.subr.bf16.mxu0 0
    %2891 = vmatpush1.bf16.msra.mxu0 0
    %2892 = vmatprep.subr.bf16.mxu0 0
    %2893 = vmatpush1.bf16.msra.mxu0 0
    %2894 = vmatprep.subr.bf16.mxu0 0
    %2895 = vmatpush1.bf16.msra.mxu0 0
    %2896 = vmatprep.subr.bf16.mxu0 0
    %2897 = vmatpush1.bf16.msra.mxu0 0
    %2898 = vmatprep.subr.bf16.mxu0 0
    %2899 = vmatpush1.bf16.msra.mxu0 0
    %2900 = vmatprep.subr.bf16.mxu0 0
    %2901 = vmatpush1.bf16.msra.mxu0 0
    %2902 = vmatprep.mubr.bf16.mxu0 0
    %2903 = vmatmul.mubr.bf16.gmra.mrb[0].mxu0 %v2702
    %v2904 = vpop.f32.mrb[0].mxu0
    %v2905 = vadd.f32 0.0, %v2904
    %v2906 = vpop.f32.mrb[0].mxu0
    %v2907 = vadd.f32 0.0, %v2906
    %v2908 = vpop.f32.mrb[0].mxu0
    %v2909 = vpop.f32.mrb[0].mxu0
    %2910 = vdwg.mxu0
    %2911 = vmatprep.subr.bf16.mxu0 %v932
    %2912 = vmatpush1.bf16.msra.mxu0 %v931
    %2913 = vmatprep.subr.bf16.mxu0 %v936
    %2914 = vmatpush1.bf16.msra.mxu0 %v935
    %2915 = vmatprep.subr.bf16.mxu0 %v940
    %2916 = vmatpush1.bf16.msra.mxu0 %v939
    %2917 = vmatprep.subr.bf16.mxu0 %v944
    %2918 = vmatpush1.bf16.msra.mxu0 %v943
    %2919 = vmatprep.subr.bf16.mxu0 %v948
    %2920 = vmatpush1.bf16.msra.mxu0 %v947
    %2921 = vmatprep.subr.bf16.mxu0 %v952
    %2922 = vmatpush1.bf16.msra.mxu0 %v951
    %2923 = vmatprep.subr.bf16.mxu0 %v956
    %2924 = vmatpush1.bf16.msra.mxu0 %v955
    %2925 = vmatprep.subr.bf16.mxu0 %v960
    %2926 = vmatpush1.bf16.msra.mxu0 %v959
    %2927 = vmatprep.subr.bf16.mxu0 0
    %2928 = vmatpush1.bf16.msra.mxu0 0
    %2929 = vmatprep.subr.bf16.mxu0 0
    %2930 = vmatpush1.bf16.msra.mxu0 0
    %2931 = vmatprep.subr.bf16.mxu0 0
    %2932 = vmatpush1.bf16.msra.mxu0 0
    %2933 = vmatprep.subr.bf16.mxu0 0
    %2934 = vmatpush1.bf16.msra.mxu0 0
    %2935 = vmatprep.subr.bf16.mxu0 0
    %2936 = vmatpush1.bf16.msra.mxu0 0
    %2937 = vmatprep.subr.bf16.mxu0 0
    %2938 = vmatpush1.bf16.msra.mxu0 0
    %2939 = vmatprep.subr.bf16.mxu0 0
    %2940 = vmatpush1.bf16.msra.mxu0 0
    %2941 = vmatprep.subr.bf16.mxu0 0
    %2942 = vmatpush1.bf16.msra.mxu0 0
    %2943 = vmatprep.mubr.bf16.mxu0 0
    %2944 = vmatmul.mubr.bf16.gmra.mrb[0].mxu0 %v2702
    %v2945 = vpop.f32.mrb[0].mxu0
    %v2946 = vadd.f32 0.0, %v2945
    %v2947 = vpop.f32.mrb[0].mxu0
    %v2948 = vadd.f32 0.0, %v2947
    %v2949 = vpop.f32.mrb[0].mxu0
    %v2950 = vpop.f32.mrb[0].mxu0
    %2951 = vdwg.mxu0
    %v2952 = vadd.f32 %v2823, %v2905
    %v2953 = vadd.f32 %v2825, %v2907
    %v2954 = vadd.f32 %v2864, %v2946
    %v2955 = vadd.f32 %v2866, %v2948
    %v2956 = vadd.f32 %v2952, %v216
    %v2957 = vadd.f32 %v2953, %v220
    %v2958 = vadd.f32 %v2954, %v224
    %v2959 = vadd.f32 %v2955, %v228
    %v2960 = vld [vmem:[#allocation2 + $0x20] sm:$0xc0]
    %v2961 = vld [vmem:[#allocation2 + $0x28] sm:$0xc0]
    %v2962 = vld [vmem:[#allocation2 + $0x30] sm:$0xc0]
    %v2963 = vld [vmem:[#allocation2 + $0x38] sm:$0xc0]
    %v2968 = vrot.slane %v2741, 2
    %v2969 = vrot.slane %v2743, 2
    %v2970 = vrot.slane %v2782, 2
    %v2971 = vrot.slane %v2784, 2
    %v2976 = vadd.f32 %v2960, %v2968
    %v2977 = vadd.f32 %v2961, %v2969
    %v2978 = vadd.f32 %v2962, %v2970
    %v2979 = vadd.f32 %v2963, %v2971
    %v2984 = vrot.slane %v2976, 4
    %v2985 = vrot.slane %v2977, 4
    %v2986 = vrot.slane %v2978, 4
    %v2987 = vrot.slane %v2979, 4
    %v2992 = vsel %vm1103, %v2956, %v2984
    %v2993 = vsel %vm1103, %v2957, %v2985
    %v2994 = vsel %vm1103, %v2958, %v2986
    %v2995 = vsel %vm1103, %v2959, %v2987
    %v2996 = vxor.u32 %v2992, 2147483648
    %v2997 = vmul.f32 %v2996, 1.442695
    %v2998 = vpow.pop %v2997
    %v2999 = vadd.f32 %v2998, 1.0
    %v3000 = vrcp.pop %v2999
    %v3001 = vmul.f32 1.0, %v3000
    %v3002 = vxor.u32 %v2993, 2147483648
    %v3003 = vmul.f32 %v3002, 1.442695
    %v3004 = vpow.pop %v3003
    %v3005 = vadd.f32 %v3004, 1.0
    %v3006 = vrcp.pop %v3005
    %v3007 = vmul.f32 1.0, %v3006
    %v3008 = vtanh.pop %v2994
    %v3009 = vxor.u32 %v2995, 2147483648
    %v3010 = vmul.f32 %v3009, 1.442695
    %v3011 = vpow.pop %v3010
    %v3012 = vadd.f32 %v3011, 1.0
    %v3013 = vrcp.pop %v3012
    %v3014 = vmul.f32 1.0, %v3013
    %v3015 = vmul.f32 %v3007, %v2699
    %v3016 = vmul.f32 %v3001, %v3008
    %v3017 = vadd.f32 %v3015, %v3016
    %v3018 = vtanh.pop %v3017
    %v3019 = vmul.f32 %v3014, %v3018
    %v3020 = vpack.c.bf16 %v3019, %v3019
    %v3022 = vrot.slane %v3020, 1
    %3024 = vmatprep.subr.bf16.mxu0 %v514
    %3025 = vmatpush1.bf16.msra.mxu0 %v513
    %3026 = vmatprep.subr.bf16.mxu0 %v522
    %3027 = vmatpush1.bf16.msra.mxu0 %v521
    %3028 = vmatprep.subr.bf16.mxu0 %v530
    %3029 = vmatpush1.bf16.msra.mxu0 %v529
    %3030 = vmatprep.subr.bf16.mxu0 %v538
    %3031 = vmatpush1.bf16.msra.mxu0 %v537
    %3032 = vmatprep.subr.bf16.mxu0 %v546
    %3033 = vmatpush1.bf16.msra.mxu0 %v545
    %3034 = vmatprep.subr.bf16.mxu0 %v554
    %3035 = vmatpush1.bf16.msra.mxu0 %v553
    %3036 = vmatprep.subr.bf16.mxu0 %v562
    %3037 = vmatpush1.bf16.msra.mxu0 %v561
    %3038 = vmatprep.subr.bf16.mxu0 %v570
    %3039 = vmatpush1.bf16.msra.mxu0 %v569
    %3040 = vmatprep.subr.bf16.mxu0 0
    %3041 = vmatpush1.bf16.msra.mxu0 0
    %3042 = vmatprep.subr.bf16.mxu0 0
    %3043 = vmatpush1.bf16.msra.mxu0 0
    %3044 = vmatprep.subr.bf16.mxu0 0
    %3045 = vmatpush1.bf16.msra.mxu0 0
    %3046 = vmatprep.subr.bf16.mxu0 0
    %3047 = vmatpush1.bf16.msra.mxu0 0
    %3048 = vmatprep.subr.bf16.mxu0 0
    %3049 = vmatpush1.bf16.msra.mxu0 0
    %3050 = vmatprep.subr.bf16.mxu0 0
    %3051 = vmatpush1.bf16.msra.mxu0 0
    %3052 = vmatprep.subr.bf16.mxu0 0
    %3053 = vmatpush1.bf16.msra.mxu0 0
    %3054 = vmatprep.subr.bf16.mxu0 0
    %3055 = vmatpush1.bf16.msra.mxu0 0
    %3056 = vmatprep.mubr.bf16.mxu0 0
    %3057 = vmatmul.mubr.bf16.gmra.mrb[0].mxu0 %v3022
    %v3058 = vpop.f32.mrb[0].mxu0
    %v3059 = vadd.f32 0.0, %v3058
    %v3060 = vpop.f32.mrb[0].mxu0
    %v3061 = vadd.f32 0.0, %v3060
    %v3062 = vpop.f32.mrb[0].mxu0
    %v3063 = vpop.f32.mrb[0].mxu0
    %3064 = vdwg.mxu0
    %3065 = vmatprep.subr.bf16.mxu0 %v516
    %3066 = vmatpush1.bf16.msra.mxu0 %v515
    %3067 = vmatprep.subr.bf16.mxu0 %v524
    %3068 = vmatpush1.bf16.msra.mxu0 %v523
    %3069 = vmatprep.subr.bf16.mxu0 %v532
    %3070 = vmatpush1.bf16.msra.mxu0 %v531
    %3071 = vmatprep.subr.bf16.mxu0 %v540
    %3072 = vmatpush1.bf16.msra.mxu0 %v539
    %3073 = vmatprep.subr.bf16.mxu0 %v548
    %3074 = vmatpush1.bf16.msra.mxu0 %v547
    %3075 = vmatprep.subr.bf16.mxu0 %v556
    %3076 = vmatpush1.bf16.msra.mxu0 %v555
    %3077 = vmatprep.subr.bf16.mxu0 %v564
    %3078 = vmatpush1.bf16.msra.mxu0 %v563
    %3079 = vmatprep.subr.bf16.mxu0 %v572
    %3080 = vmatpush1.bf16.msra.mxu0 %v571
    %3081 = vmatprep.subr.bf16.mxu0 0
    %3082 = vmatpush1.bf16.msra.mxu0 0
    %3083 = vmatprep.subr.bf16.mxu0 0
    %3084 = vmatpush1.bf16.msra.mxu0 0
    %3085 = vmatprep.subr.bf16.mxu0 0
    %3086 = vmatpush1.bf16.msra.mxu0 0
    %3087 = vmatprep.subr.bf16.mxu0 0
    %3088 = vmatpush1.bf16.msra.mxu0 0
    %3089 = vmatprep.subr.bf16.mxu0 0
    %3090 = vmatpush1.bf16.msra.mxu0 0
    %3091 = vmatprep.subr.bf16.mxu0 0
    %3092 = vmatpush1.bf16.msra.mxu0 0
    %3093 = vmatprep.subr.bf16.mxu0 0
    %3094 = vmatpush1.bf16.msra.mxu0 0
    %3095 = vmatprep.subr.bf16.mxu0 0
    %3096 = vmatpush1.bf16.msra.mxu0 0
    %3097 = vmatprep.mubr.bf16.mxu0 0
    %3098 = vmatmul.mubr.bf16.gmra.mrb[0].mxu0 %v3022
    %v3099 = vpop.f32.mrb[0].mxu0
    %v3100 = vadd.f32 0.0, %v3099
    %v3101 = vpop.f32.mrb[0].mxu0
    %v3102 = vadd.f32 0.0, %v3101
    %v3103 = vpop.f32.mrb[0].mxu0
    %v3104 = vpop.f32.mrb[0].mxu0
    %3105 = vdwg.mxu0
    %3106 = vmatprep.subr.bf16.mxu0 %v930
    %3107 = vmatpush1.bf16.msra.mxu0 %v929
    %3108 = vmatprep.subr.bf16.mxu0 %v934
    %3109 = vmatpush1.bf16.msra.mxu0 %v933
    %3110 = vmatprep.subr.bf16.mxu0 %v938
    %3111 = vmatpush1.bf16.msra.mxu0 %v937
    %3112 = vmatprep.subr.bf16.mxu0 %v942
    %3113 = vmatpush1.bf16.msra.mxu0 %v941
    %3114 = vmatprep.subr.bf16.mxu0 %v946
    %3115 = vmatpush1.bf16.msra.mxu0 %v945
    %3116 = vmatprep.subr.bf16.mxu0 %v950
    %3117 = vmatpush1.bf16.msra.mxu0 %v949
    %3118 = vmatprep.subr.bf16.mxu0 %v954
    %3119 = vmatpush1.bf16.msra.mxu0 %v953
    %3120 = vmatprep.subr.bf16.mxu0 %v958
    %3121 = vmatpush1.bf16.msra.mxu0 %v957
    %3122 = vmatprep.subr.bf16.mxu0 0
    %3123 = vmatpush1.bf16.msra.mxu0 0
    %3124 = vmatprep.subr.bf16.mxu0 0
    %3125 = vmatpush1.bf16.msra.mxu0 0
    %3126 = vmatprep.subr.bf16.mxu0 0
    %3127 = vmatpush1.bf16.msra.mxu0 0
    %3128 = vmatprep.subr.bf16.mxu0 0
    %3129 = vmatpush1.bf16.msra.mxu0 0
    %3130 = vmatprep.subr.bf16.mxu0 0
    %3131 = vmatpush1.bf16.msra.mxu0 0
    %3132 = vmatprep.subr.bf16.mxu0 0
    %3133 = vmatpush1.bf16.msra.mxu0 0
    %3134 = vmatprep.subr.bf16.mxu0 0
    %3135 = vmatpush1.bf16.msra.mxu0 0
    %3136 = vmatprep.subr.bf16.mxu0 0
    %3137 = vmatpush1.bf16.msra.mxu0 0
    %3138 = vmatprep.mubr.bf16.mxu0 0
    %3139 = vmatmul.mubr.bf16.gmra.mrb[0].mxu0 %v3020
    %v3140 = vpop.f32.mrb[0].mxu0
    %v3141 = vadd.f32 0.0, %v3140
    %v3142 = vpop.f32.mrb[0].mxu0
    %v3143 = vadd.f32 0.0, %v3142
    %v3144 = vpop.f32.mrb[0].mxu0
    %v3145 = vpop.f32.mrb[0].mxu0
    %3146 = vdwg.mxu0
    %3147 = vmatprep.subr.bf16.mxu0 %v932
    %3148 = vmatpush1.bf16.msra.mxu0 %v931
    %3149 = vmatprep.subr.bf16.mxu0 %v936
    %3150 = vmatpush1.bf16.msra.mxu0 %v935
    %3151 = vmatprep.subr.bf16.mxu0 %v940
    %3152 = vmatpush1.bf16.msra.mxu0 %v939
    %3153 = vmatprep.subr.bf16.mxu0 %v944
    %3154 = vmatpush1.bf16.msra.mxu0 %v943
    %3155 = vmatprep.subr.bf16.mxu0 %v948
    %3156 = vmatpush1.bf16.msra.mxu0 %v947
    %3157 = vmatprep.subr.bf16.mxu0 %v952
    %3158 = vmatpush1.bf16.msra.mxu0 %v951
    %3159 = vmatprep.subr.bf16.mxu0 %v956
    %3160 = vmatpush1.bf16.msra.mxu0 %v955
    %3161 = vmatprep.subr.bf16.mxu0 %v960
    %3162 = vmatpush1.bf16.msra.mxu0 %v959
    %3163 = vmatprep.subr.bf16.mxu0 0
    %3164 = vmatpush1.bf16.msra.mxu0 0
    %3165 = vmatprep.subr.bf16.mxu0 0
    %3166 = vmatpush1.bf16.msra.mxu0 0
    %3167 = vmatprep.subr.bf16.mxu0 0
    %3168 = vmatpush1.bf16.msra.mxu0 0
    %3169 = vmatprep.subr.bf16.mxu0 0
    %3170 = vmatpush1.bf16.msra.mxu0 0
    %3171 = vmatprep.subr.bf16.mxu0 0
    %3172 = vmatpush1.bf16.msra.mxu0 0
    %3173 = vmatprep.subr.bf16.mxu0 0
    %3174 = vmatpush1.bf16.msra.mxu0 0
    %3175 = vmatprep.subr.bf16.mxu0 0
    %3176 = vmatpush1.bf16.msra.mxu0 0
    %3177 = vmatprep.subr.bf16.mxu0 0
    %3178 = vmatpush1.bf16.msra.mxu0 0
    %3179 = vmatprep.mubr.bf16.mxu0 0
    %3180 = vmatmul.mubr.bf16.gmra.mrb[0].mxu0 %v3020
    %v3181 = vpop.f32.mrb[0].mxu0
    %v3182 = vadd.f32 0.0, %v3181
    %v3183 = vpop.f32.mrb[0].mxu0
    %v3184 = vadd.f32 0.0, %v3183
    %v3185 = vpop.f32.mrb[0].mxu0
    %v3186 = vpop.f32.mrb[0].mxu0
    %3187 = vdwg.mxu0
    %v3188 = vadd.f32 %v3059, %v3141
    %v3189 = vadd.f32 %v3061, %v3143
    %v3190 = vadd.f32 %v3100, %v3182
    %v3191 = vadd.f32 %v3102, %v3184
    %v3192 = vadd.f32 %v3188, %v216
    %v3193 = vadd.f32 %v3189, %v220
    %v3194 = vadd.f32 %v3190, %v224
    %v3195 = vadd.f32 %v3191, %v228
    %v3196 = vxor.u32 %v3192, 2147483648
    %v3197 = vmul.f32 %v3196, 1.442695
    %v3198 = vpow.pop %v3197
    %v3199 = vadd.f32 %v3198, 1.0
    %v3200 = vrcp.pop %v3199
    %v3201 = vmul.f32 1.0, %v3200
    %v3202 = vxor.u32 %v3193, 2147483648
    %v3203 = vmul.f32 %v3202, 1.442695
    %v3204 = vpow.pop %v3203
    %v3205 = vadd.f32 %v3204, 1.0
    %v3206 = vrcp.pop %v3205
    %v3207 = vmul.f32 1.0, %v3206
    %v3208 = vtanh.pop %v3194
    %v3209 = vxor.u32 %v3195, 2147483648
    %v3210 = vmul.f32 %v3209, 1.442695
    %v3211 = vpow.pop %v3210
    %v3212 = vadd.f32 %v3211, 1.0
    %v3213 = vrcp.pop %v3212
    %v3214 = vmul.f32 1.0, %v3213
    %v3215 = vmul.f32 %v3207, %v3017
    %v3216 = vmul.f32 %v3201, %v3208
    %v3217 = vadd.f32 %v3215, %v3216
    %v3218 = vtanh.pop %v3217
    %v3219 = vmul.f32 %v3214, %v3218
    %v3220 = vpack.c.bf16 %v3219, %v3219
    %v3221 = vld [vmem:[%s6] sm:$0xf]
    %v3222 = vld [vmem:[%s6 + $0x4] sm:$0xf]
    %v3223 = vld [vmem:[%s6 + $0x8] sm:$0xf]
    %v3224 = vld [vmem:[%s6 + $0xc] sm:$0xf]
    %v3225 = vld [vmem:[%s6 + $0x10] sm:$0xf]
    %v3226 = vld [vmem:[%s6 + $0x14] sm:$0xf]
    %v3227 = vld [vmem:[%s6 + $0x18] sm:$0xf]
    %v3228 = vld [vmem:[%s6 + $0x1c] sm:$0xf]
    %v3229 = vld [vmem:[%s6 + $0x20] sm:$0xf]
    %v3230 = vld [vmem:[%s6 + $0x24] sm:$0xf]
    %v3231 = vld [vmem:[%s6 + $0x28] sm:$0xf]
    %v3232 = vld [vmem:[%s6 + $0x2c] sm:$0xf]
    %v3233 = vld [vmem:[%s6 + $0x30] sm:$0xf]
    %v3234 = vld [vmem:[%s6 + $0x34] sm:$0xf]
    %v3235 = vld [vmem:[%s6 + $0x38] sm:$0xf]
    %v3236 = vld [vmem:[%s6 + $0x3c] sm:$0xf]
    %v3237 = vld [vmem:[%s7] sm:$0x1]
    %v3239 = vlaneseq
    %v3240 = vshrl.u32 %v3239, 7
    %v3241 = vsub.s32 0, %v3240
    %v3242 = vrot.slane %v3237, %v3241
    %v3260 = vunpack.c.l.b16 %v3221
    %v3261 = vunpack.c.l.b16 %v3222
    %v3262 = vunpack.c.l.b16 %v3223
    %v3263 = vunpack.c.l.b16 %v3224
    %v3264 = vunpack.c.l.b16 %v3225
    %v3265 = vunpack.c.l.b16 %v3226
    %v3266 = vunpack.c.l.b16 %v3227
    %v3267 = vunpack.c.l.b16 %v3228
    %v3268 = vunpack.c.l.b16 %v3229
    %v3269 = vunpack.c.l.b16 %v3230
    %v3270 = vunpack.c.l.b16 %v3231
    %v3271 = vunpack.c.l.b16 %v3232
    %v3272 = vunpack.c.l.b16 %v3233
    %v3273 = vunpack.c.l.b16 %v3234
    %v3274 = vunpack.c.l.b16 %v3235
    %v3275 = vunpack.c.l.b16 %v3236
    %v3276 = vpack.c.b16 %v3261, %v3260
    %v3277 = vpack.c.b16 %v3263, %v3262
    %v3278 = vpack.c.b16 %v3265, %v3264
    %v3279 = vpack.c.b16 %v3267, %v3266
    %v3280 = vpack.c.b16 %v3269, %v3268
    %v3281 = vpack.c.b16 %v3271, %v3270
    %v3282 = vpack.c.b16 %v3273, %v3272
    %v3283 = vpack.c.b16 %v3275, %v3274
    %3292 = vmatprep.subr.bf16.mxu0 0
    %3293 = vmatpush1.bf16.msra.mxu0 %v3276
    %3294 = vmatprep.subr.bf16.mxu0 0
    %3295 = vmatpush1.bf16.msra.mxu0 %v3277
    %3296 = vmatprep.subr.bf16.mxu0 0
    %3297 = vmatpush1.bf16.msra.mxu0 %v3278
    %3298 = vmatprep.subr.bf16.mxu0 0
    %3299 = vmatpush1.bf16.msra.mxu0 %v3279
    %3300 = vmatprep.subr.bf16.mxu0 0
    %3301 = vmatpush1.bf16.msra.mxu0 %v3280
    %3302 = vmatprep.subr.bf16.mxu0 0
    %3303 = vmatpush1.bf16.msra.mxu0 %v3281
    %3304 = vmatprep.subr.bf16.mxu0 0
    %3305 = vmatpush1.bf16.msra.mxu0 %v3282
    %3306 = vmatprep.subr.bf16.mxu0 0
    %3307 = vmatpush1.bf16.msra.mxu0 %v3283
    %3308 = vmatprep.subr.bf16.mxu0 0
    %3309 = vmatpush1.bf16.msra.mxu0 0
    %3310 = vmatprep.subr.bf16.mxu0 0
    %3311 = vmatpush1.bf16.msra.mxu0 0
    %3312 = vmatprep.subr.bf16.mxu0 0
    %3313 = vmatpush1.bf16.msra.mxu0 0
    %3314 = vmatprep.subr.bf16.mxu0 0
    %3315 = vmatpush1.bf16.msra.mxu0 0
    %3316 = vmatprep.subr.bf16.mxu0 0
    %3317 = vmatpush1.bf16.msra.mxu0 0
    %3318 = vmatprep.subr.bf16.mxu0 0
    %3319 = vmatpush1.bf16.msra.mxu0 0
    %3320 = vmatprep.subr.bf16.mxu0 0
    %3321 = vmatpush1.bf16.msra.mxu0 0
    %3322 = vmatprep.subr.bf16.mxu0 0
    %3323 = vmatpush1.bf16.msra.mxu0 0
    %3324 = vmatprep.mubr.bf16.mxu0 0
    %3325 = vmatmul.mubr.bf16.gmra.mrb[0].mxu0 %v3220
    %v3326 = vpop.f32.mrb[0].mxu0
    %v3327 = vadd.f32 %v3242, %v3326
    %v3328 = vpop.f32.mrb[0].mxu0
    %v3329 = vpop.f32.mrb[0].mxu0
    %v3330 = vpop.f32.mrb[0].mxu0
    %3331 = vdwg.mxu0
    %vm3332 = vcmask 123904
    %3333 = vst.msk [vmem:[#allocation8] sm:$0x3] %vm3332, %v3327
    // Predicated region
    $region42: #{tpu_custom_call.1} parent=1 // pred_check
      _
    $region43: #{tpu_custom_call.1} parent=1 // pred_check_branch
      %3335 = sbr.rel (0) target = $region45
    $region44: #{tpu_custom_call.1} parent=1 // pred_region
      %s3337 = ssub.s32 32, 32
      %3338 = vsyncadd [#allocation5], %s3337
      %s3340 = sshll.u32 [#allocation8], 4
      %s3341 = int_to_ptr.vmem [resolvable:$true] %s3340
      %3343 = dma.vmem_to_hbm [thread:$0]  %s3341, 32, %s8, [#allocation5]
    $region45: #{tpu_custom_call.1} parent=1 // pred_fallthru
      _
    // Predicated region
    $region46: #{tpu_custom_call.1} parent=1 // pred_check
      _
    $region47: #{tpu_custom_call.1} parent=1 // pred_check_branch
      %3345 = sbr.rel (0) target = $region49
    $region48: #{tpu_custom_call.1} parent=1 // pred_region
      %3346 = dma.done [#allocation5], 32
    $region49: #{tpu_custom_call.1} parent=1 // pred_fallthru
      _
    %3347 = vsyncpa [#allocation4], 1
    %3348 = vsyncpa [#allocation7], 1
    %3349 = vsyncpa [#allocation5], 1

</llo_original>
